<compile_context>
chip_gen: v7x
topology: tpu7x:2x2x1
jax: 0.10.0
libtpu: 0.0.40
codegen_flags: <defaults>
</compile_context>

<pallas_src>
import functools

import jax
import jax.numpy as jnp
from jax.experimental import pallas as pl
from jax.experimental.pallas import tpu as pltpu


def _round_up(x, m):
    return (x + m - 1) // m * m


def _basic_block_kernel(xa_ref, xb_ref, w1_ref, b1_ref, w2_ref, b2_ref,
                        out_ref, xwin, mid, *, h_img):
    """Fused BasicBlock forward for one (batch, row-strip) tile.

    xa_ref : (TH, Wi, Cin_p)    rows [i*TH, i*TH+TH) of the padded input
    xb_ref : (4,  Wi, Cin_p)    rows [i*TH+TH, i*TH+TH+4)  (bottom halo)
    w1_ref : (9, Cin_p, Cout_p) bf16 conv1 taps (dy*3+dx), BN1 scale folded
    b1_ref : (1, Cout_p)        f32 folded BN1 bias
    w2_ref : (9, Cout_p, Cout_p) bf16 conv2 taps, BN2 scale folded
    b2_ref : (1, Cout_p)        f32 folded BN2 bias
    out_ref: (TH, W, Cout_p)
    xwin   : VMEM (TH+4, Wi, Cin_p) f32   assembled input window (with halo)
    mid    : VMEM (TH+2, We, Cout_p) f32  conv1 output incl. conv2's halo ring
    """
    th, w, cout = out_ref.shape
    cin = xwin.shape[2]
    we = mid.shape[1]
    w2 = we - 8
    m1 = (th + 2) * we
    m2 = th * w2

    strip = pl.program_id(1)

    # Assemble the overlapping (TH+4)-row window from the two aligned blocks.
    xwin[0:th] = xa_ref[...]
    xwin[th:th + 4] = xb_ref[...]

    # ---- conv1 (+ folded BN1 + ReLU) over the (TH+2, We) extended region ----
    # 9 accumulating tap matmuls; bf16 operands, f32 accumulation.
    acc1 = None
    for dx in range(3):
        xs = xwin[:, dx:dx + we, :]                       # (TH+4, We, Cin_p)
        for dy in range(3):
            a = xs[dy:dy + th + 2].reshape(m1, cin).astype(jnp.bfloat16)
            p = jnp.dot(a, w1_ref[dy * 3 + dx],
                        preferred_element_type=jnp.float32)
            acc1 = p if acc1 is None else acc1 + p
    out1 = jnp.maximum(acc1 + b1_ref[...], 0.0).reshape(th + 2, we, cout)

    # Zero ring conv2 treats as padding: conv1 rows outside [0, H) and cols
    # outside [0, W), folded into the single `mid` store.
    rows = (strip * th - 1
            + jax.lax.broadcasted_iota(jnp.int32, (th + 2, we, 1), 0))
    cols = jax.lax.broadcasted_iota(jnp.int32, (th + 2, we, 1), 1) - 1
    valid = (rows >= 0) & (rows < h_img) & (cols >= 0) & (cols < w)
    mid[...] = jnp.where(valid, out1, 0.0)

    # ---- conv2 (+ folded BN2) over the (TH, W2) strip ----
    acc2 = None
    for dx in range(3):
        ms = mid[:, dx:dx + w2, :]                        # (TH+2, W2, Cout_p)
        for dy in range(3):
            a = ms[dy:dy + th].reshape(m2, cout).astype(jnp.bfloat16)
            p = jnp.dot(a, w2_ref[dy * 3 + dx],
                        preferred_element_type=jnp.float32)
            acc2 = p if acc2 is None else acc2 + p
    out2 = (acc2 + b2_ref[...]).reshape(th, w2, cout)

    # ---- residual add (exact f32 path) + ReLU, lane-dense store ----
    resid = xwin[2:2 + th, 2:2 + w, :]
    out_ref[...] = jnp.maximum(out2[:, 0:w, :] + resid, 0.0).astype(out_ref.dtype)


@functools.partial(jax.jit, static_argnames=("strip_rows",))
def basic_block_forward(x_nchw, w1_oihw, s1, b1, w2_oihw, s2, b2, *,
                        strip_rows=16):
    """Fused BasicBlock forward. x_nchw: (N, C, H, W) f32 -> (N, planes, H, W)."""
    n, c, h, w = x_nchw.shape
    planes = w1_oihw.shape[0]
    assert w1_oihw.shape == (planes, c, 3, 3)
    assert w2_oihw.shape == (planes, planes, 3, 3)
    assert planes == c, "downsample=None requires inplanes == planes"
    # TODO(synk): stride>1 / dilation>1 / downsample branch and training-mode
    # BatchNorm batch statistics are not implemented (eval-mode BN folded).

    lane = 128
    cin_p = _round_up(c, lane)
    cout_p = _round_up(planes, lane)

    # Strip height: multiple of 4 (required by the 4-row bottom-halo block),
    # chosen independently of H; a ragged bottom is padded and masked.
    th = max(4, min(_round_up(strip_rows, 4), _round_up(h, 4)))
    n_strips = pl.cdiv(h, th)
    h_work = n_strips * th

    w2a = _round_up(w, 8)           # 8-aligned conv2 working width
    we = w2a + 8                    # conv1 extended-output width (>= w2a + 2)
    wi = we + 2                     # input window width incl. conv1 halo

    # NCHW -> NHWC, pad channels to the lane width; pad H by 2 on top (conv1 +
    # conv2 halo) and (h_work - h + 2) at the bottom; pad W to exactly wi.
    x_nhwc = jnp.transpose(x_nchw, (0, 2, 3, 1))
    x_pad = jnp.pad(x_nhwc, ((0, 0), (2, h_work - h + 2),
                             (2, wi - 2 - w), (0, cin_p - c)))

    def prep_w(w_oihw, scale, cip, cop):
        co, ci = w_oihw.shape[:2]
        # OIHW -> HWIO, fold BN scale into the output channel (in f32), pad to
        # lane width, reorder as 9 (dy*3+dx) taps, cast to bf16 for the MXU.
        w_hwio = jnp.transpose(w_oihw, (2, 3, 1, 0)) * scale[None, None, None, :]
        w_hwio = jnp.pad(w_hwio, ((0, 0), (0, 0), (0, cip - ci), (0, cop - co)))
        return w_hwio.reshape(9, cip, cop).astype(jnp.bfloat16)

    w1r = prep_w(w1_oihw, s1, cin_p, cout_p)
    w2r = prep_w(w2_oihw, s2, cout_p, cout_p)
    b1r = jnp.pad(b1, (0, cout_p - planes)).reshape(1, cout_p)
    b2r = jnp.pad(b2, (0, cout_p - planes)).reshape(1, cout_p)

    m1 = (th + 2) * we
    m2 = th * w2a
    steps = n * n_strips
    flops = 2 * 9 * steps * (m1 * cin_p + m2 * cout_p) * cout_p
    bytes_accessed = (4 * x_pad.size * (th + 4) // th       # input (+ halo)
                      + 4 * n * h_work * w * cout_p         # output
                      + 2 * (w1r.size + w2r.size)           # bf16 weights
                      + 4 * 2 * cout_p)                     # biases

    kernel = functools.partial(_basic_block_kernel, h_img=h)

    out_nhwc = pl.pallas_call(
        kernel,
        out_shape=jax.ShapeDtypeStruct((n, h_work, w, cout_p), jnp.float32),
        grid_spec=pltpu.PrefetchScalarGridSpec(
            num_scalar_prefetch=0,
            grid=(n, n_strips),
            in_specs=[
                # The same padded input passed twice: a th-row core block and
                # a 4-row bottom-halo block.  Both start offsets are aligned
                # to their block size, so the overlapping (th+4)-row window
                # needs no wrapper-side HBM copy.
                pl.BlockSpec((None, th, wi, cin_p), lambda b, i: (b, i, 0, 0)),
                pl.BlockSpec((None, 4, wi, cin_p),
                             lambda b, i: (b, (i + 1) * (th // 4), 0, 0)),
                pl.BlockSpec((9, cin_p, cout_p), lambda b, i: (0, 0, 0)),
                pl.BlockSpec((1, cout_p), lambda b, i: (0, 0)),
                pl.BlockSpec((9, cout_p, cout_p), lambda b, i: (0, 0, 0)),
                pl.BlockSpec((1, cout_p), lambda b, i: (0, 0)),
            ],
            out_specs=pl.BlockSpec((None, th, w, cout_p),
                                   lambda b, i: (b, i, 0, 0)),
            scratch_shapes=[
                pltpu.VMEM((th + 4, wi, cin_p), jnp.float32),   # input window
                pltpu.VMEM((th + 2, we, cout_p), jnp.float32),  # conv1 output
            ],
        ),
        compiler_params=pltpu.CompilerParams(
            dimension_semantics=("parallel", "parallel"),
            # 40 MiB scoped VMEM leaves headroom on v7x (64 MiB physical);
            # ample on v5e/v6e (128 MiB) -- raise strip_rows there instead.
            vmem_limit_bytes=40 * 1024 * 1024),
        cost_estimate=pl.CostEstimate(flops=int(flops), transcendentals=0,
                                      bytes_accessed=int(bytes_accessed)),
    )(x_pad, x_pad, w1r, b1r, w2r, b2r)

    out = out_nhwc[:, :h, :, :planes]
    return jnp.transpose(out, (0, 3, 1, 2))   # back to NCHW


def _reference_forward(x_nchw, w1_oihw, s1, b1, w2_oihw, s2, b2):
    """Pure-JAX f32 reference (eval-mode BN folded into scale/bias)."""
    dn = ("NCHW", "OIHW", "NCHW")
    out = jax.lax.conv_general_dilated(x_nchw, w1_oihw, (1, 1), ((1, 1), (1, 1)),
                                       dimension_numbers=dn)
    out = out * s1[None, :, None, None] + b1[None, :, None, None]
    out = jnp.maximum(out, 0.0)
    out = jax.lax.conv_general_dilated(out, w2_oihw, (1, 1), ((1, 1), (1, 1)),
                                       dimension_numbers=dn)
    out = out * s2[None, :, None, None] + b2[None, :, None, None]
    out = out + x_nchw
    return jnp.maximum(out, 0.0)


if __name__ == "__main__":
    key = jax.random.PRNGKey(0)
    N, C, H, W = 2, 4, 16, 16  # inplanes == planes == 4, stride=1, dilation=1
    planes = C
    eps = 1e-5

    ks = jax.random.split(key, 10)
    x = jax.random.normal(ks[0], (N, C, H, W), jnp.float32)

    # Conv weights, PyTorch OIHW shape (out, in, 3, 3), no bias.
    w1_oihw = 0.1 * jax.random.normal(ks[1], (planes, C, 3, 3), jnp.float32)
    w2_oihw = 0.1 * jax.random.normal(ks[2], (planes, planes, 3, 3), jnp.float32)

    # BatchNorm params / running stats, folded for eval mode.
    gamma1 = 1.0 + 0.1 * jax.random.normal(ks[3], (planes,), jnp.float32)
    beta1 = 0.1 * jax.random.normal(ks[4], (planes,), jnp.float32)
    mean1 = 0.1 * jax.random.normal(ks[5], (planes,), jnp.float32)
    var1 = jnp.abs(jax.random.normal(ks[6], (planes,), jnp.float32)) + 0.5
    gamma2 = 1.0 + 0.1 * jax.random.normal(ks[7], (planes,), jnp.float32)
    beta2 = 0.1 * jax.random.normal(ks[8], (planes,), jnp.float32)
    mean2 = 0.1 * jax.random.normal(ks[9], (planes,), jnp.float32)
    var2 = jnp.abs(jax.random.normal(ks[0], (planes,), jnp.float32)) + 0.5

    s1 = gamma1 / jnp.sqrt(var1 + eps)
    b1 = beta1 - mean1 * s1
    s2 = gamma2 / jnp.sqrt(var2 + eps)
    b2 = beta2 - mean2 * s2

    # strip_rows=8 so the 16-row test image exercises the multi-strip halo path.
    out = basic_block_forward(x, w1_oihw, s1, b1, w2_oihw, s2, b2, strip_rows=8)
    out = jax.block_until_ready(out)

    ref = _reference_forward(x, w1_oihw, s1, b1, w2_oihw, s2, b2)
    ref = jax.block_until_ready(ref)

    assert out.shape == (N, planes, H, W)
    # Tolerance accounts for bf16 MXU operand rounding (f32 accumulation);
    # the residual path is exact f32.
    err = float(jnp.max(jnp.abs(out - ref)))
    assert jnp.allclose(out, ref, atol=3e-2, rtol=3e-2), f"max abs err {err}"

    print("KERNEL_OK")
</pallas_src>

<mosaic_0001>
module attributes {stable_mosaic.version = 11 : i64} {
  func.func @_basic_block_kernel(%arg0: i32, %arg1: i32, %arg2: memref<1x8x26x128xf32, #tpu.memory_space<vmem>>, %arg3: memref<1x4x26x128xf32, #tpu.memory_space<vmem>>, %arg4: memref<9x128x128xbf16, #tpu.memory_space<vmem>>, %arg5: memref<1x128xf32, #tpu.memory_space<vmem>>, %arg6: memref<9x128x128xbf16, #tpu.memory_space<vmem>>, %arg7: memref<1x128xf32, #tpu.memory_space<vmem>>, %arg8: memref<1x8x16x128xf32, #tpu.memory_space<vmem>>, %arg9: memref<12x26x128xf32, #tpu.memory_space<vmem>>, %arg10: memref<10x24x128xf32, #tpu.memory_space<vmem>>) attributes {dimension_semantics = [#tpu.dimension_semantics<parallel>, #tpu.dimension_semantics<parallel>], iteration_bounds = array<i64: 2, 2>, scalar_prefetch = 0 : i64, scratch_operands = 2 : i64, tpu.core_type = #tpu.core_type<tc>, window_params = [{transform_indices = @transform_0, window_bounds = array<i64: 1, 8, 26, 128>}, {transform_indices = @transform_1, window_bounds = array<i64: 1, 4, 26, 128>}, {pipeline_mode = #tpu.pipeline_mode<synchronous>, transform_indices = @transform_2, window_bounds = array<i64: 9, 128, 128>}, {pipeline_mode = #tpu.pipeline_mode<synchronous>, transform_indices = @transform_3, window_bounds = array<i64: 1, 128>}, {pipeline_mode = #tpu.pipeline_mode<synchronous>, transform_indices = @transform_4, window_bounds = array<i64: 9, 128, 128>}, {pipeline_mode = #tpu.pipeline_mode<synchronous>, transform_indices = @transform_5, window_bounds = array<i64: 1, 128>}, {transform_indices = @transform_6, window_bounds = array<i64: 1, 8, 16, 128>}]} {
    %c0 = arith.constant 0 : index
    %c0_0 = arith.constant 0 : index
    %c0_1 = arith.constant 0 : index
    %c0_2 = arith.constant 0 : index
    %0 = vector.load %arg2[%c0, %c0_0, %c0_1, %c0_2] : memref<1x8x26x128xf32, #tpu.memory_space<vmem>>, vector<1x8x26x128xf32>
    %1 = vector.shape_cast %0 : vector<1x8x26x128xf32> to vector<8x26x128xf32>
    %c0_3 = arith.constant 0 : index
    %c0_4 = arith.constant 0 : index
    %c0_5 = arith.constant 0 : index
    %2 = vector.load %arg9[%c0_3, %c0_4, %c0_5] : memref<12x26x128xf32, #tpu.memory_space<vmem>>, vector<8x26x128xf32>
    tpu.vector_store %arg9[%c0_3, %c0_4, %c0_5], %1 {strides = array<i32>} : memref<12x26x128xf32, #tpu.memory_space<vmem>>, vector<8x26x128xf32>,
    %c0_6 = arith.constant 0 : index
    %c0_7 = arith.constant 0 : index
    %c0_8 = arith.constant 0 : index
    %c0_9 = arith.constant 0 : index
    %3 = vector.load %arg3[%c0_6, %c0_7, %c0_8, %c0_9] : memref<1x4x26x128xf32, #tpu.memory_space<vmem>>, vector<1x4x26x128xf32>
    %4 = vector.shape_cast %3 : vector<1x4x26x128xf32> to vector<4x26x128xf32>
    %c8 = arith.constant 8 : index
    %c0_10 = arith.constant 0 : index
    %c0_11 = arith.constant 0 : index
    %5 = vector.load %arg9[%c8, %c0_10, %c0_11] : memref<12x26x128xf32, #tpu.memory_space<vmem>>, vector<4x26x128xf32>
    tpu.vector_store %arg9[%c8, %c0_10, %c0_11], %4 {strides = array<i32>} : memref<12x26x128xf32, #tpu.memory_space<vmem>>, vector<4x26x128xf32>,
    %c0_12 = arith.constant 0 : index
    %c0_13 = arith.constant 0 : index
    %c0_14 = arith.constant 0 : index
    %6 = vector.load %arg9[%c0_12, %c0_13, %c0_14] : memref<12x26x128xf32, #tpu.memory_space<vmem>>, vector<12x24x128xf32>
    %7 = vector.extract_strided_slice %6 {offsets = [0, 0, 0], sizes = [10, 24, 128], strides = [1, 1, 1]} : vector<12x24x128xf32> to vector<10x24x128xf32>
    %8 = vector.shape_cast %7 : vector<10x24x128xf32> to vector<240x128xf32>
    %9 = arith.truncf %8 : vector<240x128xf32> to vector<240x128xbf16>
    %c0_15 = arith.constant 0 : index
    %c0_16 = arith.constant 0 : index
    %c0_17 = arith.constant 0 : index
    %10 = vector.load %arg4[%c0_15, %c0_16, %c0_17] : memref<9x128x128xbf16, #tpu.memory_space<vmem>>, vector<1x128x128xbf16>
    %11 = vector.shape_cast %10 : vector<1x128x128xbf16> to vector<128x128xbf16>
    %cst = arith.constant dense<0.000000e+00> : vector<240x128xf32>
    %12 = tpu.matmul %9, %11, %cst {dimension_numbers = #tpu.dot_dimension_numbers<[1], [0], [0], [1], [0, 0, 1, 1], [], []>} : vector<240x128xbf16>, vector<128x128xbf16>, vector<240x128xf32> -> vector<240x128xf32>
    %13 = vector.extract_strided_slice %6 {offsets = [1, 0, 0], sizes = [10, 24, 128], strides = [1, 1, 1]} : vector<12x24x128xf32> to vector<10x24x128xf32>
    %14 = vector.shape_cast %13 : vector<10x24x128xf32> to vector<240x128xf32>
    %15 = arith.truncf %14 : vector<240x128xf32> to vector<240x128xbf16>
    %c3 = arith.constant 3 : index
    %c0_18 = arith.constant 0 : index
    %c0_19 = arith.constant 0 : index
    %16 = vector.load %arg4[%c3, %c0_18, %c0_19] : memref<9x128x128xbf16, #tpu.memory_space<vmem>>, vector<1x128x128xbf16>
    %17 = vector.shape_cast %16 : vector<1x128x128xbf16> to vector<128x128xbf16>
    %cst_20 = arith.constant dense<0.000000e+00> : vector<240x128xf32>
    %18 = tpu.matmul %15, %17, %cst_20 {dimension_numbers = #tpu.dot_dimension_numbers<[1], [0], [0], [1], [0, 0, 1, 1], [], []>} : vector<240x128xbf16>, vector<128x128xbf16>, vector<240x128xf32> -> vector<240x128xf32>
    %19 = arith.addf %12, %18 : vector<240x128xf32>
    %20 = vector.extract_strided_slice %6 {offsets = [2, 0, 0], sizes = [10, 24, 128], strides = [1, 1, 1]} : vector<12x24x128xf32> to vector<10x24x128xf32>
    %21 = vector.shape_cast %20 : vector<10x24x128xf32> to vector<240x128xf32>
    %22 = arith.truncf %21 : vector<240x128xf32> to vector<240x128xbf16>
    %c6 = arith.constant 6 : index
    %c0_21 = arith.constant 0 : index
    %c0_22 = arith.constant 0 : index
    %23 = vector.load %arg4[%c6, %c0_21, %c0_22] : memref<9x128x128xbf16, #tpu.memory_space<vmem>>, vector<1x128x128xbf16>
    %24 = vector.shape_cast %23 : vector<1x128x128xbf16> to vector<128x128xbf16>
    %cst_23 = arith.constant dense<0.000000e+00> : vector<240x128xf32>
    %25 = tpu.matmul %22, %24, %cst_23 {dimension_numbers = #tpu.dot_dimension_numbers<[1], [0], [0], [1], [0, 0, 1, 1], [], []>} : vector<240x128xbf16>, vector<128x128xbf16>, vector<240x128xf32> -> vector<240x128xf32>
    %26 = arith.addf %19, %25 : vector<240x128xf32>
    %c0_24 = arith.constant 0 : index
    %c1 = arith.constant 1 : index
    %c0_25 = arith.constant 0 : index
    %27 = vector.load %arg9[%c0_24, %c1, %c0_25] : memref<12x26x128xf32, #tpu.memory_space<vmem>>, vector<12x24x128xf32>
    %28 = vector.extract_strided_slice %27 {offsets = [0, 0, 0], sizes = [10, 24, 128], strides = [1, 1, 1]} : vector<12x24x128xf32> to vector<10x24x128xf32>
    %29 = vector.shape_cast %28 : vector<10x24x128xf32> to vector<240x128xf32>
    %30 = arith.truncf %29 : vector<240x128xf32> to vector<240x128xbf16>
    %c1_26 = arith.constant 1 : index
    %c0_27 = arith.constant 0 : index
    %c0_28 = arith.constant 0 : index
    %31 = vector.load %arg4[%c1_26, %c0_27, %c0_28] : memref<9x128x128xbf16, #tpu.memory_space<vmem>>, vector<1x128x128xbf16>
    %32 = vector.shape_cast %31 : vector<1x128x128xbf16> to vector<128x128xbf16>
    %cst_29 = arith.constant dense<0.000000e+00> : vector<240x128xf32>
    %33 = tpu.matmul %30, %32, %cst_29 {dimension_numbers = #tpu.dot_dimension_numbers<[1], [0], [0], [1], [0, 0, 1, 1], [], []>} : vector<240x128xbf16>, vector<128x128xbf16>, vector<240x128xf32> -> vector<240x128xf32>
    %34 = arith.addf %26, %33 : vector<240x128xf32>
    %35 = vector.extract_strided_slice %27 {offsets = [1, 0, 0], sizes = [10, 24, 128], strides = [1, 1, 1]} : vector<12x24x128xf32> to vector<10x24x128xf32>
    %36 = vector.shape_cast %35 : vector<10x24x128xf32> to vector<240x128xf32>
    %37 = arith.truncf %36 : vector<240x128xf32> to vector<240x128xbf16>
    %c4 = arith.constant 4 : index
    %c0_30 = arith.constant 0 : index
    %c0_31 = arith.constant 0 : index
    %38 = vector.load %arg4[%c4, %c0_30, %c0_31] : memref<9x128x128xbf16, #tpu.memory_space<vmem>>, vector<1x128x128xbf16>
    %39 = vector.shape_cast %38 : vector<1x128x128xbf16> to vector<128x128xbf16>
    %cst_32 = arith.constant dense<0.000000e+00> : vector<240x128xf32>
    %40 = tpu.matmul %37, %39, %cst_32 {dimension_numbers = #tpu.dot_dimension_numbers<[1], [0], [0], [1], [0, 0, 1, 1], [], []>} : vector<240x128xbf16>, vector<128x128xbf16>, vector<240x128xf32> -> vector<240x128xf32>
    %41 = arith.addf %34, %40 : vector<240x128xf32>
    %42 = vector.extract_strided_slice %27 {offsets = [2, 0, 0], sizes = [10, 24, 128], strides = [1, 1, 1]} : vector<12x24x128xf32> to vector<10x24x128xf32>
    %43 = vector.shape_cast %42 : vector<10x24x128xf32> to vector<240x128xf32>
    %44 = arith.truncf %43 : vector<240x128xf32> to vector<240x128xbf16>
    %c7 = arith.constant 7 : index
    %c0_33 = arith.constant 0 : index
    %c0_34 = arith.constant 0 : index
    %45 = vector.load %arg4[%c7, %c0_33, %c0_34] : memref<9x128x128xbf16, #tpu.memory_space<vmem>>, vector<1x128x128xbf16>
    %46 = vector.shape_cast %45 : vector<1x128x128xbf16> to vector<128x128xbf16>
    %cst_35 = arith.constant dense<0.000000e+00> : vector<240x128xf32>
    %47 = tpu.matmul %44, %46, %cst_35 {dimension_numbers = #tpu.dot_dimension_numbers<[1], [0], [0], [1], [0, 0, 1, 1], [], []>} : vector<240x128xbf16>, vector<128x128xbf16>, vector<240x128xf32> -> vector<240x128xf32>
    %48 = arith.addf %41, %47 : vector<240x128xf32>
    %c0_36 = arith.constant 0 : index
    %c2 = arith.constant 2 : index
    %c0_37 = arith.constant 0 : index
    %49 = vector.load %arg9[%c0_36, %c2, %c0_37] : memref<12x26x128xf32, #tpu.memory_space<vmem>>, vector<12x24x128xf32>
    %50 = vector.extract_strided_slice %49 {offsets = [0, 0, 0], sizes = [10, 24, 128], strides = [1, 1, 1]} : vector<12x24x128xf32> to vector<10x24x128xf32>
    %51 = vector.shape_cast %50 : vector<10x24x128xf32> to vector<240x128xf32>
    %52 = arith.truncf %51 : vector<240x128xf32> to vector<240x128xbf16>
    %c2_38 = arith.constant 2 : index
    %c0_39 = arith.constant 0 : index
    %c0_40 = arith.constant 0 : index
    %53 = vector.load %arg4[%c2_38, %c0_39, %c0_40] : memref<9x128x128xbf16, #tpu.memory_space<vmem>>, vector<1x128x128xbf16>
    %54 = vector.shape_cast %53 : vector<1x128x128xbf16> to vector<128x128xbf16>
    %cst_41 = arith.constant dense<0.000000e+00> : vector<240x128xf32>
    %55 = tpu.matmul %52, %54, %cst_41 {dimension_numbers = #tpu.dot_dimension_numbers<[1], [0], [0], [1], [0, 0, 1, 1], [], []>} : vector<240x128xbf16>, vector<128x128xbf16>, vector<240x128xf32> -> vector<240x128xf32>
    %56 = arith.addf %48, %55 : vector<240x128xf32>
    %57 = vector.extract_strided_slice %49 {offsets = [1, 0, 0], sizes = [10, 24, 128], strides = [1, 1, 1]} : vector<12x24x128xf32> to vector<10x24x128xf32>
    %58 = vector.shape_cast %57 : vector<10x24x128xf32> to vector<240x128xf32>
    %59 = arith.truncf %58 : vector<240x128xf32> to vector<240x128xbf16>
    %c5 = arith.constant 5 : index
    %c0_42 = arith.constant 0 : index
    %c0_43 = arith.constant 0 : index
    %60 = vector.load %arg4[%c5, %c0_42, %c0_43] : memref<9x128x128xbf16, #tpu.memory_space<vmem>>, vector<1x128x128xbf16>
    %61 = vector.shape_cast %60 : vector<1x128x128xbf16> to vector<128x128xbf16>
    %cst_44 = arith.constant dense<0.000000e+00> : vector<240x128xf32>
    %62 = tpu.matmul %59, %61, %cst_44 {dimension_numbers = #tpu.dot_dimension_numbers<[1], [0], [0], [1], [0, 0, 1, 1], [], []>} : vector<240x128xbf16>, vector<128x128xbf16>, vector<240x128xf32> -> vector<240x128xf32>
    %63 = arith.addf %56, %62 : vector<240x128xf32>
    %64 = vector.extract_strided_slice %49 {offsets = [2, 0, 0], sizes = [10, 24, 128], strides = [1, 1, 1]} : vector<12x24x128xf32> to vector<10x24x128xf32>
    %65 = vector.shape_cast %64 : vector<10x24x128xf32> to vector<240x128xf32>
    %66 = arith.truncf %65 : vector<240x128xf32> to vector<240x128xbf16>
    %c8_45 = arith.constant 8 : index
    %c0_46 = arith.constant 0 : index
    %c0_47 = arith.constant 0 : index
    %67 = vector.load %arg4[%c8_45, %c0_46, %c0_47] : memref<9x128x128xbf16, #tpu.memory_space<vmem>>, vector<1x128x128xbf16>
    %68 = vector.shape_cast %67 : vector<1x128x128xbf16> to vector<128x128xbf16>
    %cst_48 = arith.constant dense<0.000000e+00> : vector<240x128xf32>
    %69 = tpu.matmul %66, %68, %cst_48 {dimension_numbers = #tpu.dot_dimension_numbers<[1], [0], [0], [1], [0, 0, 1, 1], [], []>} : vector<240x128xbf16>, vector<128x128xbf16>, vector<240x128xf32> -> vector<240x128xf32>
    %70 = arith.addf %63, %69 : vector<240x128xf32>
    %c0_49 = arith.constant 0 : index
    %c0_50 = arith.constant 0 : index
    %71 = vector.load %arg5[%c0_49, %c0_50] : memref<1x128xf32, #tpu.memory_space<vmem>>, vector<1x128xf32>
    %72 = vector.broadcast %71 : vector<1x128xf32> to vector<240x128xf32>
    %73 = arith.addf %70, %72 : vector<240x128xf32>
    %cst_51 = arith.constant 0.000000e+00 : f32
    %74 = vector.broadcast %cst_51 : f32 to vector<240x128xf32>
    %75 = arith.maximumf %73, %74 : vector<240x128xf32>
    %76 = vector.shape_cast %75 : vector<240x128xf32> to vector<10x24x128xf32>
    %c8_i32 = arith.constant 8 : i32
    %77 = arith.muli %arg1, %c8_i32 : i32
    %c1_i32 = arith.constant 1 : i32
    %78 = arith.subi %77, %c1_i32 : i32
    %79 = tpu.iota {dimensions = array<i32: 0>} : vector<10x24x1xi32>
    %80 = vector.broadcast %78 : i32 to vector<10x24x1xi32>
    %81 = arith.addi %80, %79 : vector<10x24x1xi32>
    %82 = tpu.iota {dimensions = array<i32: 1>} : vector<10x24x1xi32>
    %c1_i32_52 = arith.constant 1 : i32
    %83 = vector.broadcast %c1_i32_52 : i32 to vector<10x24x1xi32>
    %84 = arith.subi %82, %83 : vector<10x24x1xi32>
    %c0_i32 = arith.constant 0 : i32
    %85 = vector.broadcast %c0_i32 : i32 to vector<10x24x1xi32>
    %86 = arith.cmpi sge, %81, %85 : vector<10x24x1xi32>
    %c16_i32 = arith.constant 16 : i32
    %87 = vector.broadcast %c16_i32 : i32 to vector<10x24x1xi32>
    %88 = arith.cmpi slt, %81, %87 : vector<10x24x1xi32>
    %89 = arith.andi %86, %88 : vector<10x24x1xi1>
    %c0_i32_53 = arith.constant 0 : i32
    %90 = vector.broadcast %c0_i32_53 : i32 to vector<10x24x1xi32>
    %91 = arith.cmpi sge, %84, %90 : vector<10x24x1xi32>
    %92 = arith.andi %89, %91 : vector<10x24x1xi1>
    %c16_i32_54 = arith.constant 16 : i32
    %93 = vector.broadcast %c16_i32_54 : i32 to vector<10x24x1xi32>
    %94 = arith.cmpi slt, %84, %93 : vector<10x24x1xi32>
    %95 = arith.andi %92, %94 : vector<10x24x1xi1>
    %cst_55 = arith.constant 0.000000e+00 : f32
    %96 = vector.shape_cast %95 : vector<10x24x1xi1> to vector<10x24x1xi1>
    %97 = vector.broadcast %96 : vector<10x24x1xi1> to vector<10x24x128xi1>
    %98 = vector.broadcast %cst_55 : f32 to vector<10x24x128xf32>
    %99 = arith.select %97, %76, %98 : vector<10x24x128xi1>, vector<10x24x128xf32>
    %c0_56 = arith.constant 0 : index
    %c0_57 = arith.constant 0 : index
    %c0_58 = arith.constant 0 : index
    %100 = vector.load %arg10[%c0_56, %c0_57, %c0_58] : memref<10x24x128xf32, #tpu.memory_space<vmem>>, vector<10x24x128xf32>
    tpu.vector_store %arg10[%c0_56, %c0_57, %c0_58], %99 {strides = array<i32>} : memref<10x24x128xf32, #tpu.memory_space<vmem>>, vector<10x24x128xf32>,
    %c0_59 = arith.constant 0 : index
    %c0_60 = arith.constant 0 : index
    %c0_61 = arith.constant 0 : index
    %101 = vector.load %arg10[%c0_59, %c0_60, %c0_61] : memref<10x24x128xf32, #tpu.memory_space<vmem>>, vector<10x16x128xf32>
    %102 = vector.extract_strided_slice %101 {offsets = [0, 0, 0], sizes = [8, 16, 128], strides = [1, 1, 1]} : vector<10x16x128xf32> to vector<8x16x128xf32>
    %103 = vector.shape_cast %102 : vector<8x16x128xf32> to vector<128x128xf32>
    %104 = arith.truncf %103 : vector<128x128xf32> to vector<128x128xbf16>
    %c0_62 = arith.constant 0 : index
    %c0_63 = arith.constant 0 : index
    %c0_64 = arith.constant 0 : index
    %105 = vector.load %arg6[%c0_62, %c0_63, %c0_64] : memref<9x128x128xbf16, #tpu.memory_space<vmem>>, vector<1x128x128xbf16>
    %106 = vector.shape_cast %105 : vector<1x128x128xbf16> to vector<128x128xbf16>
    %cst_65 = arith.constant dense<0.000000e+00> : vector<128x128xf32>
    %107 = tpu.matmul %104, %106, %cst_65 {dimension_numbers = #tpu.dot_dimension_numbers<[1], [0], [0], [1], [0, 0, 1, 1], [], []>} : vector<128x128xbf16>, vector<128x128xbf16>, vector<128x128xf32> -> vector<128x128xf32>
    %108 = vector.extract_strided_slice %101 {offsets = [1, 0, 0], sizes = [8, 16, 128], strides = [1, 1, 1]} : vector<10x16x128xf32> to vector<8x16x128xf32>
    %109 = vector.shape_cast %108 : vector<8x16x128xf32> to vector<128x128xf32>
    %110 = arith.truncf %109 : vector<128x128xf32> to vector<128x128xbf16>
    %c3_66 = arith.constant 3 : index
    %c0_67 = arith.constant 0 : index
    %c0_68 = arith.constant 0 : index
    %111 = vector.load %arg6[%c3_66, %c0_67, %c0_68] : memref<9x128x128xbf16, #tpu.memory_space<vmem>>, vector<1x128x128xbf16>
    %112 = vector.shape_cast %111 : vector<1x128x128xbf16> to vector<128x128xbf16>
    %cst_69 = arith.constant dense<0.000000e+00> : vector<128x128xf32>
    %113 = tpu.matmul %110, %112, %cst_69 {dimension_numbers = #tpu.dot_dimension_numbers<[1], [0], [0], [1], [0, 0, 1, 1], [], []>} : vector<128x128xbf16>, vector<128x128xbf16>, vector<128x128xf32> -> vector<128x128xf32>
    %114 = arith.addf %107, %113 : vector<128x128xf32>
    %115 = vector.extract_strided_slice %101 {offsets = [2, 0, 0], sizes = [8, 16, 128], strides = [1, 1, 1]} : vector<10x16x128xf32> to vector<8x16x128xf32>
    %116 = vector.shape_cast %115 : vector<8x16x128xf32> to vector<128x128xf32>
    %117 = arith.truncf %116 : vector<128x128xf32> to vector<128x128xbf16>
    %c6_70 = arith.constant 6 : index
    %c0_71 = arith.constant 0 : index
    %c0_72 = arith.constant 0 : index
    %118 = vector.load %arg6[%c6_70, %c0_71, %c0_72] : memref<9x128x128xbf16, #tpu.memory_space<vmem>>, vector<1x128x128xbf16>
    %119 = vector.shape_cast %118 : vector<1x128x128xbf16> to vector<128x128xbf16>
    %cst_73 = arith.constant dense<0.000000e+00> : vector<128x128xf32>
    %120 = tpu.matmul %117, %119, %cst_73 {dimension_numbers = #tpu.dot_dimension_numbers<[1], [0], [0], [1], [0, 0, 1, 1], [], []>} : vector<128x128xbf16>, vector<128x128xbf16>, vector<128x128xf32> -> vector<128x128xf32>
    %121 = arith.addf %114, %120 : vector<128x128xf32>
    %c0_74 = arith.constant 0 : index
    %c1_75 = arith.constant 1 : index
    %c0_76 = arith.constant 0 : index
    %122 = vector.load %arg10[%c0_74, %c1_75, %c0_76] : memref<10x24x128xf32, #tpu.memory_space<vmem>>, vector<10x16x128xf32>
    %123 = vector.extract_strided_slice %122 {offsets = [0, 0, 0], sizes = [8, 16, 128], strides = [1, 1, 1]} : vector<10x16x128xf32> to vector<8x16x128xf32>
    %124 = vector.shape_cast %123 : vector<8x16x128xf32> to vector<128x128xf32>
    %125 = arith.truncf %124 : vector<128x128xf32> to vector<128x128xbf16>
    %c1_77 = arith.constant 1 : index
    %c0_78 = arith.constant 0 : index
    %c0_79 = arith.constant 0 : index
    %126 = vector.load %arg6[%c1_77, %c0_78, %c0_79] : memref<9x128x128xbf16, #tpu.memory_space<vmem>>, vector<1x128x128xbf16>
    %127 = vector.shape_cast %126 : vector<1x128x128xbf16> to vector<128x128xbf16>
    %cst_80 = arith.constant dense<0.000000e+00> : vector<128x128xf32>
    %128 = tpu.matmul %125, %127, %cst_80 {dimension_numbers = #tpu.dot_dimension_numbers<[1], [0], [0], [1], [0, 0, 1, 1], [], []>} : vector<128x128xbf16>, vector<128x128xbf16>, vector<128x128xf32> -> vector<128x128xf32>
    %129 = arith.addf %121, %128 : vector<128x128xf32>
    %130 = vector.extract_strided_slice %122 {offsets = [1, 0, 0], sizes = [8, 16, 128], strides = [1, 1, 1]} : vector<10x16x128xf32> to vector<8x16x128xf32>
    %131 = vector.shape_cast %130 : vector<8x16x128xf32> to vector<128x128xf32>
    %132 = arith.truncf %131 : vector<128x128xf32> to vector<128x128xbf16>
    %c4_81 = arith.constant 4 : index
    %c0_82 = arith.constant 0 : index
    %c0_83 = arith.constant 0 : index
    %133 = vector.load %arg6[%c4_81, %c0_82, %c0_83] : memref<9x128x128xbf16, #tpu.memory_space<vmem>>, vector<1x128x128xbf16>
    %134 = vector.shape_cast %133 : vector<1x128x128xbf16> to vector<128x128xbf16>
    %cst_84 = arith.constant dense<0.000000e+00> : vector<128x128xf32>
    %135 = tpu.matmul %132, %134, %cst_84 {dimension_numbers = #tpu.dot_dimension_numbers<[1], [0], [0], [1], [0, 0, 1, 1], [], []>} : vector<128x128xbf16>, vector<128x128xbf16>, vector<128x128xf32> -> vector<128x128xf32>
    %136 = arith.addf %129, %135 : vector<128x128xf32>
    %137 = vector.extract_strided_slice %122 {offsets = [2, 0, 0], sizes = [8, 16, 128], strides = [1, 1, 1]} : vector<10x16x128xf32> to vector<8x16x128xf32>
    %138 = vector.shape_cast %137 : vector<8x16x128xf32> to vector<128x128xf32>
    %139 = arith.truncf %138 : vector<128x128xf32> to vector<128x128xbf16>
    %c7_85 = arith.constant 7 : index
    %c0_86 = arith.constant 0 : index
    %c0_87 = arith.constant 0 : index
    %140 = vector.load %arg6[%c7_85, %c0_86, %c0_87] : memref<9x128x128xbf16, #tpu.memory_space<vmem>>, vector<1x128x128xbf16>
    %141 = vector.shape_cast %140 : vector<1x128x128xbf16> to vector<128x128xbf16>
    %cst_88 = arith.constant dense<0.000000e+00> : vector<128x128xf32>
    %142 = tpu.matmul %139, %141, %cst_88 {dimension_numbers = #tpu.dot_dimension_numbers<[1], [0], [0], [1], [0, 0, 1, 1], [], []>} : vector<128x128xbf16>, vector<128x128xbf16>, vector<128x128xf32> -> vector<128x128xf32>
    %143 = arith.addf %136, %142 : vector<128x128xf32>
    %c0_89 = arith.constant 0 : index
    %c2_90 = arith.constant 2 : index
    %c0_91 = arith.constant 0 : index
    %144 = vector.load %arg10[%c0_89, %c2_90, %c0_91] : memref<10x24x128xf32, #tpu.memory_space<vmem>>, vector<10x16x128xf32>
    %145 = vector.extract_strided_slice %144 {offsets = [0, 0, 0], sizes = [8, 16, 128], strides = [1, 1, 1]} : vector<10x16x128xf32> to vector<8x16x128xf32>
    %146 = vector.shape_cast %145 : vector<8x16x128xf32> to vector<128x128xf32>
    %147 = arith.truncf %146 : vector<128x128xf32> to vector<128x128xbf16>
    %c2_92 = arith.constant 2 : index
    %c0_93 = arith.constant 0 : index
    %c0_94 = arith.constant 0 : index
    %148 = vector.load %arg6[%c2_92, %c0_93, %c0_94] : memref<9x128x128xbf16, #tpu.memory_space<vmem>>, vector<1x128x128xbf16>
    %149 = vector.shape_cast %148 : vector<1x128x128xbf16> to vector<128x128xbf16>
    %cst_95 = arith.constant dense<0.000000e+00> : vector<128x128xf32>
    %150 = tpu.matmul %147, %149, %cst_95 {dimension_numbers = #tpu.dot_dimension_numbers<[1], [0], [0], [1], [0, 0, 1, 1], [], []>} : vector<128x128xbf16>, vector<128x128xbf16>, vector<128x128xf32> -> vector<128x128xf32>
    %151 = arith.addf %143, %150 : vector<128x128xf32>
    %152 = vector.extract_strided_slice %144 {offsets = [1, 0, 0], sizes = [8, 16, 128], strides = [1, 1, 1]} : vector<10x16x128xf32> to vector<8x16x128xf32>
    %153 = vector.shape_cast %152 : vector<8x16x128xf32> to vector<128x128xf32>
    %154 = arith.truncf %153 : vector<128x128xf32> to vector<128x128xbf16>
    %c5_96 = arith.constant 5 : index
    %c0_97 = arith.constant 0 : index
    %c0_98 = arith.constant 0 : index
    %155 = vector.load %arg6[%c5_96, %c0_97, %c0_98] : memref<9x128x128xbf16, #tpu.memory_space<vmem>>, vector<1x128x128xbf16>
    %156 = vector.shape_cast %155 : vector<1x128x128xbf16> to vector<128x128xbf16>
    %cst_99 = arith.constant dense<0.000000e+00> : vector<128x128xf32>
    %157 = tpu.matmul %154, %156, %cst_99 {dimension_numbers = #tpu.dot_dimension_numbers<[1], [0], [0], [1], [0, 0, 1, 1], [], []>} : vector<128x128xbf16>, vector<128x128xbf16>, vector<128x128xf32> -> vector<128x128xf32>
    %158 = arith.addf %151, %157 : vector<128x128xf32>
    %159 = vector.extract_strided_slice %144 {offsets = [2, 0, 0], sizes = [8, 16, 128], strides = [1, 1, 1]} : vector<10x16x128xf32> to vector<8x16x128xf32>
    %160 = vector.shape_cast %159 : vector<8x16x128xf32> to vector<128x128xf32>
    %161 = arith.truncf %160 : vector<128x128xf32> to vector<128x128xbf16>
    %c8_100 = arith.constant 8 : index
    %c0_101 = arith.constant 0 : index
    %c0_102 = arith.constant 0 : index
    %162 = vector.load %arg6[%c8_100, %c0_101, %c0_102] : memref<9x128x128xbf16, #tpu.memory_space<vmem>>, vector<1x128x128xbf16>
    %163 = vector.shape_cast %162 : vector<1x128x128xbf16> to vector<128x128xbf16>
    %cst_103 = arith.constant dense<0.000000e+00> : vector<128x128xf32>
    %164 = tpu.matmul %161, %163, %cst_103 {dimension_numbers = #tpu.dot_dimension_numbers<[1], [0], [0], [1], [0, 0, 1, 1], [], []>} : vector<128x128xbf16>, vector<128x128xbf16>, vector<128x128xf32> -> vector<128x128xf32>
    %165 = arith.addf %158, %164 : vector<128x128xf32>
    %c0_104 = arith.constant 0 : index
    %c0_105 = arith.constant 0 : index
    %166 = vector.load %arg7[%c0_104, %c0_105] : memref<1x128xf32, #tpu.memory_space<vmem>>, vector<1x128xf32>
    %167 = vector.broadcast %166 : vector<1x128xf32> to vector<128x128xf32>
    %168 = arith.addf %165, %167 : vector<128x128xf32>
    %169 = vector.shape_cast %168 : vector<128x128xf32> to vector<8x16x128xf32>
    %c2_106 = arith.constant 2 : index
    %c2_107 = arith.constant 2 : index
    %c0_108 = arith.constant 0 : index
    %170 = vector.load %arg9[%c2_106, %c2_107, %c0_108] : memref<12x26x128xf32, #tpu.memory_space<vmem>>, vector<8x16x128xf32>
    %171 = arith.addf %169, %170 : vector<8x16x128xf32>
    %cst_109 = arith.constant 0.000000e+00 : f32
    %172 = vector.broadcast %cst_109 : f32 to vector<8x16x128xf32>
    %173 = arith.maximumf %171, %172 : vector<8x16x128xf32>
    %c0_110 = arith.constant 0 : index
    %c0_111 = arith.constant 0 : index
    %c0_112 = arith.constant 0 : index
    %c0_113 = arith.constant 0 : index
    %174 = vector.load %arg8[%c0_110, %c0_111, %c0_112, %c0_113] : memref<1x8x16x128xf32, #tpu.memory_space<vmem>>, vector<1x8x16x128xf32>
    %175 = vector.shape_cast %174 : vector<1x8x16x128xf32> to vector<8x16x128xf32>
    %176 = vector.shape_cast %173 : vector<8x16x128xf32> to vector<1x8x16x128xf32>
    tpu.vector_store %arg8[%c0_110, %c0_111, %c0_112, %c0_113], %176 {strides = array<i32>} : memref<1x8x16x128xf32, #tpu.memory_space<vmem>>, vector<1x8x16x128xf32>,
    return
  }
  func.func @transform_0(%arg0: i32, %arg1: i32) -> (i32, i32, i32, i32) {
    %c0_i32 = arith.constant 0 : i32
    %c0_i32_0 = arith.constant 0 : i32
    %c0_i32_1 = arith.constant 0 : i32
    return %arg0, %arg1, %c0_i32, %c0_i32_0 : i32, i32, i32, i32
  }
  func.func @transform_1(%arg0: i32, %arg1: i32) -> (i32, i32, i32, i32) {
    %c1_i32 = arith.constant 1 : i32
    %0 = arith.addi %arg1, %c1_i32 : i32
    %c2_i32 = arith.constant 2 : i32
    %1 = arith.muli %0, %c2_i32 : i32
    %c0_i32 = arith.constant 0 : i32
    %c0_i32_0 = arith.constant 0 : i32
    %c0_i32_1 = arith.constant 0 : i32
    return %arg0, %1, %c0_i32, %c0_i32_0 : i32, i32, i32, i32
  }
  func.func @transform_2(%arg0: i32, %arg1: i32) -> (i32, i32, i32) {
    %c0_i32 = arith.constant 0 : i32
    %c0_i32_0 = arith.constant 0 : i32
    %c0_i32_1 = arith.constant 0 : i32
    %c0_i32_2 = arith.constant 0 : i32
    return %c0_i32, %c0_i32_0, %c0_i32_1 : i32, i32, i32
  }
  func.func @transform_3(%arg0: i32, %arg1: i32) -> (i32, i32) {
    %c0_i32 = arith.constant 0 : i32
    %c0_i32_0 = arith.constant 0 : i32
    %c0_i32_1 = arith.constant 0 : i32
    return %c0_i32, %c0_i32_0 : i32, i32
  }
  func.func @transform_4(%arg0: i32, %arg1: i32) -> (i32, i32, i32) {
    %c0_i32 = arith.constant 0 : i32
    %c0_i32_0 = arith.constant 0 : i32
    %c0_i32_1 = arith.constant 0 : i32
    %c0_i32_2 = arith.constant 0 : i32
    return %c0_i32, %c0_i32_0, %c0_i32_1 : i32, i32, i32
  }
  func.func @transform_5(%arg0: i32, %arg1: i32) -> (i32, i32) {
    %c0_i32 = arith.constant 0 : i32
    %c0_i32_0 = arith.constant 0 : i32
    %c0_i32_1 = arith.constant 0 : i32
    return %c0_i32, %c0_i32_0 : i32, i32
  }
  func.func @transform_6(%arg0: i32, %arg1: i32) -> (i32, i32, i32, i32) {
    %c0_i32 = arith.constant 0 : i32
    %c0_i32_0 = arith.constant 0 : i32
    %c0_i32_1 = arith.constant 0 : i32
    return %arg0, %arg1, %c0_i32, %c0_i32_0 : i32, i32, i32, i32
  }
}

</mosaic_0001>

<llo_original>
// kernel: basic_block_forward.1
$region0: #{basic_block_forward.1}
  #allocation0 [shape = 'u32[]', space=smem, size = 0x4, offset = 0x4, fixed_abs, tag = 'smem constant byte address 0x4 - core index']
  #allocation1 [shape = 'u32[144,128]{1,0:T(1,128)}', space=vmem, size = 0x12000, scoped, tag = 'internal scratch']
  #allocation2 [shape = 'f32[12,26,128]{2,1,0:T(8,128)}', space=vmem, size = 0x30000, scoped, tag = 'scratch operand']
  #allocation3 [shape = 'f32[10,24,128]{2,1,0:T(8,128)}', space=vmem, size = 0x1e000, scoped, tag = 'scratch operand']
  %s0 = inlined_call_operand.vmem [shape: f32[2,20,26,128], index: 0, kind: input, shape index: {}, may-alias: {0,1}]
  %s1 = inlined_call_operand.vmem [shape: f32[2,20,26,128], index: 1, kind: input, shape index: {}, may-alias: {0,1}]
  %s2 = inlined_call_operand.vmem [shape: bf16[9,128,128], index: 2, kind: input, shape index: {}]
  %s3 = inlined_call_operand.vmem [shape: f32[1,128], index: 3, kind: input, shape index: {}]
  %s4 = inlined_call_operand.vmem [shape: bf16[9,128,128], index: 4, kind: input, shape index: {}]
  %s5 = inlined_call_operand.vmem [shape: f32[1,128], index: 5, kind: input, shape index: {}]
  %s6 = inlined_call_operand.vmem [shape: f32[2,16,16,128], index: 6, kind: output, shape index: {}]
  %s7 = sld [smem:[#allocation0]]
  $region57: #{basic_block_forward.1} parent=0
    _
  %s9 = ssub.s32 1, %s7
  %s10 = scalar_select 0, %s9, %s7
  loop: start=0, step=1, limit=6
  $region2: #{basic_block_forward.1} parent=0 // loop_pre_header
    _
  $region3: #{basic_block_forward.1} parent=0 // loop_header
    %s12 = sphi 0, %s16
    %p13 = scmp.ge.s32.totalorder %s12, 6
    %s19 = sphi 0, %s31
    %s20 = sphi 0, %s27
    %s21 = sphi 0, %s19
    %s22 = sphi 0, %s20
    %s23 = sphi 0, %s21
    %s24 = sphi 0, %s22
    %s36 = sphi 0, %s38
    %s39 = sphi 0, %s36
    %s40 = sphi 0, %s39
    %s56 = sphi 0, %s40
    %s68 = sphi 0, %s70
    %s71 = sphi 0, %s68
    %s72 = sphi 0, %s71
    %s88 = sphi 0, %s72
    %s92 = sphi 0, %s92
    %s94 = sphi 0, %s92
    %s95 = sphi 0, %s94
    %s109 = sphi 0, %s95
    %s113 = sphi 0, %s113
    %s115 = sphi 0, %s113
    %s116 = sphi 0, %s115
    %s130 = sphi 0, %s116
    %s134 = sphi 0, %s134
    %s136 = sphi 0, %s134
    %s137 = sphi 0, %s136
    %s151 = sphi 0, %s137
    %s155 = sphi 0, %s155
    %s157 = sphi 0, %s155
    %s158 = sphi 0, %s157
    %s172 = sphi 0, %s158
    %s180 = sphi 0, %s182
    %s183 = sphi 0, %s180
    %s184 = sphi 0, %s183
    %s200 = sphi 0, %s184
  $region4: #{basic_block_forward.1} parent=0 // loop_header_branch
    %15 = sbr.rel (%p13) target = $region8
  $region5: #{basic_block_forward.1} parent=0 // loop_body
    %s17 = ssub.s32 %s12, 1
    %s18 = ssub.s32 %s12, 2
    %s25 = sadd.s32 1, %s20
    %p26 = scmp.ge.s32.totalorder %s25, 2
    %s27 = scalar_select %p26, 0, %s25
    %s28 = sadd.s32 1, %s19
    %s29 = scalar_select %p26, %s28, %s19
    %p30 = scmp.ge.s32.totalorder %s29, 2
    %s31 = scalar_select %p30, 0, %s29
    %s32 = ssub.s32 %s19, %s31
    %s33 = ssub.s32 %s20, %s27
    %s34 = sor.u32 %s32, %s33
    %p35 = scmp.eq.s32.totalorder %s34, 0
    %s37 = sadd.s32 %s36, 1
    %s38 = scalar_select %p35, %s36, %s37
    %p41 = pneg %p35
    %p42 = scmp.eq.s32.totalorder %s12, 3
    %p43 = por %p41, %p42
    %p44 = scmp.ne.s32.totalorder %s36, %s39
    %p45 = scmp.eq.s32.totalorder %s12, 0
    %p46 = por %p44, %p45
    %p47 = scmp.ne.s32.totalorder %s36, %s39
    %p48 = scmp.eq.s32.totalorder %s17, 3
    %p49 = por %p47, %p48
    %p50 = scmp.ne.s32.totalorder %s39, %s40
    %p51 = scmp.eq.s32.totalorder %s17, 0
    %p52 = por %p50, %p51
    %p53 = scmp.ne.s32.totalorder %s39, %s40
    %p54 = scmp.eq.s32.totalorder %s18, 3
    %p55 = por %p53, %p54
    %p57 = scmp.ne.s32.totalorder %s40, %s56
    %p58 = scmp.eq.s32.totalorder %s18, 0
    %p59 = por %p57, %p58
    %s60 = sadd.s32 %s20, 1
    %s61 = smul.u32 %s60, 2
    %s62 = sadd.s32 %s27, 1
    %s63 = smul.u32 %s62, 2
    %s64 = ssub.s32 %s19, %s31
    %s65 = ssub.s32 %s61, %s63
    %s66 = sor.u32 %s64, %s65
    %p67 = scmp.eq.s32.totalorder %s66, 0
    %s69 = sadd.s32 %s68, 1
    %s70 = scalar_select %p67, %s68, %s69
    %p73 = pneg %p67
    %p74 = scmp.eq.s32.totalorder %s12, 3
    %p75 = por %p73, %p74
    %p76 = scmp.ne.s32.totalorder %s68, %s71
    %p77 = scmp.eq.s32.totalorder %s12, 0
    %p78 = por %p76, %p77
    %p79 = scmp.ne.s32.totalorder %s68, %s71
    %p80 = scmp.eq.s32.totalorder %s17, 3
    %p81 = por %p79, %p80
    %p82 = scmp.ne.s32.totalorder %s71, %s72
    %p83 = scmp.eq.s32.totalorder %s17, 0
    %p84 = por %p82, %p83
    %p85 = scmp.ne.s32.totalorder %s71, %s72
    %p86 = scmp.eq.s32.totalorder %s18, 3
    %p87 = por %p85, %p86
    %p89 = scmp.ne.s32.totalorder %s72, %s88
    %p90 = scmp.eq.s32.totalorder %s18, 0
    %p91 = por %p89, %p90
    %s93 = sadd.s32 %s92, 1
    %p96 = scmp.eq.s32.totalorder %s12, 3
    %p97 = scmp.ne.s32.totalorder %s92, %s94
    %p98 = scmp.eq.s32.totalorder %s12, 0
    %p99 = por %p97, %p98
    %p100 = scmp.ne.s32.totalorder %s92, %s94
    %p101 = scmp.eq.s32.totalorder %s17, 3
    %p102 = por %p100, %p101
    %p103 = scmp.ne.s32.totalorder %s94, %s95
    %p104 = scmp.eq.s32.totalorder %s17, 0
    %p105 = por %p103, %p104
    %p106 = scmp.ne.s32.totalorder %s94, %s95
    %p107 = scmp.eq.s32.totalorder %s18, 3
    %p108 = por %p106, %p107
    %p110 = scmp.ne.s32.totalorder %s95, %s109
    %p111 = scmp.eq.s32.totalorder %s18, 0
    %p112 = por %p110, %p111
    %s114 = sadd.s32 %s113, 1
    %p117 = scmp.eq.s32.totalorder %s12, 3
    %p118 = scmp.ne.s32.totalorder %s113, %s115
    %p119 = scmp.eq.s32.totalorder %s12, 0
    %p120 = por %p118, %p119
    %p121 = scmp.ne.s32.totalorder %s113, %s115
    %p122 = scmp.eq.s32.totalorder %s17, 3
    %p123 = por %p121, %p122
    %p124 = scmp.ne.s32.totalorder %s115, %s116
    %p125 = scmp.eq.s32.totalorder %s17, 0
    %p126 = por %p124, %p125
    %p127 = scmp.ne.s32.totalorder %s115, %s116
    %p128 = scmp.eq.s32.totalorder %s18, 3
    %p129 = por %p127, %p128
    %p131 = scmp.ne.s32.totalorder %s116, %s130
    %p132 = scmp.eq.s32.totalorder %s18, 0
    %p133 = por %p131, %p132
    %s135 = sadd.s32 %s134, 1
    %p138 = scmp.eq.s32.totalorder %s12, 3
    %p139 = scmp.ne.s32.totalorder %s134, %s136
    %p140 = scmp.eq.s32.totalorder %s12, 0
    %p141 = por %p139, %p140
    %p142 = scmp.ne.s32.totalorder %s134, %s136
    %p143 = scmp.eq.s32.totalorder %s17, 3
    %p144 = por %p142, %p143
    %p145 = scmp.ne.s32.totalorder %s136, %s137
    %p146 = scmp.eq.s32.totalorder %s17, 0
    %p147 = por %p145, %p146
    %p148 = scmp.ne.s32.totalorder %s136, %s137
    %p149 = scmp.eq.s32.totalorder %s18, 3
    %p150 = por %p148, %p149
    %p152 = scmp.ne.s32.totalorder %s137, %s151
    %p153 = scmp.eq.s32.totalorder %s18, 0
    %p154 = por %p152, %p153
    %s156 = sadd.s32 %s155, 1
    %p159 = scmp.eq.s32.totalorder %s12, 3
    %p160 = scmp.ne.s32.totalorder %s155, %s157
    %p161 = scmp.eq.s32.totalorder %s12, 0
    %p162 = por %p160, %p161
    %p163 = scmp.ne.s32.totalorder %s155, %s157
    %p164 = scmp.eq.s32.totalorder %s17, 3
    %p165 = por %p163, %p164
    %p166 = scmp.ne.s32.totalorder %s157, %s158
    %p167 = scmp.eq.s32.totalorder %s17, 0
    %p168 = por %p166, %p167
    %p169 = scmp.ne.s32.totalorder %s157, %s158
    %p170 = scmp.eq.s32.totalorder %s18, 3
    %p171 = por %p169, %p170
    %p173 = scmp.ne.s32.totalorder %s158, %s172
    %p174 = scmp.eq.s32.totalorder %s18, 0
    %p175 = por %p173, %p174
    %s176 = ssub.s32 %s19, %s31
    %s177 = ssub.s32 %s20, %s27
    %s178 = sor.u32 %s176, %s177
    %p179 = scmp.eq.s32.totalorder %s178, 0
    %s181 = sadd.s32 %s180, 1
    %s182 = scalar_select %p179, %s180, %s181
    %p185 = pneg %p179
    %p186 = scmp.eq.s32.totalorder %s12, 3
    %p187 = por %p185, %p186
    %p188 = scmp.ne.s32.totalorder %s180, %s183
    %p189 = scmp.eq.s32.totalorder %s12, 0
    %p190 = por %p188, %p189
    %p191 = scmp.ne.s32.totalorder %s180, %s183
    %p192 = scmp.eq.s32.totalorder %s17, 3
    %p193 = por %p191, %p192
    %p194 = scmp.ne.s32.totalorder %s183, %s184
    %p195 = scmp.eq.s32.totalorder %s17, 0
    %p196 = por %p194, %p195
    %p197 = scmp.ne.s32.totalorder %s183, %s184
    %p198 = scmp.eq.s32.totalorder %s18, 3
    %p199 = por %p197, %p198
    %p201 = scmp.ne.s32.totalorder %s184, %s200
    %p202 = scmp.eq.s32.totalorder %s18, 0
    %p203 = por %p201, %p202
    %p204 = scmp.le.s32.totalorder 1, %s12
    %p205 = scmp.lt.s32.totalorder %s12, 5
    %p206 = pnand %p204, %p205
    %p207 = pneg %p206
    // Predicated region
    $region9: #{basic_block_forward.1} parent=5 // pred_check
      _
    $region10: #{basic_block_forward.1} parent=5 // pred_check_branch
      %209 = sbr.rel (%p206) target = $region12
    $region11: #{basic_block_forward.1} parent=5 // pred_region
      %s210 = ssub.s32 %s12, 1
      // Predicated region
      $region13: #{basic_block_forward.1} parent=11 // pred_check
        %p211 = pneg %p105
      $region14: #{basic_block_forward.1} parent=11 // pred_check_branch
        %213 = sbr.rel (%p211) target = $region16
      $region15: #{basic_block_forward.1} parent=11 // pred_region
        _
      $region16: #{basic_block_forward.1} parent=11 // pred_fallthru
        _
      // Predicated region
      $region17: #{basic_block_forward.1} parent=11 // pred_check
        %p214 = pneg %p126
      $region18: #{basic_block_forward.1} parent=11 // pred_check_branch
        %216 = sbr.rel (%p214) target = $region20
      $region19: #{basic_block_forward.1} parent=11 // pred_region
        _
      $region20: #{basic_block_forward.1} parent=11 // pred_fallthru
        _
      // Predicated region
      $region21: #{basic_block_forward.1} parent=11 // pred_check
        %p217 = pneg %p147
      $region22: #{basic_block_forward.1} parent=11 // pred_check_branch
        %219 = sbr.rel (%p217) target = $region24
      $region23: #{basic_block_forward.1} parent=11 // pred_region
        _
      $region24: #{basic_block_forward.1} parent=11 // pred_fallthru
        _
      // Predicated region
      $region25: #{basic_block_forward.1} parent=11 // pred_check
        %p220 = pneg %p168
      $region26: #{basic_block_forward.1} parent=11 // pred_check_branch
        %222 = sbr.rel (%p220) target = $region28
      $region27: #{basic_block_forward.1} parent=11 // pred_region
        _
      $region28: #{basic_block_forward.1} parent=11 // pred_fallthru
        _
    $region12: #{basic_block_forward.1} parent=5 // pred_fallthru
      _
    %p223 = scmp.lt.s32.totalorder %s12, 4
    // Predicated region
    $region29: #{basic_block_forward.1} parent=5 // pred_check
      %p224 = pneg %p223
    $region30: #{basic_block_forward.1} parent=5 // pred_check_branch
      %226 = sbr.rel (%p224) target = $region32
    $region31: #{basic_block_forward.1} parent=5 // pred_region
      // Predicated region
      $region33: #{basic_block_forward.1} parent=31 // pred_check
        %p227 = pneg %p46
      $region34: #{basic_block_forward.1} parent=31 // pred_check_branch
        %229 = sbr.rel (%p227) target = $region36
      $region35: #{basic_block_forward.1} parent=31 // pred_region
        %s230 = smul.u32 8, %s20
        %s231 = ssub.s32 20, %s230
        %p232 = scmp.lt.s32.totalorder %s231, 8
        %s233 = scalar_select %p232, %s231, 8
        %s234 = smul.u32 128, %s233
        %s235 = smul.u32 %s234, 4
        %p236 = scmp.lt.s32.totalorder %s19, 1
        %s237 = scalar_select %p236, %s19, 1
        %p238 = scmp.lt.s32.totalorder %s230, 19
        %s239 = scalar_select %p238, %s230, 19
        %s240 = smul.addr %s239, 4
        %s241 = smul.addr %s237, 80
        %s242 = sadd.s32 %s240, %s241
        %s243 = smul.addr %s242, 8
        %s244 = scalar_lea.vmem %s0, %s243
        %s245 = smul.u32 8, %s20
        %s246 = ssub.s32 20, %s245
        %p247 = scmp.lt.s32.totalorder %s246, 8
        %s248 = scalar_select %p247, %s246, 8
        %s249 = smul.u32 128, %s248
        %s250 = smul.u32 %s249, 4
      $region36: #{basic_block_forward.1} parent=31 // pred_fallthru
        _
      // Predicated region
      $region37: #{basic_block_forward.1} parent=31 // pred_check
        %p251 = pneg %p78
      $region38: #{basic_block_forward.1} parent=31 // pred_check_branch
        %253 = sbr.rel (%p251) target = $region40
      $region39: #{basic_block_forward.1} parent=31 // pred_region
        %s254 = sadd.s32 %s20, 1
        %s255 = smul.u32 %s254, 2
        %s256 = smul.u32 4, %s255
        %p257 = scmp.lt.s32.totalorder %s19, 1
        %s258 = scalar_select %p257, %s19, 1
        %p259 = scmp.lt.s32.totalorder %s256, 19
        %s260 = scalar_select %p259, %s256, 19
        %s261 = smul.addr %s260, 4
        %s262 = smul.addr %s258, 80
        %s263 = sadd.s32 %s261, %s262
        %s264 = smul.addr %s263, 8
        %s265 = scalar_lea.vmem %s1, %s264
        %s266 = sadd.s32 %s20, 1
        %s267 = smul.u32 %s266, 2
        %s268 = smul.u32 4, %s267
      $region40: #{basic_block_forward.1} parent=31 // pred_fallthru
        _
    $region32: #{basic_block_forward.1} parent=5 // pred_fallthru
      _
    %p269 = scmp.le.s32.totalorder 1, %s12
    %p270 = scmp.lt.s32.totalorder %s12, 5
    %p271 = pnand %p269, %p270
    %p272 = pneg %p271
    // Predicated region
    $region41: #{basic_block_forward.1} parent=5 // pred_check
      _
    $region42: #{basic_block_forward.1} parent=5 // pred_check_branch
      %274 = sbr.rel (%p271) target = $region44
    $region43: #{basic_block_forward.1} parent=5 // pred_region
      %s275 = ssub.s32 %s12, 1
      %s276 = smul.u32 8, %s22
      %s277 = ssub.s32 20, %s276
      %p278 = scmp.lt.s32.totalorder %s277, 8
      %s279 = scalar_select %p278, %s277, 8
      %s280 = smul.u32 128, %s279
      %s281 = smul.u32 %s280, 4
      %p282 = scmp.lt.s32.totalorder %s21, 1
      %s283 = scalar_select %p282, %s21, 1
      %p284 = scmp.lt.s32.totalorder %s276, 19
      %s285 = scalar_select %p284, %s276, 19
      %s286 = smul.addr %s285, 4
      %s287 = smul.addr %s283, 80
      %s288 = sadd.s32 %s286, %s287
      %s289 = smul.addr %s288, 8
      %s290 = scalar_lea.vmem %s0, %s289
      %p291 = pneg %p52
      %p292 = pneg %p49
      %s293 = sadd.s32 %s22, 1
      %s294 = smul.u32 %s293, 2
      %s295 = smul.u32 4, %s294
      %p296 = scmp.lt.s32.totalorder %s21, 1
      %s297 = scalar_select %p296, %s21, 1
      %p298 = scmp.lt.s32.totalorder %s295, 19
      %s299 = scalar_select %p298, %s295, 19
      %s300 = smul.addr %s299, 4
      %s301 = smul.addr %s297, 80
      %s302 = sadd.s32 %s300, %s301
      %s303 = smul.addr %s302, 8
      %s304 = scalar_lea.vmem %s1, %s303
      %p305 = pneg %p84
      %p306 = pneg %p81
      %p307 = pneg %p105
      %p308 = pneg %p102
      %p309 = pneg %p126
      %p310 = pneg %p123
      %p311 = pneg %p147
      %p312 = pneg %p144
      %p313 = pneg %p168
      %p314 = pneg %p165
      %p315 = pneg %p196
      %p316 = pneg %p193
      %s317 = smul.u32 8, %s22
      %p318 = scmp.lt.s32.totalorder %s21, 1
      %s319 = scalar_select %p318, %s21, 1
      %p320 = scmp.lt.s32.totalorder %s317, 15
      %s321 = scalar_select %p320, %s317, 15
      %s322 = smul.addr %s321, 2
      %s323 = smul.addr %s319, 32
      %s324 = sadd.s32 %s322, %s323
      %s325 = smul.addr %s324, 8
      %s326 = scalar_lea.vmem %s6, %s325
      %s327 = smul.u32 8, %s22
      %s328 = ssub.s32 20, %s327
      %p329 = scmp.lt.s32.totalorder %s328, 8
      %s330 = scalar_select %p329, %s328, 8
      %s331 = smul.u32 128, %s330
      %s332 = smul.u32 %s331, 4
      %p333 = scmp.lt.s32.totalorder %s21, 1
      %s334 = scalar_select %p333, %s21, 1
      %p335 = scmp.lt.s32.totalorder %s327, 19
      %s336 = scalar_select %p335, %s327, 19
      %s337 = smul.addr %s336, 4
      %s338 = smul.addr %s334, 80
      %s339 = sadd.s32 %s337, %s338
      %s340 = smul.addr %s339, 8
      %s341 = scalar_lea.vmem %s0, %s340
      %s342 = smul.u32 8, %s22
      %s343 = ssub.s32 20, %s342
      %p344 = scmp.lt.s32.totalorder %s343, 8
      %s345 = scalar_select %p344, %s343, 8
      %s346 = smul.u32 128, %s345
      %s347 = smul.u32 %s346, 4
      %s348 = sadd.s32 %s22, 1
      %s349 = smul.u32 %s348, 2
      %s350 = smul.u32 4, %s349
      %p351 = scmp.lt.s32.totalorder %s21, 1
      %s352 = scalar_select %p351, %s21, 1
      %p353 = scmp.lt.s32.totalorder %s350, 19
      %s354 = scalar_select %p353, %s350, 19
      %s355 = smul.addr %s354, 4
      %s356 = smul.addr %s352, 80
      %s357 = sadd.s32 %s355, %s356
      %s358 = smul.addr %s357, 8
      %s359 = scalar_lea.vmem %s1, %s358
      %s360 = sadd.s32 %s22, 1
      %s361 = smul.u32 %s360, 2
      %s362 = smul.u32 4, %s361
      %s363 = smul.u32 8, %s22
      %p364 = scmp.lt.s32.totalorder %s21, 1
      %s365 = scalar_select %p364, %s21, 1
      %p366 = scmp.lt.s32.totalorder %s363, 15
      %s367 = scalar_select %p366, %s363, 15
      %s368 = smul.addr %s367, 2
      %s369 = smul.addr %s365, 32
      %s370 = sadd.s32 %s368, %s369
      %s371 = smul.addr %s370, 8
      %s372 = scalar_lea.vmem %s6, %s371
      %s373 = smul.u32 8, %s22
      %v375 = vld [vmem:[%s341] sm:$0xff]
      %v376 = vld [vmem:[%s341 + $0x8] sm:$0xff]
      %v377 = vld [vmem:[%s341 + $0x10] sm:$0xff]
      %v378 = vld [vmem:[%s341 + $0x18] sm:$0x3]
      %v379 = vld [vmem:[%s341 + $0x20] sm:$0xff]
      %v380 = vld [vmem:[%s341 + $0x28] sm:$0xff]
      %v381 = vld [vmem:[%s341 + $0x30] sm:$0xff]
      %v382 = vld [vmem:[%s341 + $0x38] sm:$0x3]
      %v383 = vld [vmem:[%s341 + $0x40] sm:$0xff]
      %v384 = vld [vmem:[%s341 + $0x48] sm:$0xff]
      %v385 = vld [vmem:[%s341 + $0x50] sm:$0xff]
      %v386 = vld [vmem:[%s341 + $0x58] sm:$0x3]
      %v387 = vld [vmem:[%s341 + $0x60] sm:$0xff]
      %v388 = vld [vmem:[%s341 + $0x68] sm:$0xff]
      %v389 = vld [vmem:[%s341 + $0x70] sm:$0xff]
      %v390 = vld [vmem:[%s341 + $0x78] sm:$0x3]
      %v391 = vld [vmem:[%s341 + $0x80] sm:$0xff]
      %v392 = vld [vmem:[%s341 + $0x88] sm:$0xff]
      %v393 = vld [vmem:[%s341 + $0x90] sm:$0xff]
      %v394 = vld [vmem:[%s341 + $0x98] sm:$0x3]
      %v395 = vld [vmem:[%s341 + $0xa0] sm:$0xff]
      %v396 = vld [vmem:[%s341 + $0xa8] sm:$0xff]
      %v397 = vld [vmem:[%s341 + $0xb0] sm:$0xff]
      %v398 = vld [vmem:[%s341 + $0xb8] sm:$0x3]
      %v399 = vld [vmem:[%s341 + $0xc0] sm:$0xff]
      %v400 = vld [vmem:[%s341 + $0xc8] sm:$0xff]
      %v401 = vld [vmem:[%s341 + $0xd0] sm:$0xff]
      %v402 = vld [vmem:[%s341 + $0xd8] sm:$0x3]
      %v403 = vld [vmem:[%s341 + $0xe0] sm:$0xff]
      %v404 = vld [vmem:[%s341 + $0xe8] sm:$0xff]
      %v405 = vld [vmem:[%s341 + $0xf0] sm:$0xff]
      %v406 = vld [vmem:[%s341 + $0xf8] sm:$0x3]
      %407 = vst [vmem:[#allocation2] sm:$0xff] %v375
      %408 = vst [vmem:[#allocation2 + $0x8] sm:$0xff] %v376
      %409 = vst [vmem:[#allocation2 + $0x10] sm:$0xff] %v377
      %410 = vst [vmem:[#allocation2 + $0x18] sm:$0x3] %v378
      %411 = vst [vmem:[#allocation2 + $0x20] sm:$0xff] %v379
      %412 = vst [vmem:[#allocation2 + $0x28] sm:$0xff] %v380
      %413 = vst [vmem:[#allocation2 + $0x30] sm:$0xff] %v381
      %414 = vst [vmem:[#allocation2 + $0x38] sm:$0x3] %v382
      %415 = vst [vmem:[#allocation2 + $0x40] sm:$0xff] %v383
      %416 = vst [vmem:[#allocation2 + $0x48] sm:$0xff] %v384
      %417 = vst [vmem:[#allocation2 + $0x50] sm:$0xff] %v385
      %418 = vst [vmem:[#allocation2 + $0x58] sm:$0x3] %v386
      %419 = vst [vmem:[#allocation2 + $0x60] sm:$0xff] %v387
      %420 = vst [vmem:[#allocation2 + $0x68] sm:$0xff] %v388
      %421 = vst [vmem:[#allocation2 + $0x70] sm:$0xff] %v389
      %422 = vst [vmem:[#allocation2 + $0x78] sm:$0x3] %v390
      %423 = vst [vmem:[#allocation2 + $0x80] sm:$0xff] %v391
      %424 = vst [vmem:[#allocation2 + $0x88] sm:$0xff] %v392
      %425 = vst [vmem:[#allocation2 + $0x90] sm:$0xff] %v393
      %426 = vst [vmem:[#allocation2 + $0x98] sm:$0x3] %v394
      %427 = vst [vmem:[#allocation2 + $0xa0] sm:$0xff] %v395
      %428 = vst [vmem:[#allocation2 + $0xa8] sm:$0xff] %v396
      %429 = vst [vmem:[#allocation2 + $0xb0] sm:$0xff] %v397
      %430 = vst [vmem:[#allocation2 + $0xb8] sm:$0x3] %v398
      %431 = vst [vmem:[#allocation2 + $0xc0] sm:$0xff] %v399
      %432 = vst [vmem:[#allocation2 + $0xc8] sm:$0xff] %v400
      %433 = vst [vmem:[#allocation2 + $0xd0] sm:$0xff] %v401
      %434 = vst [vmem:[#allocation2 + $0xd8] sm:$0x3] %v402
      %435 = vst [vmem:[#allocation2 + $0xe0] sm:$0xff] %v403
      %436 = vst [vmem:[#allocation2 + $0xe8] sm:$0xff] %v404
      %437 = vst [vmem:[#allocation2 + $0xf0] sm:$0xff] %v405
      %438 = vst [vmem:[#allocation2 + $0xf8] sm:$0x3] %v406
      %v439 = vld [vmem:[%s359] sm:$0xff]
      %v440 = vld [vmem:[%s359 + $0x8] sm:$0xff]
      %v441 = vld [vmem:[%s359 + $0x10] sm:$0xff]
      %v442 = vld [vmem:[%s359 + $0x18] sm:$0x3]
      %v443 = vld [vmem:[%s359 + $0x20] sm:$0xff]
      %v444 = vld [vmem:[%s359 + $0x28] sm:$0xff]
      %v445 = vld [vmem:[%s359 + $0x30] sm:$0xff]
      %v446 = vld [vmem:[%s359 + $0x38] sm:$0x3]
      %v447 = vld [vmem:[%s359 + $0x40] sm:$0xff]
      %v448 = vld [vmem:[%s359 + $0x48] sm:$0xff]
      %v449 = vld [vmem:[%s359 + $0x50] sm:$0xff]
      %v450 = vld [vmem:[%s359 + $0x58] sm:$0x3]
      %v451 = vld [vmem:[%s359 + $0x60] sm:$0xff]
      %v452 = vld [vmem:[%s359 + $0x68] sm:$0xff]
      %v453 = vld [vmem:[%s359 + $0x70] sm:$0xff]
      %v454 = vld [vmem:[%s359 + $0x78] sm:$0x3]
      %s455 = scalar_lea.vmem [#allocation2], 256
      %456 = vst [vmem:[%s455] sm:$0xff] %v439
      %457 = vst [vmem:[%s455 + $0x8] sm:$0xff] %v440
      %458 = vst [vmem:[%s455 + $0x10] sm:$0xff] %v441
      %459 = vst [vmem:[%s455 + $0x18] sm:$0x3] %v442
      %460 = vst [vmem:[%s455 + $0x20] sm:$0xff] %v443
      %461 = vst [vmem:[%s455 + $0x28] sm:$0xff] %v444
      %462 = vst [vmem:[%s455 + $0x30] sm:$0xff] %v445
      %463 = vst [vmem:[%s455 + $0x38] sm:$0x3] %v446
      %464 = vst [vmem:[%s455 + $0x40] sm:$0xff] %v447
      %465 = vst [vmem:[%s455 + $0x48] sm:$0xff] %v448
      %466 = vst [vmem:[%s455 + $0x50] sm:$0xff] %v449
      %467 = vst [vmem:[%s455 + $0x58] sm:$0x3] %v450
      %468 = vst [vmem:[%s455 + $0x60] sm:$0xff] %v451
      %469 = vst [vmem:[%s455 + $0x68] sm:$0xff] %v452
      %470 = vst [vmem:[%s455 + $0x70] sm:$0xff] %v453
      %471 = vst [vmem:[%s455 + $0x78] sm:$0x3] %v454
      %v472 = vld [vmem:[#allocation2] sm:$0xff]
      %v473 = vld [vmem:[#allocation2 + $0x8] sm:$0xff]
      %v474 = vld [vmem:[#allocation2 + $0x10] sm:$0xff]
      %v475 = vld [vmem:[#allocation2 + $0x20] sm:$0xff]
      %v476 = vld [vmem:[#allocation2 + $0x28] sm:$0xff]
      %v477 = vld [vmem:[#allocation2 + $0x30] sm:$0xff]
      %v478 = vld [vmem:[#allocation2 + $0x40] sm:$0xff]
      %v479 = vld [vmem:[#allocation2 + $0x48] sm:$0xff]
      %v480 = vld [vmem:[#allocation2 + $0x50] sm:$0xff]
      %v481 = vld [vmem:[#allocation2 + $0x60] sm:$0xff]
      %v482 = vld [vmem:[#allocation2 + $0x68] sm:$0xff]
      %v483 = vld [vmem:[#allocation2 + $0x70] sm:$0xff]
      %v484 = vld [vmem:[#allocation2 + $0x80] sm:$0xff]
      %v485 = vld [vmem:[#allocation2 + $0x88] sm:$0xff]
      %v486 = vld [vmem:[#allocation2 + $0x90] sm:$0xff]
      %v487 = vld [vmem:[#allocation2 + $0xa0] sm:$0xff]
      %v488 = vld [vmem:[#allocation2 + $0xa8] sm:$0xff]
      %v489 = vld [vmem:[#allocation2 + $0xb0] sm:$0xff]
      %v490 = vld [vmem:[#allocation2 + $0xc0] sm:$0xff]
      %v491 = vld [vmem:[#allocation2 + $0xc8] sm:$0xff]
      %v492 = vld [vmem:[#allocation2 + $0xd0] sm:$0xff]
      %v493 = vld [vmem:[#allocation2 + $0xe0] sm:$0xff]
      %v494 = vld [vmem:[#allocation2 + $0xe8] sm:$0xff]
      %v495 = vld [vmem:[#allocation2 + $0xf0] sm:$0xff]
      %v496 = vld [vmem:[#allocation2 + $0x100] sm:$0xff]
      %v497 = vld [vmem:[#allocation2 + $0x108] sm:$0xff]
      %v498 = vld [vmem:[#allocation2 + $0x110] sm:$0xff]
      %v499 = vld [vmem:[#allocation2 + $0x120] sm:$0xff]
      %v500 = vld [vmem:[#allocation2 + $0x128] sm:$0xff]
      %v501 = vld [vmem:[#allocation2 + $0x130] sm:$0xff]
      %v502 = vld [vmem:[#allocation2 + $0x140] sm:$0xff]
      %v503 = vld [vmem:[#allocation2 + $0x148] sm:$0xff]
      %v504 = vld [vmem:[#allocation2 + $0x150] sm:$0xff]
      %v505 = vld [vmem:[#allocation2 + $0x160] sm:$0xff]
      %v506 = vld [vmem:[#allocation2 + $0x168] sm:$0xff]
      %v507 = vld [vmem:[#allocation2 + $0x170] sm:$0xff]
      %v508 = vpack.c.bf16 %v473, %v472
      %v509 = vpack.c.bf16 %v475, %v474
      %v510 = vpack.c.bf16 %v477, %v476
      %v511 = vpack.c.bf16 %v479, %v478
      %v512 = vpack.c.bf16 %v481, %v480
      %v513 = vpack.c.bf16 %v483, %v482
      %v514 = vpack.c.bf16 %v485, %v484
      %v515 = vpack.c.bf16 %v487, %v486
      %v516 = vpack.c.bf16 %v489, %v488
      %v517 = vpack.c.bf16 %v491, %v490
      %v518 = vpack.c.bf16 %v493, %v492
      %v519 = vpack.c.bf16 %v495, %v494
      %v520 = vpack.c.bf16 %v497, %v496
      %v521 = vpack.c.bf16 %v499, %v498
      %v522 = vpack.c.bf16 %v501, %v500
      %v523 = vld [vmem:[%s2] sm:$0xf]
      %v524 = vld [vmem:[%s2 + $0x4] sm:$0xf]
      %v525 = vld [vmem:[%s2 + $0x8] sm:$0xf]
      %v526 = vld [vmem:[%s2 + $0xc] sm:$0xf]
      %v527 = vld [vmem:[%s2 + $0x10] sm:$0xf]
      %v528 = vld [vmem:[%s2 + $0x14] sm:$0xf]
      %v529 = vld [vmem:[%s2 + $0x18] sm:$0xf]
      %v530 = vld [vmem:[%s2 + $0x1c] sm:$0xf]
      %v531 = vld [vmem:[%s2 + $0x20] sm:$0xf]
      %v532 = vld [vmem:[%s2 + $0x24] sm:$0xf]
      %v533 = vld [vmem:[%s2 + $0x28] sm:$0xf]
      %v534 = vld [vmem:[%s2 + $0x2c] sm:$0xf]
      %v535 = vld [vmem:[%s2 + $0x30] sm:$0xf]
      %v536 = vld [vmem:[%s2 + $0x34] sm:$0xf]
      %v537 = vld [vmem:[%s2 + $0x38] sm:$0xf]
      %v538 = vld [vmem:[%s2 + $0x3c] sm:$0xf]
      %v539 = vpack.c.bf16 %v476, %v475
      %v540 = vpack.c.bf16 %v478, %v477
      %v541 = vpack.c.bf16 %v480, %v479
      %v542 = vpack.c.bf16 %v482, %v481
      %v543 = vpack.c.bf16 %v484, %v483
      %v544 = vpack.c.bf16 %v486, %v485
      %v545 = vpack.c.bf16 %v488, %v487
      %v546 = vpack.c.bf16 %v490, %v489
      %v547 = vpack.c.bf16 %v492, %v491
      %v548 = vpack.c.bf16 %v494, %v493
      %v549 = vpack.c.bf16 %v496, %v495
      %v550 = vpack.c.bf16 %v498, %v497
      %v551 = vpack.c.bf16 %v500, %v499
      %v552 = vpack.c.bf16 %v502, %v501
      %v553 = vpack.c.bf16 %v504, %v503
      %s554 = scalar_lea.vmem %s2, 192
      %v555 = vld [vmem:[%s554] sm:$0xf]
      %v556 = vld [vmem:[%s554 + $0x4] sm:$0xf]
      %v557 = vld [vmem:[%s554 + $0x8] sm:$0xf]
      %v558 = vld [vmem:[%s554 + $0xc] sm:$0xf]
      %v559 = vld [vmem:[%s554 + $0x10] sm:$0xf]
      %v560 = vld [vmem:[%s554 + $0x14] sm:$0xf]
      %v561 = vld [vmem:[%s554 + $0x18] sm:$0xf]
      %v562 = vld [vmem:[%s554 + $0x1c] sm:$0xf]
      %v563 = vld [vmem:[%s554 + $0x20] sm:$0xf]
      %v564 = vld [vmem:[%s554 + $0x24] sm:$0xf]
      %v565 = vld [vmem:[%s554 + $0x28] sm:$0xf]
      %v566 = vld [vmem:[%s554 + $0x2c] sm:$0xf]
      %v567 = vld [vmem:[%s554 + $0x30] sm:$0xf]
      %v568 = vld [vmem:[%s554 + $0x34] sm:$0xf]
      %v569 = vld [vmem:[%s554 + $0x38] sm:$0xf]
      %v570 = vld [vmem:[%s554 + $0x3c] sm:$0xf]
      %v587 = vunpack.c.l.b16 %v555
      %v588 = vunpack.c.l.b16 %v556
      %v589 = vunpack.c.l.b16 %v557
      %v590 = vunpack.c.l.b16 %v558
      %v591 = vunpack.c.l.b16 %v559
      %v592 = vunpack.c.l.b16 %v560
      %v593 = vunpack.c.l.b16 %v561
      %v594 = vunpack.c.l.b16 %v562
      %v595 = vunpack.c.l.b16 %v563
      %v596 = vunpack.c.l.b16 %v564
      %v597 = vunpack.c.l.b16 %v565
      %v598 = vunpack.c.l.b16 %v566
      %v599 = vunpack.c.l.b16 %v567
      %v600 = vunpack.c.l.b16 %v568
      %v601 = vunpack.c.l.b16 %v569
      %v602 = vunpack.c.l.b16 %v570
      %v603 = vpack.c.b16 %v588, %v587
      %v604 = vpack.c.b16 %v590, %v589
      %v605 = vpack.c.b16 %v592, %v591
      %v606 = vpack.c.b16 %v594, %v593
      %v607 = vpack.c.b16 %v596, %v595
      %v608 = vpack.c.b16 %v598, %v597
      %v609 = vpack.c.b16 %v600, %v599
      %v610 = vpack.c.b16 %v602, %v601
      %619 = vmatprep.subr.bf16.mxu0 0
      %620 = vmatpush1.bf16.msra.mxu0 %v603
      %621 = vmatprep.subr.bf16.mxu0 0
      %622 = vmatpush1.bf16.msra.mxu0 %v604
      %623 = vmatprep.subr.bf16.mxu0 0
      %624 = vmatpush1.bf16.msra.mxu0 %v605
      %625 = vmatprep.subr.bf16.mxu0 0
      %626 = vmatpush1.bf16.msra.mxu0 %v606
      %627 = vmatprep.subr.bf16.mxu0 0
      %628 = vmatpush1.bf16.msra.mxu0 %v607
      %629 = vmatprep.subr.bf16.mxu0 0
      %630 = vmatpush1.bf16.msra.mxu0 %v608
      %631 = vmatprep.subr.bf16.mxu0 0
      %632 = vmatpush1.bf16.msra.mxu0 %v609
      %633 = vmatprep.subr.bf16.mxu0 0
      %634 = vmatpush1.bf16.msra.mxu0 %v610
      %635 = vmatprep.subr.bf16.mxu0 0
      %636 = vmatpush1.bf16.msra.mxu0 0
      %637 = vmatprep.subr.bf16.mxu0 0
      %638 = vmatpush1.bf16.msra.mxu0 0
      %639 = vmatprep.subr.bf16.mxu0 0
      %640 = vmatpush1.bf16.msra.mxu0 0
      %641 = vmatprep.subr.bf16.mxu0 0
      %642 = vmatpush1.bf16.msra.mxu0 0
      %643 = vmatprep.subr.bf16.mxu0 0
      %644 = vmatpush1.bf16.msra.mxu0 0
      %645 = vmatprep.subr.bf16.mxu0 0
      %646 = vmatpush1.bf16.msra.mxu0 0
      %647 = vmatprep.subr.bf16.mxu0 0
      %648 = vmatpush1.bf16.msra.mxu0 0
      %649 = vmatprep.subr.bf16.mxu0 0
      %650 = vmatpush1.bf16.msra.mxu0 0
      %651 = vmatprep.mubr.bf16.mxu0 0
      %652 = vmatmul.mubr.bf16.gmra.mrb[0].mxu0 %v539
      %v653 = vpop.f32.mrb[0].mxu0
      %v654 = vadd.f32 0.0, %v653
      %v655 = vpop.f32.mrb[0].mxu0
      %v656 = vpop.f32.mrb[0].mxu0
      %v657 = vadd.f32 0.0, %v656
      %v658 = vpop.f32.mrb[0].mxu0
      %659 = vmatprep.mubr.bf16.mxu0 0
      %660 = vmatmul.mubr.bf16.gmra.mrb[0].mxu0 %v540
      %v661 = vpop.f32.mrb[0].mxu0
      %v662 = vadd.f32 0.0, %v661
      %v663 = vpop.f32.mrb[0].mxu0
      %v664 = vpop.f32.mrb[0].mxu0
      %v665 = vadd.f32 0.0, %v664
      %v666 = vpop.f32.mrb[0].mxu0
      %667 = vmatprep.mubr.bf16.mxu0 0
      %668 = vmatmul.mubr.bf16.gmra.mrb[0].mxu0 %v541
      %v669 = vpop.f32.mrb[0].mxu0
      %v670 = vadd.f32 0.0, %v669
      %v671 = vpop.f32.mrb[0].mxu0
      %v672 = vpop.f32.mrb[0].mxu0
      %v673 = vadd.f32 0.0, %v672
      %v674 = vpop.f32.mrb[0].mxu0
      %675 = vmatprep.mubr.bf16.mxu0 0
      %676 = vmatmul.mubr.bf16.gmra.mrb[0].mxu0 %v542
      %v677 = vpop.f32.mrb[0].mxu0
      %v678 = vadd.f32 0.0, %v677
      %v679 = vpop.f32.mrb[0].mxu0
      %v680 = vpop.f32.mrb[0].mxu0
      %v681 = vadd.f32 0.0, %v680
      %v682 = vpop.f32.mrb[0].mxu0
      %683 = vmatprep.mubr.bf16.mxu0 0
      %684 = vmatmul.mubr.bf16.gmra.mrb[0].mxu0 %v543
      %v685 = vpop.f32.mrb[0].mxu0
      %v686 = vadd.f32 0.0, %v685
      %v687 = vpop.f32.mrb[0].mxu0
      %v688 = vpop.f32.mrb[0].mxu0
      %v689 = vadd.f32 0.0, %v688
      %v690 = vpop.f32.mrb[0].mxu0
      %691 = vmatprep.mubr.bf16.mxu0 0
      %692 = vmatmul.mubr.bf16.gmra.mrb[0].mxu0 %v544
      %v693 = vpop.f32.mrb[0].mxu0
      %v694 = vadd.f32 0.0, %v693
      %v695 = vpop.f32.mrb[0].mxu0
      %v696 = vpop.f32.mrb[0].mxu0
      %v697 = vadd.f32 0.0, %v696
      %v698 = vpop.f32.mrb[0].mxu0
      %699 = vmatprep.mubr.bf16.mxu0 0
      %700 = vmatmul.mubr.bf16.gmra.mrb[0].mxu0 %v545
      %v701 = vpop.f32.mrb[0].mxu0
      %v702 = vadd.f32 0.0, %v701
      %v703 = vpop.f32.mrb[0].mxu0
      %v704 = vpop.f32.mrb[0].mxu0
      %v705 = vadd.f32 0.0, %v704
      %v706 = vpop.f32.mrb[0].mxu0
      %707 = vmatprep.mubr.bf16.mxu0 0
      %708 = vmatmul.mubr.bf16.gmra.mrb[0].mxu0 %v546
      %v709 = vpop.f32.mrb[0].mxu0
      %v710 = vadd.f32 0.0, %v709
      %v711 = vpop.f32.mrb[0].mxu0
      %v712 = vpop.f32.mrb[0].mxu0
      %v713 = vadd.f32 0.0, %v712
      %v714 = vpop.f32.mrb[0].mxu0
      %715 = vmatprep.mubr.bf16.mxu0 0
      %716 = vmatmul.mubr.bf16.gmra.mrb[0].mxu0 %v547
      %v717 = vpop.f32.mrb[0].mxu0
      %v718 = vadd.f32 0.0, %v717
      %v719 = vpop.f32.mrb[0].mxu0
      %v720 = vpop.f32.mrb[0].mxu0
      %v721 = vadd.f32 0.0, %v720
      %v722 = vpop.f32.mrb[0].mxu0
      %723 = vmatprep.mubr.bf16.mxu0 0
      %724 = vmatmul.mubr.bf16.gmra.mrb[0].mxu0 %v548
      %v725 = vpop.f32.mrb[0].mxu0
      %v726 = vadd.f32 0.0, %v725
      %v727 = vpop.f32.mrb[0].mxu0
      %v728 = vpop.f32.mrb[0].mxu0
      %v729 = vadd.f32 0.0, %v728
      %v730 = vpop.f32.mrb[0].mxu0
      %731 = vmatprep.mubr.bf16.mxu0 0
      %732 = vmatmul.mubr.bf16.gmra.mrb[0].mxu0 %v549
      %v733 = vpop.f32.mrb[0].mxu0
      %v734 = vadd.f32 0.0, %v733
      %v735 = vpop.f32.mrb[0].mxu0
      %v736 = vpop.f32.mrb[0].mxu0
      %v737 = vadd.f32 0.0, %v736
      %v738 = vpop.f32.mrb[0].mxu0
      %739 = vmatprep.mubr.bf16.mxu0 0
      %740 = vmatmul.mubr.bf16.gmra.mrb[0].mxu0 %v550
      %v741 = vpop.f32.mrb[0].mxu0
      %v742 = vadd.f32 0.0, %v741
      %v743 = vpop.f32.mrb[0].mxu0
      %v744 = vpop.f32.mrb[0].mxu0
      %v745 = vadd.f32 0.0, %v744
      %v746 = vpop.f32.mrb[0].mxu0
      %747 = vmatprep.mubr.bf16.mxu0 0
      %748 = vmatmul.mubr.bf16.gmra.mrb[0].mxu0 %v551
      %v749 = vpop.f32.mrb[0].mxu0
      %v750 = vadd.f32 0.0, %v749
      %v751 = vpop.f32.mrb[0].mxu0
      %v752 = vpop.f32.mrb[0].mxu0
      %v753 = vadd.f32 0.0, %v752
      %v754 = vpop.f32.mrb[0].mxu0
      %755 = vmatprep.mubr.bf16.mxu0 0
      %756 = vmatmul.mubr.bf16.gmra.mrb[0].mxu0 %v552
      %v757 = vpop.f32.mrb[0].mxu0
      %v758 = vadd.f32 0.0, %v757
      %v759 = vpop.f32.mrb[0].mxu0
      %v760 = vpop.f32.mrb[0].mxu0
      %v761 = vadd.f32 0.0, %v760
      %v762 = vpop.f32.mrb[0].mxu0
      %763 = vmatprep.mubr.bf16.mxu0 0
      %764 = vmatmul.mubr.bf16.gmra.mrb[0].mxu0 %v553
      %v765 = vpop.f32.mrb[0].mxu0
      %v766 = vadd.f32 0.0, %v765
      %v767 = vpop.f32.mrb[0].mxu0
      %v768 = vpop.f32.mrb[0].mxu0
      %v769 = vadd.f32 0.0, %v768
      %v770 = vpop.f32.mrb[0].mxu0
      %771 = vdwg.mxu0
      %v788 = vunpack.c.l.b16 %v523
      %v789 = vunpack.c.l.b16 %v524
      %v790 = vunpack.c.l.b16 %v525
      %v791 = vunpack.c.l.b16 %v526
      %v792 = vunpack.c.l.b16 %v527
      %v793 = vunpack.c.l.b16 %v528
      %v794 = vunpack.c.l.b16 %v529
      %v795 = vunpack.c.l.b16 %v530
      %v796 = vunpack.c.l.b16 %v531
      %v797 = vunpack.c.l.b16 %v532
      %v798 = vunpack.c.l.b16 %v533
      %v799 = vunpack.c.l.b16 %v534
      %v800 = vunpack.c.l.b16 %v535
      %v801 = vunpack.c.l.b16 %v536
      %v802 = vunpack.c.l.b16 %v537
      %v803 = vunpack.c.l.b16 %v538
      %v804 = vpack.c.b16 %v789, %v788
      %v805 = vpack.c.b16 %v791, %v790
      %v806 = vpack.c.b16 %v793, %v792
      %v807 = vpack.c.b16 %v795, %v794
      %v808 = vpack.c.b16 %v797, %v796
      %v809 = vpack.c.b16 %v799, %v798
      %v810 = vpack.c.b16 %v801, %v800
      %v811 = vpack.c.b16 %v803, %v802
      %820 = vmatprep.subr.bf16.mxu0 0
      %821 = vmatpush1.bf16.msra.mxu0 %v804
      %822 = vmatprep.subr.bf16.mxu0 0
      %823 = vmatpush1.bf16.msra.mxu0 %v805
      %824 = vmatprep.subr.bf16.mxu0 0
      %825 = vmatpush1.bf16.msra.mxu0 %v806
      %826 = vmatprep.subr.bf16.mxu0 0
      %827 = vmatpush1.bf16.msra.mxu0 %v807
      %828 = vmatprep.subr.bf16.mxu0 0
      %829 = vmatpush1.bf16.msra.mxu0 %v808
      %830 = vmatprep.subr.bf16.mxu0 0
      %831 = vmatpush1.bf16.msra.mxu0 %v809
      %832 = vmatprep.subr.bf16.mxu0 0
      %833 = vmatpush1.bf16.msra.mxu0 %v810
      %834 = vmatprep.subr.bf16.mxu0 0
      %835 = vmatpush1.bf16.msra.mxu0 %v811
      %836 = vmatprep.subr.bf16.mxu0 0
      %837 = vmatpush1.bf16.msra.mxu0 0
      %838 = vmatprep.subr.bf16.mxu0 0
      %839 = vmatpush1.bf16.msra.mxu0 0
      %840 = vmatprep.subr.bf16.mxu0 0
      %841 = vmatpush1.bf16.msra.mxu0 0
      %842 = vmatprep.subr.bf16.mxu0 0
      %843 = vmatpush1.bf16.msra.mxu0 0
      %844 = vmatprep.subr.bf16.mxu0 0
      %845 = vmatpush1.bf16.msra.mxu0 0
      %846 = vmatprep.subr.bf16.mxu0 0
      %847 = vmatpush1.bf16.msra.mxu0 0
      %848 = vmatprep.subr.bf16.mxu0 0
      %849 = vmatpush1.bf16.msra.mxu0 0
      %850 = vmatprep.subr.bf16.mxu0 0
      %851 = vmatpush1.bf16.msra.mxu0 0
      %852 = vmatprep.mubr.bf16.mxu0 0
      %853 = vmatmul.mubr.bf16.gmra.mrb[0].mxu0 %v508
      %v854 = vpop.f32.mrb[0].mxu0
      %v855 = vadd.f32 %v654, %v854
      %v856 = vpop.f32.mrb[0].mxu0
      %v857 = vpop.f32.mrb[0].mxu0
      %v858 = vadd.f32 %v657, %v857
      %v859 = vpop.f32.mrb[0].mxu0
      %860 = vmatprep.mubr.bf16.mxu0 0
      %861 = vmatmul.mubr.bf16.gmra.mrb[0].mxu0 %v509
      %v862 = vpop.f32.mrb[0].mxu0
      %v863 = vadd.f32 %v662, %v862
      %v864 = vpop.f32.mrb[0].mxu0
      %v865 = vpop.f32.mrb[0].mxu0
      %v866 = vadd.f32 %v665, %v865
      %v867 = vpop.f32.mrb[0].mxu0
      %868 = vmatprep.mubr.bf16.mxu0 0
      %869 = vmatmul.mubr.bf16.gmra.mrb[0].mxu0 %v510
      %v870 = vpop.f32.mrb[0].mxu0
      %v871 = vadd.f32 %v670, %v870
      %v872 = vpop.f32.mrb[0].mxu0
      %v873 = vpop.f32.mrb[0].mxu0
      %v874 = vadd.f32 %v673, %v873
      %v875 = vpop.f32.mrb[0].mxu0
      %876 = vmatprep.mubr.bf16.mxu0 0
      %877 = vmatmul.mubr.bf16.gmra.mrb[0].mxu0 %v511
      %v878 = vpop.f32.mrb[0].mxu0
      %v879 = vadd.f32 %v678, %v878
      %v880 = vpop.f32.mrb[0].mxu0
      %v881 = vpop.f32.mrb[0].mxu0
      %v882 = vadd.f32 %v681, %v881
      %v883 = vpop.f32.mrb[0].mxu0
      %884 = vmatprep.mubr.bf16.mxu0 0
      %885 = vmatmul.mubr.bf16.gmra.mrb[0].mxu0 %v512
      %v886 = vpop.f32.mrb[0].mxu0
      %v887 = vadd.f32 %v686, %v886
      %v888 = vpop.f32.mrb[0].mxu0
      %v889 = vpop.f32.mrb[0].mxu0
      %v890 = vadd.f32 %v689, %v889
      %v891 = vpop.f32.mrb[0].mxu0
      %892 = vmatprep.mubr.bf16.mxu0 0
      %893 = vmatmul.mubr.bf16.gmra.mrb[0].mxu0 %v513
      %v894 = vpop.f32.mrb[0].mxu0
      %v895 = vadd.f32 %v694, %v894
      %v896 = vpop.f32.mrb[0].mxu0
      %v897 = vpop.f32.mrb[0].mxu0
      %v898 = vadd.f32 %v697, %v897
      %v899 = vpop.f32.mrb[0].mxu0
      %900 = vmatprep.mubr.bf16.mxu0 0
      %901 = vmatmul.mubr.bf16.gmra.mrb[0].mxu0 %v514
      %v902 = vpop.f32.mrb[0].mxu0
      %v903 = vadd.f32 %v702, %v902
      %v904 = vpop.f32.mrb[0].mxu0
      %v905 = vpop.f32.mrb[0].mxu0
      %v906 = vadd.f32 %v705, %v905
      %v907 = vpop.f32.mrb[0].mxu0
      %908 = vmatprep.mubr.bf16.mxu0 0
      %909 = vmatmul.mubr.bf16.gmra.mrb[0].mxu0 %v515
      %v910 = vpop.f32.mrb[0].mxu0
      %v911 = vadd.f32 %v710, %v910
      %v912 = vpop.f32.mrb[0].mxu0
      %v913 = vpop.f32.mrb[0].mxu0
      %v914 = vadd.f32 %v713, %v913
      %v915 = vpop.f32.mrb[0].mxu0
      %916 = vmatprep.mubr.bf16.mxu0 0
      %917 = vmatmul.mubr.bf16.gmra.mrb[0].mxu0 %v516
      %v918 = vpop.f32.mrb[0].mxu0
      %v919 = vadd.f32 %v718, %v918
      %v920 = vpop.f32.mrb[0].mxu0
      %v921 = vpop.f32.mrb[0].mxu0
      %v922 = vadd.f32 %v721, %v921
      %v923 = vpop.f32.mrb[0].mxu0
      %924 = vmatprep.mubr.bf16.mxu0 0
      %925 = vmatmul.mubr.bf16.gmra.mrb[0].mxu0 %v517
      %v926 = vpop.f32.mrb[0].mxu0
      %v927 = vadd.f32 %v726, %v926
      %v928 = vpop.f32.mrb[0].mxu0
      %v929 = vpop.f32.mrb[0].mxu0
      %v930 = vadd.f32 %v729, %v929
      %v931 = vpop.f32.mrb[0].mxu0
      %932 = vmatprep.mubr.bf16.mxu0 0
      %933 = vmatmul.mubr.bf16.gmra.mrb[0].mxu0 %v518
      %v934 = vpop.f32.mrb[0].mxu0
      %v935 = vadd.f32 %v734, %v934
      %v936 = vpop.f32.mrb[0].mxu0
      %v937 = vpop.f32.mrb[0].mxu0
      %v938 = vadd.f32 %v737, %v937
      %v939 = vpop.f32.mrb[0].mxu0
      %940 = vmatprep.mubr.bf16.mxu0 0
      %941 = vmatmul.mubr.bf16.gmra.mrb[0].mxu0 %v519
      %v942 = vpop.f32.mrb[0].mxu0
      %v943 = vadd.f32 %v742, %v942
      %v944 = vpop.f32.mrb[0].mxu0
      %v945 = vpop.f32.mrb[0].mxu0
      %v946 = vadd.f32 %v745, %v945
      %v947 = vpop.f32.mrb[0].mxu0
      %948 = vmatprep.mubr.bf16.mxu0 0
      %949 = vmatmul.mubr.bf16.gmra.mrb[0].mxu0 %v520
      %v950 = vpop.f32.mrb[0].mxu0
      %v951 = vadd.f32 %v750, %v950
      %v952 = vpop.f32.mrb[0].mxu0
      %v953 = vpop.f32.mrb[0].mxu0
      %v954 = vadd.f32 %v753, %v953
      %v955 = vpop.f32.mrb[0].mxu0
      %956 = vmatprep.mubr.bf16.mxu0 0
      %957 = vmatmul.mubr.bf16.gmra.mrb[0].mxu0 %v521
      %v958 = vpop.f32.mrb[0].mxu0
      %v959 = vadd.f32 %v758, %v958
      %v960 = vpop.f32.mrb[0].mxu0
      %v961 = vpop.f32.mrb[0].mxu0
      %v962 = vadd.f32 %v761, %v961
      %v963 = vpop.f32.mrb[0].mxu0
      %964 = vmatprep.mubr.bf16.mxu0 0
      %965 = vmatmul.mubr.bf16.gmra.mrb[0].mxu0 %v522
      %v966 = vpop.f32.mrb[0].mxu0
      %v967 = vadd.f32 %v766, %v966
      %v968 = vpop.f32.mrb[0].mxu0
      %v969 = vpop.f32.mrb[0].mxu0
      %v970 = vadd.f32 %v769, %v969
      %v971 = vpop.f32.mrb[0].mxu0
      %972 = vdwg.mxu0
      %v973 = vpack.c.bf16 %v503, %v502
      %v974 = vpack.c.bf16 %v505, %v504
      %v975 = vpack.c.bf16 %v507, %v506
      %s976 = scalar_lea.vmem %s2, 384
      %v977 = vld [vmem:[%s976] sm:$0xf]
      %v978 = vld [vmem:[%s976 + $0x4] sm:$0xf]
      %v979 = vld [vmem:[%s976 + $0x8] sm:$0xf]
      %v980 = vld [vmem:[%s976 + $0xc] sm:$0xf]
      %v981 = vld [vmem:[%s976 + $0x10] sm:$0xf]
      %v982 = vld [vmem:[%s976 + $0x14] sm:$0xf]
      %v983 = vld [vmem:[%s976 + $0x18] sm:$0xf]
      %v984 = vld [vmem:[%s976 + $0x1c] sm:$0xf]
      %v985 = vld [vmem:[%s976 + $0x20] sm:$0xf]
      %v986 = vld [vmem:[%s976 + $0x24] sm:$0xf]
      %v987 = vld [vmem:[%s976 + $0x28] sm:$0xf]
      %v988 = vld [vmem:[%s976 + $0x2c] sm:$0xf]
      %v989 = vld [vmem:[%s976 + $0x30] sm:$0xf]
      %v990 = vld [vmem:[%s976 + $0x34] sm:$0xf]
      %v991 = vld [vmem:[%s976 + $0x38] sm:$0xf]
      %v992 = vld [vmem:[%s976 + $0x3c] sm:$0xf]
      %v1009 = vunpack.c.l.b16 %v977
      %v1010 = vunpack.c.l.b16 %v978
      %v1011 = vunpack.c.l.b16 %v979
      %v1012 = vunpack.c.l.b16 %v980
      %v1013 = vunpack.c.l.b16 %v981
      %v1014 = vunpack.c.l.b16 %v982
      %v1015 = vunpack.c.l.b16 %v983
      %v1016 = vunpack.c.l.b16 %v984
      %v1017 = vunpack.c.l.b16 %v985
      %v1018 = vunpack.c.l.b16 %v986
      %v1019 = vunpack.c.l.b16 %v987
      %v1020 = vunpack.c.l.b16 %v988
      %v1021 = vunpack.c.l.b16 %v989
      %v1022 = vunpack.c.l.b16 %v990
      %v1023 = vunpack.c.l.b16 %v991
      %v1024 = vunpack.c.l.b16 %v992
      %v1025 = vpack.c.b16 %v1010, %v1009
      %v1026 = vpack.c.b16 %v1012, %v1011
      %v1027 = vpack.c.b16 %v1014, %v1013
      %v1028 = vpack.c.b16 %v1016, %v1015
      %v1029 = vpack.c.b16 %v1018, %v1017
      %v1030 = vpack.c.b16 %v1020, %v1019
      %v1031 = vpack.c.b16 %v1022, %v1021
      %v1032 = vpack.c.b16 %v1024, %v1023
      %1041 = vmatprep.subr.bf16.mxu0 0
      %1042 = vmatpush1.bf16.msra.mxu0 %v1025
      %1043 = vmatprep.subr.bf16.mxu0 0
      %1044 = vmatpush1.bf16.msra.mxu0 %v1026
      %1045 = vmatprep.subr.bf16.mxu0 0
      %1046 = vmatpush1.bf16.msra.mxu0 %v1027
      %1047 = vmatprep.subr.bf16.mxu0 0
      %1048 = vmatpush1.bf16.msra.mxu0 %v1028
      %1049 = vmatprep.subr.bf16.mxu0 0
      %1050 = vmatpush1.bf16.msra.mxu0 %v1029
      %1051 = vmatprep.subr.bf16.mxu0 0
      %1052 = vmatpush1.bf16.msra.mxu0 %v1030
      %1053 = vmatprep.subr.bf16.mxu0 0
      %1054 = vmatpush1.bf16.msra.mxu0 %v1031
      %1055 = vmatprep.subr.bf16.mxu0 0
      %1056 = vmatpush1.bf16.msra.mxu0 %v1032
      %1057 = vmatprep.subr.bf16.mxu0 0
      %1058 = vmatpush1.bf16.msra.mxu0 0
      %1059 = vmatprep.subr.bf16.mxu0 0
      %1060 = vmatpush1.bf16.msra.mxu0 0
      %1061 = vmatprep.subr.bf16.mxu0 0
      %1062 = vmatpush1.bf16.msra.mxu0 0
      %1063 = vmatprep.subr.bf16.mxu0 0
      %1064 = vmatpush1.bf16.msra.mxu0 0
      %1065 = vmatprep.subr.bf16.mxu0 0
      %1066 = vmatpush1.bf16.msra.mxu0 0
      %1067 = vmatprep.subr.bf16.mxu0 0
      %1068 = vmatpush1.bf16.msra.mxu0 0
      %1069 = vmatprep.subr.bf16.mxu0 0
      %1070 = vmatpush1.bf16.msra.mxu0 0
      %1071 = vmatprep.subr.bf16.mxu0 0
      %1072 = vmatpush1.bf16.msra.mxu0 0
      %1073 = vmatprep.mubr.bf16.mxu0 0
      %1074 = vmatmul.mubr.bf16.gmra.mrb[0].mxu0 %v511
      %v1075 = vpop.f32.mrb[0].mxu0
      %v1076 = vadd.f32 0.0, %v1075
      %v1077 = vpop.f32.mrb[0].mxu0
      %v1078 = vpop.f32.mrb[0].mxu0
      %v1079 = vadd.f32 0.0, %v1078
      %v1080 = vpop.f32.mrb[0].mxu0
      %1081 = vmatprep.mubr.bf16.mxu0 0
      %1082 = vmatmul.mubr.bf16.gmra.mrb[0].mxu0 %v512
      %v1083 = vpop.f32.mrb[0].mxu0
      %v1084 = vadd.f32 0.0, %v1083
      %v1085 = vpop.f32.mrb[0].mxu0
      %v1086 = vpop.f32.mrb[0].mxu0
      %v1087 = vadd.f32 0.0, %v1086
      %v1088 = vpop.f32.mrb[0].mxu0
      %1089 = vmatprep.mubr.bf16.mxu0 0
      %1090 = vmatmul.mubr.bf16.gmra.mrb[0].mxu0 %v513
      %v1091 = vpop.f32.mrb[0].mxu0
      %v1092 = vadd.f32 0.0, %v1091
      %v1093 = vpop.f32.mrb[0].mxu0
      %v1094 = vpop.f32.mrb[0].mxu0
      %v1095 = vadd.f32 0.0, %v1094
      %v1096 = vpop.f32.mrb[0].mxu0
      %1097 = vmatprep.mubr.bf16.mxu0 0
      %1098 = vmatmul.mubr.bf16.gmra.mrb[0].mxu0 %v514
      %v1099 = vpop.f32.mrb[0].mxu0
      %v1100 = vadd.f32 0.0, %v1099
      %v1101 = vpop.f32.mrb[0].mxu0
      %v1102 = vpop.f32.mrb[0].mxu0
      %v1103 = vadd.f32 0.0, %v1102
      %v1104 = vpop.f32.mrb[0].mxu0
      %1105 = vmatprep.mubr.bf16.mxu0 0
      %1106 = vmatmul.mubr.bf16.gmra.mrb[0].mxu0 %v515
      %v1107 = vpop.f32.mrb[0].mxu0
      %v1108 = vadd.f32 0.0, %v1107
      %v1109 = vpop.f32.mrb[0].mxu0
      %v1110 = vpop.f32.mrb[0].mxu0
      %v1111 = vadd.f32 0.0, %v1110
      %v1112 = vpop.f32.mrb[0].mxu0
      %1113 = vmatprep.mubr.bf16.mxu0 0
      %1114 = vmatmul.mubr.bf16.gmra.mrb[0].mxu0 %v516
      %v1115 = vpop.f32.mrb[0].mxu0
      %v1116 = vadd.f32 0.0, %v1115
      %v1117 = vpop.f32.mrb[0].mxu0
      %v1118 = vpop.f32.mrb[0].mxu0
      %v1119 = vadd.f32 0.0, %v1118
      %v1120 = vpop.f32.mrb[0].mxu0
      %1121 = vmatprep.mubr.bf16.mxu0 0
      %1122 = vmatmul.mubr.bf16.gmra.mrb[0].mxu0 %v517
      %v1123 = vpop.f32.mrb[0].mxu0
      %v1124 = vadd.f32 0.0, %v1123
      %v1125 = vpop.f32.mrb[0].mxu0
      %v1126 = vpop.f32.mrb[0].mxu0
      %v1127 = vadd.f32 0.0, %v1126
      %v1128 = vpop.f32.mrb[0].mxu0
      %1129 = vmatprep.mubr.bf16.mxu0 0
      %1130 = vmatmul.mubr.bf16.gmra.mrb[0].mxu0 %v518
      %v1131 = vpop.f32.mrb[0].mxu0
      %v1132 = vadd.f32 0.0, %v1131
      %v1133 = vpop.f32.mrb[0].mxu0
      %v1134 = vpop.f32.mrb[0].mxu0
      %v1135 = vadd.f32 0.0, %v1134
      %v1136 = vpop.f32.mrb[0].mxu0
      %1137 = vmatprep.mubr.bf16.mxu0 0
      %1138 = vmatmul.mubr.bf16.gmra.mrb[0].mxu0 %v519
      %v1139 = vpop.f32.mrb[0].mxu0
      %v1140 = vadd.f32 0.0, %v1139
      %v1141 = vpop.f32.mrb[0].mxu0
      %v1142 = vpop.f32.mrb[0].mxu0
      %v1143 = vadd.f32 0.0, %v1142
      %v1144 = vpop.f32.mrb[0].mxu0
      %1145 = vmatprep.mubr.bf16.mxu0 0
      %1146 = vmatmul.mubr.bf16.gmra.mrb[0].mxu0 %v520
      %v1147 = vpop.f32.mrb[0].mxu0
      %v1148 = vadd.f32 0.0, %v1147
      %v1149 = vpop.f32.mrb[0].mxu0
      %v1150 = vpop.f32.mrb[0].mxu0
      %v1151 = vadd.f32 0.0, %v1150
      %v1152 = vpop.f32.mrb[0].mxu0
      %1153 = vmatprep.mubr.bf16.mxu0 0
      %1154 = vmatmul.mubr.bf16.gmra.mrb[0].mxu0 %v521
      %v1155 = vpop.f32.mrb[0].mxu0
      %v1156 = vadd.f32 0.0, %v1155
      %v1157 = vpop.f32.mrb[0].mxu0
      %v1158 = vpop.f32.mrb[0].mxu0
      %v1159 = vadd.f32 0.0, %v1158
      %v1160 = vpop.f32.mrb[0].mxu0
      %1161 = vmatprep.mubr.bf16.mxu0 0
      %1162 = vmatmul.mubr.bf16.gmra.mrb[0].mxu0 %v522
      %v1163 = vpop.f32.mrb[0].mxu0
      %v1164 = vadd.f32 0.0, %v1163
      %v1165 = vpop.f32.mrb[0].mxu0
      %v1166 = vpop.f32.mrb[0].mxu0
      %v1167 = vadd.f32 0.0, %v1166
      %v1168 = vpop.f32.mrb[0].mxu0
      %1169 = vmatprep.mubr.bf16.mxu0 0
      %1170 = vmatmul.mubr.bf16.gmra.mrb[0].mxu0 %v973
      %v1171 = vpop.f32.mrb[0].mxu0
      %v1172 = vadd.f32 0.0, %v1171
      %v1173 = vpop.f32.mrb[0].mxu0
      %v1174 = vpop.f32.mrb[0].mxu0
      %v1175 = vadd.f32 0.0, %v1174
      %v1176 = vpop.f32.mrb[0].mxu0
      %1177 = vmatprep.mubr.bf16.mxu0 0
      %1178 = vmatmul.mubr.bf16.gmra.mrb[0].mxu0 %v974
      %v1179 = vpop.f32.mrb[0].mxu0
      %v1180 = vadd.f32 0.0, %v1179
      %v1181 = vpop.f32.mrb[0].mxu0
      %v1182 = vpop.f32.mrb[0].mxu0
      %v1183 = vadd.f32 0.0, %v1182
      %v1184 = vpop.f32.mrb[0].mxu0
      %1185 = vmatprep.mubr.bf16.mxu0 0
      %1186 = vmatmul.mubr.bf16.gmra.mrb[0].mxu0 %v975
      %v1187 = vpop.f32.mrb[0].mxu0
      %v1188 = vadd.f32 0.0, %v1187
      %v1189 = vpop.f32.mrb[0].mxu0
      %v1190 = vpop.f32.mrb[0].mxu0
      %v1191 = vadd.f32 0.0, %v1190
      %v1192 = vpop.f32.mrb[0].mxu0
      %1193 = vdwg.mxu0
      %v1194 = vadd.f32 %v855, %v1076
      %v1195 = vadd.f32 %v858, %v1079
      %v1196 = vadd.f32 %v863, %v1084
      %v1197 = vadd.f32 %v866, %v1087
      %v1198 = vadd.f32 %v871, %v1092
      %v1199 = vadd.f32 %v874, %v1095
      %v1200 = vadd.f32 %v879, %v1100
      %v1201 = vadd.f32 %v882, %v1103
      %v1202 = vadd.f32 %v887, %v1108
      %v1203 = vadd.f32 %v890, %v1111
      %v1204 = vadd.f32 %v895, %v1116
      %v1205 = vadd.f32 %v898, %v1119
      %v1206 = vadd.f32 %v903, %v1124
      %v1207 = vadd.f32 %v906, %v1127
      %v1208 = vadd.f32 %v911, %v1132
      %v1209 = vadd.f32 %v914, %v1135
      %v1210 = vadd.f32 %v919, %v1140
      %v1211 = vadd.f32 %v922, %v1143
      %v1212 = vadd.f32 %v927, %v1148
      %v1213 = vadd.f32 %v930, %v1151
      %v1214 = vadd.f32 %v935, %v1156
      %v1215 = vadd.f32 %v938, %v1159
      %v1216 = vadd.f32 %v943, %v1164
      %v1217 = vadd.f32 %v946, %v1167
      %v1218 = vadd.f32 %v951, %v1172
      %v1219 = vadd.f32 %v954, %v1175
      %v1220 = vadd.f32 %v959, %v1180
      %v1221 = vadd.f32 %v962, %v1183
      %v1222 = vadd.f32 %v967, %v1188
      %v1223 = vadd.f32 %v970, %v1191
      %v1224 = vld [vmem:[#allocation2 + $0x1] sm:$0xff]
      %v1225 = vld [vmem:[#allocation2 + $0x9] sm:$0xff]
      %v1226 = vld [vmem:[#allocation2 + $0x11] sm:$0xff]
      %v1227 = vld [vmem:[#allocation2 + $0x21] sm:$0xff]
      %v1228 = vld [vmem:[#allocation2 + $0x29] sm:$0xff]
      %v1229 = vld [vmem:[#allocation2 + $0x31] sm:$0xff]
      %v1230 = vld [vmem:[#allocation2 + $0x41] sm:$0xff]
      %v1231 = vld [vmem:[#allocation2 + $0x49] sm:$0xff]
      %v1232 = vld [vmem:[#allocation2 + $0x51] sm:$0xff]
      %v1233 = vld [vmem:[#allocation2 + $0x61] sm:$0xff]
      %v1234 = vld [vmem:[#allocation2 + $0x69] sm:$0xff]
      %v1235 = vld [vmem:[#allocation2 + $0x71] sm:$0xff]
      %v1236 = vld [vmem:[#allocation2 + $0x81] sm:$0xff]
      %v1237 = vld [vmem:[#allocation2 + $0x89] sm:$0xff]
      %v1238 = vld [vmem:[#allocation2 + $0x91] sm:$0xff]
      %v1239 = vld [vmem:[#allocation2 + $0xa1] sm:$0xff]
      %v1240 = vld [vmem:[#allocation2 + $0xa9] sm:$0xff]
      %v1241 = vld [vmem:[#allocation2 + $0xb1] sm:$0xff]
      %v1242 = vld [vmem:[#allocation2 + $0xc1] sm:$0xff]
      %v1243 = vld [vmem:[#allocation2 + $0xc9] sm:$0xff]
      %v1244 = vld [vmem:[#allocation2 + $0xd1] sm:$0xff]
      %v1245 = vld [vmem:[#allocation2 + $0xe1] sm:$0xff]
      %v1246 = vld [vmem:[#allocation2 + $0xe9] sm:$0xff]
      %v1247 = vld [vmem:[#allocation2 + $0xf1] sm:$0xff]
      %v1248 = vld [vmem:[#allocation2 + $0x101] sm:$0xff]
      %v1249 = vld [vmem:[#allocation2 + $0x109] sm:$0xff]
      %v1250 = vld [vmem:[#allocation2 + $0x111] sm:$0xff]
      %v1251 = vld [vmem:[#allocation2 + $0x121] sm:$0xff]
      %v1252 = vld [vmem:[#allocation2 + $0x129] sm:$0xff]
      %v1253 = vld [vmem:[#allocation2 + $0x131] sm:$0xff]
      %v1254 = vld [vmem:[#allocation2 + $0x141] sm:$0xff]
      %v1255 = vld [vmem:[#allocation2 + $0x149] sm:$0xff]
      %v1256 = vld [vmem:[#allocation2 + $0x151] sm:$0xff]
      %v1257 = vld [vmem:[#allocation2 + $0x161] sm:$0xff]
      %v1258 = vld [vmem:[#allocation2 + $0x169] sm:$0xff]
      %v1259 = vld [vmem:[#allocation2 + $0x171] sm:$0xff]
      %v1260 = vpack.c.bf16 %v1225, %v1224
      %v1261 = vpack.c.bf16 %v1227, %v1226
      %v1262 = vpack.c.bf16 %v1229, %v1228
      %v1263 = vpack.c.bf16 %v1231, %v1230
      %v1264 = vpack.c.bf16 %v1233, %v1232
      %v1265 = vpack.c.bf16 %v1235, %v1234
      %v1266 = vpack.c.bf16 %v1237, %v1236
      %v1267 = vpack.c.bf16 %v1239, %v1238
      %v1268 = vpack.c.bf16 %v1241, %v1240
      %v1269 = vpack.c.bf16 %v1243, %v1242
      %v1270 = vpack.c.bf16 %v1245, %v1244
      %v1271 = vpack.c.bf16 %v1247, %v1246
      %v1272 = vpack.c.bf16 %v1249, %v1248
      %v1273 = vpack.c.bf16 %v1251, %v1250
      %v1274 = vpack.c.bf16 %v1253, %v1252
      %s1275 = scalar_lea.vmem %s2, 64
      %v1276 = vld [vmem:[%s1275] sm:$0xf]
      %v1277 = vld [vmem:[%s1275 + $0x4] sm:$0xf]
      %v1278 = vld [vmem:[%s1275 + $0x8] sm:$0xf]
      %v1279 = vld [vmem:[%s1275 + $0xc] sm:$0xf]
      %v1280 = vld [vmem:[%s1275 + $0x10] sm:$0xf]
      %v1281 = vld [vmem:[%s1275 + $0x14] sm:$0xf]
      %v1282 = vld [vmem:[%s1275 + $0x18] sm:$0xf]
      %v1283 = vld [vmem:[%s1275 + $0x1c] sm:$0xf]
      %v1284 = vld [vmem:[%s1275 + $0x20] sm:$0xf]
      %v1285 = vld [vmem:[%s1275 + $0x24] sm:$0xf]
      %v1286 = vld [vmem:[%s1275 + $0x28] sm:$0xf]
      %v1287 = vld [vmem:[%s1275 + $0x2c] sm:$0xf]
      %v1288 = vld [vmem:[%s1275 + $0x30] sm:$0xf]
      %v1289 = vld [vmem:[%s1275 + $0x34] sm:$0xf]
      %v1290 = vld [vmem:[%s1275 + $0x38] sm:$0xf]
      %v1291 = vld [vmem:[%s1275 + $0x3c] sm:$0xf]
      %v1308 = vunpack.c.l.b16 %v1276
      %v1309 = vunpack.c.l.b16 %v1277
      %v1310 = vunpack.c.l.b16 %v1278
      %v1311 = vunpack.c.l.b16 %v1279
      %v1312 = vunpack.c.l.b16 %v1280
      %v1313 = vunpack.c.l.b16 %v1281
      %v1314 = vunpack.c.l.b16 %v1282
      %v1315 = vunpack.c.l.b16 %v1283
      %v1316 = vunpack.c.l.b16 %v1284
      %v1317 = vunpack.c.l.b16 %v1285
      %v1318 = vunpack.c.l.b16 %v1286
      %v1319 = vunpack.c.l.b16 %v1287
      %v1320 = vunpack.c.l.b16 %v1288
      %v1321 = vunpack.c.l.b16 %v1289
      %v1322 = vunpack.c.l.b16 %v1290
      %v1323 = vunpack.c.l.b16 %v1291
      %v1324 = vpack.c.b16 %v1309, %v1308
      %v1325 = vpack.c.b16 %v1311, %v1310
      %v1326 = vpack.c.b16 %v1313, %v1312
      %v1327 = vpack.c.b16 %v1315, %v1314
      %v1328 = vpack.c.b16 %v1317, %v1316
      %v1329 = vpack.c.b16 %v1319, %v1318
      %v1330 = vpack.c.b16 %v1321, %v1320
      %v1331 = vpack.c.b16 %v1323, %v1322
      %1340 = vmatprep.subr.bf16.mxu0 0
      %1341 = vmatpush1.bf16.msra.mxu0 %v1324
      %1342 = vmatprep.subr.bf16.mxu0 0
      %1343 = vmatpush1.bf16.msra.mxu0 %v1325
      %1344 = vmatprep.subr.bf16.mxu0 0
      %1345 = vmatpush1.bf16.msra.mxu0 %v1326
      %1346 = vmatprep.subr.bf16.mxu0 0
      %1347 = vmatpush1.bf16.msra.mxu0 %v1327
      %1348 = vmatprep.subr.bf16.mxu0 0
      %1349 = vmatpush1.bf16.msra.mxu0 %v1328
      %1350 = vmatprep.subr.bf16.mxu0 0
      %1351 = vmatpush1.bf16.msra.mxu0 %v1329
      %1352 = vmatprep.subr.bf16.mxu0 0
      %1353 = vmatpush1.bf16.msra.mxu0 %v1330
      %1354 = vmatprep.subr.bf16.mxu0 0
      %1355 = vmatpush1.bf16.msra.mxu0 %v1331
      %1356 = vmatprep.subr.bf16.mxu0 0
      %1357 = vmatpush1.bf16.msra.mxu0 0
      %1358 = vmatprep.subr.bf16.mxu0 0
      %1359 = vmatpush1.bf16.msra.mxu0 0
      %1360 = vmatprep.subr.bf16.mxu0 0
      %1361 = vmatpush1.bf16.msra.mxu0 0
      %1362 = vmatprep.subr.bf16.mxu0 0
      %1363 = vmatpush1.bf16.msra.mxu0 0
      %1364 = vmatprep.subr.bf16.mxu0 0
      %1365 = vmatpush1.bf16.msra.mxu0 0
      %1366 = vmatprep.subr.bf16.mxu0 0
      %1367 = vmatpush1.bf16.msra.mxu0 0
      %1368 = vmatprep.subr.bf16.mxu0 0
      %1369 = vmatpush1.bf16.msra.mxu0 0
      %1370 = vmatprep.subr.bf16.mxu0 0
      %1371 = vmatpush1.bf16.msra.mxu0 0
      %1372 = vmatprep.mubr.bf16.mxu0 0
      %1373 = vmatmul.mubr.bf16.gmra.mrb[0].mxu0 %v1260
      %v1374 = vpop.f32.mrb[0].mxu0
      %v1375 = vadd.f32 0.0, %v1374
      %v1376 = vpop.f32.mrb[0].mxu0
      %v1377 = vpop.f32.mrb[0].mxu0
      %v1378 = vadd.f32 0.0, %v1377
      %v1379 = vpop.f32.mrb[0].mxu0
      %1380 = vmatprep.mubr.bf16.mxu0 0
      %1381 = vmatmul.mubr.bf16.gmra.mrb[0].mxu0 %v1261
      %v1382 = vpop.f32.mrb[0].mxu0
      %v1383 = vadd.f32 0.0, %v1382
      %v1384 = vpop.f32.mrb[0].mxu0
      %v1385 = vpop.f32.mrb[0].mxu0
      %v1386 = vadd.f32 0.0, %v1385
      %v1387 = vpop.f32.mrb[0].mxu0
      %1388 = vmatprep.mubr.bf16.mxu0 0
      %1389 = vmatmul.mubr.bf16.gmra.mrb[0].mxu0 %v1262
      %v1390 = vpop.f32.mrb[0].mxu0
      %v1391 = vadd.f32 0.0, %v1390
      %v1392 = vpop.f32.mrb[0].mxu0
      %v1393 = vpop.f32.mrb[0].mxu0
      %v1394 = vadd.f32 0.0, %v1393
      %v1395 = vpop.f32.mrb[0].mxu0
      %1396 = vmatprep.mubr.bf16.mxu0 0
      %1397 = vmatmul.mubr.bf16.gmra.mrb[0].mxu0 %v1263
      %v1398 = vpop.f32.mrb[0].mxu0
      %v1399 = vadd.f32 0.0, %v1398
      %v1400 = vpop.f32.mrb[0].mxu0
      %v1401 = vpop.f32.mrb[0].mxu0
      %v1402 = vadd.f32 0.0, %v1401
      %v1403 = vpop.f32.mrb[0].mxu0
      %1404 = vmatprep.mubr.bf16.mxu0 0
      %1405 = vmatmul.mubr.bf16.gmra.mrb[0].mxu0 %v1264
      %v1406 = vpop.f32.mrb[0].mxu0
      %v1407 = vadd.f32 0.0, %v1406
      %v1408 = vpop.f32.mrb[0].mxu0
      %v1409 = vpop.f32.mrb[0].mxu0
      %v1410 = vadd.f32 0.0, %v1409
      %v1411 = vpop.f32.mrb[0].mxu0
      %1412 = vmatprep.mubr.bf16.mxu0 0
      %1413 = vmatmul.mubr.bf16.gmra.mrb[0].mxu0 %v1265
      %v1414 = vpop.f32.mrb[0].mxu0
      %v1415 = vadd.f32 0.0, %v1414
      %v1416 = vpop.f32.mrb[0].mxu0
      %v1417 = vpop.f32.mrb[0].mxu0
      %v1418 = vadd.f32 0.0, %v1417
      %v1419 = vpop.f32.mrb[0].mxu0
      %1420 = vmatprep.mubr.bf16.mxu0 0
      %1421 = vmatmul.mubr.bf16.gmra.mrb[0].mxu0 %v1266
      %v1422 = vpop.f32.mrb[0].mxu0
      %v1423 = vadd.f32 0.0, %v1422
      %v1424 = vpop.f32.mrb[0].mxu0
      %v1425 = vpop.f32.mrb[0].mxu0
      %v1426 = vadd.f32 0.0, %v1425
      %v1427 = vpop.f32.mrb[0].mxu0
      %1428 = vmatprep.mubr.bf16.mxu0 0
      %1429 = vmatmul.mubr.bf16.gmra.mrb[0].mxu0 %v1267
      %v1430 = vpop.f32.mrb[0].mxu0
      %v1431 = vadd.f32 0.0, %v1430
      %v1432 = vpop.f32.mrb[0].mxu0
      %v1433 = vpop.f32.mrb[0].mxu0
      %v1434 = vadd.f32 0.0, %v1433
      %v1435 = vpop.f32.mrb[0].mxu0
      %1436 = vmatprep.mubr.bf16.mxu0 0
      %1437 = vmatmul.mubr.bf16.gmra.mrb[0].mxu0 %v1268
      %v1438 = vpop.f32.mrb[0].mxu0
      %v1439 = vadd.f32 0.0, %v1438
      %v1440 = vpop.f32.mrb[0].mxu0
      %v1441 = vpop.f32.mrb[0].mxu0
      %v1442 = vadd.f32 0.0, %v1441
      %v1443 = vpop.f32.mrb[0].mxu0
      %1444 = vmatprep.mubr.bf16.mxu0 0
      %1445 = vmatmul.mubr.bf16.gmra.mrb[0].mxu0 %v1269
      %v1446 = vpop.f32.mrb[0].mxu0
      %v1447 = vadd.f32 0.0, %v1446
      %v1448 = vpop.f32.mrb[0].mxu0
      %v1449 = vpop.f32.mrb[0].mxu0
      %v1450 = vadd.f32 0.0, %v1449
      %v1451 = vpop.f32.mrb[0].mxu0
      %1452 = vmatprep.mubr.bf16.mxu0 0
      %1453 = vmatmul.mubr.bf16.gmra.mrb[0].mxu0 %v1270
      %v1454 = vpop.f32.mrb[0].mxu0
      %v1455 = vadd.f32 0.0, %v1454
      %v1456 = vpop.f32.mrb[0].mxu0
      %v1457 = vpop.f32.mrb[0].mxu0
      %v1458 = vadd.f32 0.0, %v1457
      %v1459 = vpop.f32.mrb[0].mxu0
      %1460 = vmatprep.mubr.bf16.mxu0 0
      %1461 = vmatmul.mubr.bf16.gmra.mrb[0].mxu0 %v1271
      %v1462 = vpop.f32.mrb[0].mxu0
      %v1463 = vadd.f32 0.0, %v1462
      %v1464 = vpop.f32.mrb[0].mxu0
      %v1465 = vpop.f32.mrb[0].mxu0
      %v1466 = vadd.f32 0.0, %v1465
      %v1467 = vpop.f32.mrb[0].mxu0
      %1468 = vmatprep.mubr.bf16.mxu0 0
      %1469 = vmatmul.mubr.bf16.gmra.mrb[0].mxu0 %v1272
      %v1470 = vpop.f32.mrb[0].mxu0
      %v1471 = vadd.f32 0.0, %v1470
      %v1472 = vpop.f32.mrb[0].mxu0
      %v1473 = vpop.f32.mrb[0].mxu0
      %v1474 = vadd.f32 0.0, %v1473
      %v1475 = vpop.f32.mrb[0].mxu0
      %1476 = vmatprep.mubr.bf16.mxu0 0
      %1477 = vmatmul.mubr.bf16.gmra.mrb[0].mxu0 %v1273
      %v1478 = vpop.f32.mrb[0].mxu0
      %v1479 = vadd.f32 0.0, %v1478
      %v1480 = vpop.f32.mrb[0].mxu0
      %v1481 = vpop.f32.mrb[0].mxu0
      %v1482 = vadd.f32 0.0, %v1481
      %v1483 = vpop.f32.mrb[0].mxu0
      %1484 = vmatprep.mubr.bf16.mxu0 0
      %1485 = vmatmul.mubr.bf16.gmra.mrb[0].mxu0 %v1274
      %v1486 = vpop.f32.mrb[0].mxu0
      %v1487 = vadd.f32 0.0, %v1486
      %v1488 = vpop.f32.mrb[0].mxu0
      %v1489 = vpop.f32.mrb[0].mxu0
      %v1490 = vadd.f32 0.0, %v1489
      %v1491 = vpop.f32.mrb[0].mxu0
      %1492 = vdwg.mxu0
      %v1493 = vadd.f32 %v1194, %v1375
      %v1494 = vadd.f32 %v1195, %v1378
      %v1495 = vadd.f32 %v1196, %v1383
      %v1496 = vadd.f32 %v1197, %v1386
      %v1497 = vadd.f32 %v1198, %v1391
      %v1498 = vadd.f32 %v1199, %v1394
      %v1499 = vadd.f32 %v1200, %v1399
      %v1500 = vadd.f32 %v1201, %v1402
      %v1501 = vadd.f32 %v1202, %v1407
      %v1502 = vadd.f32 %v1203, %v1410
      %v1503 = vadd.f32 %v1204, %v1415
      %v1504 = vadd.f32 %v1205, %v1418
      %v1505 = vadd.f32 %v1206, %v1423
      %v1506 = vadd.f32 %v1207, %v1426
      %v1507 = vadd.f32 %v1208, %v1431
      %v1508 = vadd.f32 %v1209, %v1434
      %v1509 = vadd.f32 %v1210, %v1439
      %v1510 = vadd.f32 %v1211, %v1442
      %v1511 = vadd.f32 %v1212, %v1447
      %v1512 = vadd.f32 %v1213, %v1450
      %v1513 = vadd.f32 %v1214, %v1455
      %v1514 = vadd.f32 %v1215, %v1458
      %v1515 = vadd.f32 %v1216, %v1463
      %v1516 = vadd.f32 %v1217, %v1466
      %v1517 = vadd.f32 %v1218, %v1471
      %v1518 = vadd.f32 %v1219, %v1474
      %v1519 = vadd.f32 %v1220, %v1479
      %v1520 = vadd.f32 %v1221, %v1482
      %v1521 = vadd.f32 %v1222, %v1487
      %v1522 = vadd.f32 %v1223, %v1490
      %v1523 = vpack.c.bf16 %v1228, %v1227
      %v1524 = vpack.c.bf16 %v1230, %v1229
      %v1525 = vpack.c.bf16 %v1232, %v1231
      %v1526 = vpack.c.bf16 %v1234, %v1233
      %v1527 = vpack.c.bf16 %v1236, %v1235
      %v1528 = vpack.c.bf16 %v1238, %v1237
      %v1529 = vpack.c.bf16 %v1240, %v1239
      %v1530 = vpack.c.bf16 %v1242, %v1241
      %v1531 = vpack.c.bf16 %v1244, %v1243
      %v1532 = vpack.c.bf16 %v1246, %v1245
      %v1533 = vpack.c.bf16 %v1248, %v1247
      %v1534 = vpack.c.bf16 %v1250, %v1249
      %v1535 = vpack.c.bf16 %v1252, %v1251
      %v1536 = vpack.c.bf16 %v1254, %v1253
      %v1537 = vpack.c.bf16 %v1256, %v1255
      %s1538 = scalar_lea.vmem %s2, 256
      %v1539 = vld [vmem:[%s1538] sm:$0xf]
      %v1540 = vld [vmem:[%s1538 + $0x4] sm:$0xf]
      %v1541 = vld [vmem:[%s1538 + $0x8] sm:$0xf]
      %v1542 = vld [vmem:[%s1538 + $0xc] sm:$0xf]
      %v1543 = vld [vmem:[%s1538 + $0x10] sm:$0xf]
      %v1544 = vld [vmem:[%s1538 + $0x14] sm:$0xf]
      %v1545 = vld [vmem:[%s1538 + $0x18] sm:$0xf]
      %v1546 = vld [vmem:[%s1538 + $0x1c] sm:$0xf]
      %v1547 = vld [vmem:[%s1538 + $0x20] sm:$0xf]
      %v1548 = vld [vmem:[%s1538 + $0x24] sm:$0xf]
      %v1549 = vld [vmem:[%s1538 + $0x28] sm:$0xf]
      %v1550 = vld [vmem:[%s1538 + $0x2c] sm:$0xf]
      %v1551 = vld [vmem:[%s1538 + $0x30] sm:$0xf]
      %v1552 = vld [vmem:[%s1538 + $0x34] sm:$0xf]
      %v1553 = vld [vmem:[%s1538 + $0x38] sm:$0xf]
      %v1554 = vld [vmem:[%s1538 + $0x3c] sm:$0xf]
      %v1571 = vunpack.c.l.b16 %v1539
      %v1572 = vunpack.c.l.b16 %v1540
      %v1573 = vunpack.c.l.b16 %v1541
      %v1574 = vunpack.c.l.b16 %v1542
      %v1575 = vunpack.c.l.b16 %v1543
      %v1576 = vunpack.c.l.b16 %v1544
      %v1577 = vunpack.c.l.b16 %v1545
      %v1578 = vunpack.c.l.b16 %v1546
      %v1579 = vunpack.c.l.b16 %v1547
      %v1580 = vunpack.c.l.b16 %v1548
      %v1581 = vunpack.c.l.b16 %v1549
      %v1582 = vunpack.c.l.b16 %v1550
      %v1583 = vunpack.c.l.b16 %v1551
      %v1584 = vunpack.c.l.b16 %v1552
      %v1585 = vunpack.c.l.b16 %v1553
      %v1586 = vunpack.c.l.b16 %v1554
      %v1587 = vpack.c.b16 %v1572, %v1571
      %v1588 = vpack.c.b16 %v1574, %v1573
      %v1589 = vpack.c.b16 %v1576, %v1575
      %v1590 = vpack.c.b16 %v1578, %v1577
      %v1591 = vpack.c.b16 %v1580, %v1579
      %v1592 = vpack.c.b16 %v1582, %v1581
      %v1593 = vpack.c.b16 %v1584, %v1583
      %v1594 = vpack.c.b16 %v1586, %v1585
      %1603 = vmatprep.subr.bf16.mxu0 0
      %1604 = vmatpush1.bf16.msra.mxu0 %v1587
      %1605 = vmatprep.subr.bf16.mxu0 0
      %1606 = vmatpush1.bf16.msra.mxu0 %v1588
      %1607 = vmatprep.subr.bf16.mxu0 0
      %1608 = vmatpush1.bf16.msra.mxu0 %v1589
      %1609 = vmatprep.subr.bf16.mxu0 0
      %1610 = vmatpush1.bf16.msra.mxu0 %v1590
      %1611 = vmatprep.subr.bf16.mxu0 0
      %1612 = vmatpush1.bf16.msra.mxu0 %v1591
      %1613 = vmatprep.subr.bf16.mxu0 0
      %1614 = vmatpush1.bf16.msra.mxu0 %v1592
      %1615 = vmatprep.subr.bf16.mxu0 0
      %1616 = vmatpush1.bf16.msra.mxu0 %v1593
      %1617 = vmatprep.subr.bf16.mxu0 0
      %1618 = vmatpush1.bf16.msra.mxu0 %v1594
      %1619 = vmatprep.subr.bf16.mxu0 0
      %1620 = vmatpush1.bf16.msra.mxu0 0
      %1621 = vmatprep.subr.bf16.mxu0 0
      %1622 = vmatpush1.bf16.msra.mxu0 0
      %1623 = vmatprep.subr.bf16.mxu0 0
      %1624 = vmatpush1.bf16.msra.mxu0 0
      %1625 = vmatprep.subr.bf16.mxu0 0
      %1626 = vmatpush1.bf16.msra.mxu0 0
      %1627 = vmatprep.subr.bf16.mxu0 0
      %1628 = vmatpush1.bf16.msra.mxu0 0
      %1629 = vmatprep.subr.bf16.mxu0 0
      %1630 = vmatpush1.bf16.msra.mxu0 0
      %1631 = vmatprep.subr.bf16.mxu0 0
      %1632 = vmatpush1.bf16.msra.mxu0 0
      %1633 = vmatprep.subr.bf16.mxu0 0
      %1634 = vmatpush1.bf16.msra.mxu0 0
      %1635 = vmatprep.mubr.bf16.mxu0 0
      %1636 = vmatmul.mubr.bf16.gmra.mrb[0].mxu0 %v1523
      %v1637 = vpop.f32.mrb[0].mxu0
      %v1638 = vadd.f32 0.0, %v1637
      %v1639 = vpop.f32.mrb[0].mxu0
      %v1640 = vpop.f32.mrb[0].mxu0
      %v1641 = vadd.f32 0.0, %v1640
      %v1642 = vpop.f32.mrb[0].mxu0
      %1643 = vmatprep.mubr.bf16.mxu0 0
      %1644 = vmatmul.mubr.bf16.gmra.mrb[0].mxu0 %v1524
      %v1645 = vpop.f32.mrb[0].mxu0
      %v1646 = vadd.f32 0.0, %v1645
      %v1647 = vpop.f32.mrb[0].mxu0
      %v1648 = vpop.f32.mrb[0].mxu0
      %v1649 = vadd.f32 0.0, %v1648
      %v1650 = vpop.f32.mrb[0].mxu0
      %1651 = vmatprep.mubr.bf16.mxu0 0
      %1652 = vmatmul.mubr.bf16.gmra.mrb[0].mxu0 %v1525
      %v1653 = vpop.f32.mrb[0].mxu0
      %v1654 = vadd.f32 0.0, %v1653
      %v1655 = vpop.f32.mrb[0].mxu0
      %v1656 = vpop.f32.mrb[0].mxu0
      %v1657 = vadd.f32 0.0, %v1656
      %v1658 = vpop.f32.mrb[0].mxu0
      %1659 = vmatprep.mubr.bf16.mxu0 0
      %1660 = vmatmul.mubr.bf16.gmra.mrb[0].mxu0 %v1526
      %v1661 = vpop.f32.mrb[0].mxu0
      %v1662 = vadd.f32 0.0, %v1661
      %v1663 = vpop.f32.mrb[0].mxu0
      %v1664 = vpop.f32.mrb[0].mxu0
      %v1665 = vadd.f32 0.0, %v1664
      %v1666 = vpop.f32.mrb[0].mxu0
      %1667 = vmatprep.mubr.bf16.mxu0 0
      %1668 = vmatmul.mubr.bf16.gmra.mrb[0].mxu0 %v1527
      %v1669 = vpop.f32.mrb[0].mxu0
      %v1670 = vadd.f32 0.0, %v1669
      %v1671 = vpop.f32.mrb[0].mxu0
      %v1672 = vpop.f32.mrb[0].mxu0
      %v1673 = vadd.f32 0.0, %v1672
      %v1674 = vpop.f32.mrb[0].mxu0
      %1675 = vmatprep.mubr.bf16.mxu0 0
      %1676 = vmatmul.mubr.bf16.gmra.mrb[0].mxu0 %v1528
      %v1677 = vpop.f32.mrb[0].mxu0
      %v1678 = vadd.f32 0.0, %v1677
      %v1679 = vpop.f32.mrb[0].mxu0
      %v1680 = vpop.f32.mrb[0].mxu0
      %v1681 = vadd.f32 0.0, %v1680
      %v1682 = vpop.f32.mrb[0].mxu0
      %1683 = vmatprep.mubr.bf16.mxu0 0
      %1684 = vmatmul.mubr.bf16.gmra.mrb[0].mxu0 %v1529
      %v1685 = vpop.f32.mrb[0].mxu0
      %v1686 = vadd.f32 0.0, %v1685
      %v1687 = vpop.f32.mrb[0].mxu0
      %v1688 = vpop.f32.mrb[0].mxu0
      %v1689 = vadd.f32 0.0, %v1688
      %v1690 = vpop.f32.mrb[0].mxu0
      %1691 = vmatprep.mubr.bf16.mxu0 0
      %1692 = vmatmul.mubr.bf16.gmra.mrb[0].mxu0 %v1530
      %v1693 = vpop.f32.mrb[0].mxu0
      %v1694 = vadd.f32 0.0, %v1693
      %v1695 = vpop.f32.mrb[0].mxu0
      %v1696 = vpop.f32.mrb[0].mxu0
      %v1697 = vadd.f32 0.0, %v1696
      %v1698 = vpop.f32.mrb[0].mxu0
      %1699 = vmatprep.mubr.bf16.mxu0 0
      %1700 = vmatmul.mubr.bf16.gmra.mrb[0].mxu0 %v1531
      %v1701 = vpop.f32.mrb[0].mxu0
      %v1702 = vadd.f32 0.0, %v1701
      %v1703 = vpop.f32.mrb[0].mxu0
      %v1704 = vpop.f32.mrb[0].mxu0
      %v1705 = vadd.f32 0.0, %v1704
      %v1706 = vpop.f32.mrb[0].mxu0
      %1707 = vmatprep.mubr.bf16.mxu0 0
      %1708 = vmatmul.mubr.bf16.gmra.mrb[0].mxu0 %v1532
      %v1709 = vpop.f32.mrb[0].mxu0
      %v1710 = vadd.f32 0.0, %v1709
      %v1711 = vpop.f32.mrb[0].mxu0
      %v1712 = vpop.f32.mrb[0].mxu0
      %v1713 = vadd.f32 0.0, %v1712
      %v1714 = vpop.f32.mrb[0].mxu0
      %1715 = vmatprep.mubr.bf16.mxu0 0
      %1716 = vmatmul.mubr.bf16.gmra.mrb[0].mxu0 %v1533
      %v1717 = vpop.f32.mrb[0].mxu0
      %v1718 = vadd.f32 0.0, %v1717
      %v1719 = vpop.f32.mrb[0].mxu0
      %v1720 = vpop.f32.mrb[0].mxu0
      %v1721 = vadd.f32 0.0, %v1720
      %v1722 = vpop.f32.mrb[0].mxu0
      %1723 = vmatprep.mubr.bf16.mxu0 0
      %1724 = vmatmul.mubr.bf16.gmra.mrb[0].mxu0 %v1534
      %v1725 = vpop.f32.mrb[0].mxu0
      %v1726 = vadd.f32 0.0, %v1725
      %v1727 = vpop.f32.mrb[0].mxu0
      %v1728 = vpop.f32.mrb[0].mxu0
      %v1729 = vadd.f32 0.0, %v1728
      %v1730 = vpop.f32.mrb[0].mxu0
      %1731 = vmatprep.mubr.bf16.mxu0 0
      %1732 = vmatmul.mubr.bf16.gmra.mrb[0].mxu0 %v1535
      %v1733 = vpop.f32.mrb[0].mxu0
      %v1734 = vadd.f32 0.0, %v1733
      %v1735 = vpop.f32.mrb[0].mxu0
      %v1736 = vpop.f32.mrb[0].mxu0
      %v1737 = vadd.f32 0.0, %v1736
      %v1738 = vpop.f32.mrb[0].mxu0
      %1739 = vmatprep.mubr.bf16.mxu0 0
      %1740 = vmatmul.mubr.bf16.gmra.mrb[0].mxu0 %v1536
      %v1741 = vpop.f32.mrb[0].mxu0
      %v1742 = vadd.f32 0.0, %v1741
      %v1743 = vpop.f32.mrb[0].mxu0
      %v1744 = vpop.f32.mrb[0].mxu0
      %v1745 = vadd.f32 0.0, %v1744
      %v1746 = vpop.f32.mrb[0].mxu0
      %1747 = vmatprep.mubr.bf16.mxu0 0
      %1748 = vmatmul.mubr.bf16.gmra.mrb[0].mxu0 %v1537
      %v1749 = vpop.f32.mrb[0].mxu0
      %v1750 = vadd.f32 0.0, %v1749
      %v1751 = vpop.f32.mrb[0].mxu0
      %v1752 = vpop.f32.mrb[0].mxu0
      %v1753 = vadd.f32 0.0, %v1752
      %v1754 = vpop.f32.mrb[0].mxu0
      %1755 = vdwg.mxu0
      %v1756 = vadd.f32 %v1493, %v1638
      %v1757 = vadd.f32 %v1494, %v1641
      %v1758 = vadd.f32 %v1495, %v1646
      %v1759 = vadd.f32 %v1496, %v1649
      %v1760 = vadd.f32 %v1497, %v1654
      %v1761 = vadd.f32 %v1498, %v1657
      %v1762 = vadd.f32 %v1499, %v1662
      %v1763 = vadd.f32 %v1500, %v1665
      %v1764 = vadd.f32 %v1501, %v1670
      %v1765 = vadd.f32 %v1502, %v1673
      %v1766 = vadd.f32 %v1503, %v1678
      %v1767 = vadd.f32 %v1504, %v1681
      %v1768 = vadd.f32 %v1505, %v1686
      %v1769 = vadd.f32 %v1506, %v1689
      %v1770 = vadd.f32 %v1507, %v1694
      %v1771 = vadd.f32 %v1508, %v1697
      %v1772 = vadd.f32 %v1509, %v1702
      %v1773 = vadd.f32 %v1510, %v1705
      %v1774 = vadd.f32 %v1511, %v1710
      %v1775 = vadd.f32 %v1512, %v1713
      %v1776 = vadd.f32 %v1513, %v1718
      %v1777 = vadd.f32 %v1514, %v1721
      %v1778 = vadd.f32 %v1515, %v1726
      %v1779 = vadd.f32 %v1516, %v1729
      %v1780 = vadd.f32 %v1517, %v1734
      %v1781 = vadd.f32 %v1518, %v1737
      %v1782 = vadd.f32 %v1519, %v1742
      %v1783 = vadd.f32 %v1520, %v1745
      %v1784 = vadd.f32 %v1521, %v1750
      %v1785 = vadd.f32 %v1522, %v1753
      %v1786 = vpack.c.bf16 %v1255, %v1254
      %v1787 = vpack.c.bf16 %v1257, %v1256
      %v1788 = vpack.c.bf16 %v1259, %v1258
      %s1789 = scalar_lea.vmem %s2, 448
      %v1790 = vld [vmem:[%s1789] sm:$0xf]
      %v1791 = vld [vmem:[%s1789 + $0x4] sm:$0xf]
      %v1792 = vld [vmem:[%s1789 + $0x8] sm:$0xf]
      %v1793 = vld [vmem:[%s1789 + $0xc] sm:$0xf]
      %v1794 = vld [vmem:[%s1789 + $0x10] sm:$0xf]
      %v1795 = vld [vmem:[%s1789 + $0x14] sm:$0xf]
      %v1796 = vld [vmem:[%s1789 + $0x18] sm:$0xf]
      %v1797 = vld [vmem:[%s1789 + $0x1c] sm:$0xf]
      %v1798 = vld [vmem:[%s1789 + $0x20] sm:$0xf]
      %v1799 = vld [vmem:[%s1789 + $0x24] sm:$0xf]
      %v1800 = vld [vmem:[%s1789 + $0x28] sm:$0xf]
      %v1801 = vld [vmem:[%s1789 + $0x2c] sm:$0xf]
      %v1802 = vld [vmem:[%s1789 + $0x30] sm:$0xf]
      %v1803 = vld [vmem:[%s1789 + $0x34] sm:$0xf]
      %v1804 = vld [vmem:[%s1789 + $0x38] sm:$0xf]
      %v1805 = vld [vmem:[%s1789 + $0x3c] sm:$0xf]
      %v1822 = vunpack.c.l.b16 %v1790
      %v1823 = vunpack.c.l.b16 %v1791
      %v1824 = vunpack.c.l.b16 %v1792
      %v1825 = vunpack.c.l.b16 %v1793
      %v1826 = vunpack.c.l.b16 %v1794
      %v1827 = vunpack.c.l.b16 %v1795
      %v1828 = vunpack.c.l.b16 %v1796
      %v1829 = vunpack.c.l.b16 %v1797
      %v1830 = vunpack.c.l.b16 %v1798
      %v1831 = vunpack.c.l.b16 %v1799
      %v1832 = vunpack.c.l.b16 %v1800
      %v1833 = vunpack.c.l.b16 %v1801
      %v1834 = vunpack.c.l.b16 %v1802
      %v1835 = vunpack.c.l.b16 %v1803
      %v1836 = vunpack.c.l.b16 %v1804
      %v1837 = vunpack.c.l.b16 %v1805
      %v1838 = vpack.c.b16 %v1823, %v1822
      %v1839 = vpack.c.b16 %v1825, %v1824
      %v1840 = vpack.c.b16 %v1827, %v1826
      %v1841 = vpack.c.b16 %v1829, %v1828
      %v1842 = vpack.c.b16 %v1831, %v1830
      %v1843 = vpack.c.b16 %v1833, %v1832
      %v1844 = vpack.c.b16 %v1835, %v1834
      %v1845 = vpack.c.b16 %v1837, %v1836
      %1854 = vmatprep.subr.bf16.mxu0 0
      %1855 = vmatpush1.bf16.msra.mxu0 %v1838
      %1856 = vmatprep.subr.bf16.mxu0 0
      %1857 = vmatpush1.bf16.msra.mxu0 %v1839
      %1858 = vmatprep.subr.bf16.mxu0 0
      %1859 = vmatpush1.bf16.msra.mxu0 %v1840
      %1860 = vmatprep.subr.bf16.mxu0 0
      %1861 = vmatpush1.bf16.msra.mxu0 %v1841
      %1862 = vmatprep.subr.bf16.mxu0 0
      %1863 = vmatpush1.bf16.msra.mxu0 %v1842
      %1864 = vmatprep.subr.bf16.mxu0 0
      %1865 = vmatpush1.bf16.msra.mxu0 %v1843
      %1866 = vmatprep.subr.bf16.mxu0 0
      %1867 = vmatpush1.bf16.msra.mxu0 %v1844
      %1868 = vmatprep.subr.bf16.mxu0 0
      %1869 = vmatpush1.bf16.msra.mxu0 %v1845
      %1870 = vmatprep.subr.bf16.mxu0 0
      %1871 = vmatpush1.bf16.msra.mxu0 0
      %1872 = vmatprep.subr.bf16.mxu0 0
      %1873 = vmatpush1.bf16.msra.mxu0 0
      %1874 = vmatprep.subr.bf16.mxu0 0
      %1875 = vmatpush1.bf16.msra.mxu0 0
      %1876 = vmatprep.subr.bf16.mxu0 0
      %1877 = vmatpush1.bf16.msra.mxu0 0
      %1878 = vmatprep.subr.bf16.mxu0 0
      %1879 = vmatpush1.bf16.msra.mxu0 0
      %1880 = vmatprep.subr.bf16.mxu0 0
      %1881 = vmatpush1.bf16.msra.mxu0 0
      %1882 = vmatprep.subr.bf16.mxu0 0
      %1883 = vmatpush1.bf16.msra.mxu0 0
      %1884 = vmatprep.subr.bf16.mxu0 0
      %1885 = vmatpush1.bf16.msra.mxu0 0
      %1886 = vmatprep.mubr.bf16.mxu0 0
      %1887 = vmatmul.mubr.bf16.gmra.mrb[0].mxu0 %v1263
      %v1888 = vpop.f32.mrb[0].mxu0
      %v1889 = vadd.f32 0.0, %v1888
      %v1890 = vpop.f32.mrb[0].mxu0
      %v1891 = vpop.f32.mrb[0].mxu0
      %v1892 = vadd.f32 0.0, %v1891
      %v1893 = vpop.f32.mrb[0].mxu0
      %1894 = vmatprep.mubr.bf16.mxu0 0
      %1895 = vmatmul.mubr.bf16.gmra.mrb[0].mxu0 %v1264
      %v1896 = vpop.f32.mrb[0].mxu0
      %v1897 = vadd.f32 0.0, %v1896
      %v1898 = vpop.f32.mrb[0].mxu0
      %v1899 = vpop.f32.mrb[0].mxu0
      %v1900 = vadd.f32 0.0, %v1899
      %v1901 = vpop.f32.mrb[0].mxu0
      %1902 = vmatprep.mubr.bf16.mxu0 0
      %1903 = vmatmul.mubr.bf16.gmra.mrb[0].mxu0 %v1265
      %v1904 = vpop.f32.mrb[0].mxu0
      %v1905 = vadd.f32 0.0, %v1904
      %v1906 = vpop.f32.mrb[0].mxu0
      %v1907 = vpop.f32.mrb[0].mxu0
      %v1908 = vadd.f32 0.0, %v1907
      %v1909 = vpop.f32.mrb[0].mxu0
      %1910 = vmatprep.mubr.bf16.mxu0 0
      %1911 = vmatmul.mubr.bf16.gmra.mrb[0].mxu0 %v1266
      %v1912 = vpop.f32.mrb[0].mxu0
      %v1913 = vadd.f32 0.0, %v1912
      %v1914 = vpop.f32.mrb[0].mxu0
      %v1915 = vpop.f32.mrb[0].mxu0
      %v1916 = vadd.f32 0.0, %v1915
      %v1917 = vpop.f32.mrb[0].mxu0
      %1918 = vmatprep.mubr.bf16.mxu0 0
      %1919 = vmatmul.mubr.bf16.gmra.mrb[0].mxu0 %v1267
      %v1920 = vpop.f32.mrb[0].mxu0
      %v1921 = vadd.f32 0.0, %v1920
      %v1922 = vpop.f32.mrb[0].mxu0
      %v1923 = vpop.f32.mrb[0].mxu0
      %v1924 = vadd.f32 0.0, %v1923
      %v1925 = vpop.f32.mrb[0].mxu0
      %1926 = vmatprep.mubr.bf16.mxu0 0
      %1927 = vmatmul.mubr.bf16.gmra.mrb[0].mxu0 %v1268
      %v1928 = vpop.f32.mrb[0].mxu0
      %v1929 = vadd.f32 0.0, %v1928
      %v1930 = vpop.f32.mrb[0].mxu0
      %v1931 = vpop.f32.mrb[0].mxu0
      %v1932 = vadd.f32 0.0, %v1931
      %v1933 = vpop.f32.mrb[0].mxu0
      %1934 = vmatprep.mubr.bf16.mxu0 0
      %1935 = vmatmul.mubr.bf16.gmra.mrb[0].mxu0 %v1269
      %v1936 = vpop.f32.mrb[0].mxu0
      %v1937 = vadd.f32 0.0, %v1936
      %v1938 = vpop.f32.mrb[0].mxu0
      %v1939 = vpop.f32.mrb[0].mxu0
      %v1940 = vadd.f32 0.0, %v1939
      %v1941 = vpop.f32.mrb[0].mxu0
      %1942 = vmatprep.mubr.bf16.mxu0 0
      %1943 = vmatmul.mubr.bf16.gmra.mrb[0].mxu0 %v1270
      %v1944 = vpop.f32.mrb[0].mxu0
      %v1945 = vadd.f32 0.0, %v1944
      %v1946 = vpop.f32.mrb[0].mxu0
      %v1947 = vpop.f32.mrb[0].mxu0
      %v1948 = vadd.f32 0.0, %v1947
      %v1949 = vpop.f32.mrb[0].mxu0
      %1950 = vmatprep.mubr.bf16.mxu0 0
      %1951 = vmatmul.mubr.bf16.gmra.mrb[0].mxu0 %v1271
      %v1952 = vpop.f32.mrb[0].mxu0
      %v1953 = vadd.f32 0.0, %v1952
      %v1954 = vpop.f32.mrb[0].mxu0
      %v1955 = vpop.f32.mrb[0].mxu0
      %v1956 = vadd.f32 0.0, %v1955
      %v1957 = vpop.f32.mrb[0].mxu0
      %1958 = vmatprep.mubr.bf16.mxu0 0
      %1959 = vmatmul.mubr.bf16.gmra.mrb[0].mxu0 %v1272
      %v1960 = vpop.f32.mrb[0].mxu0
      %v1961 = vadd.f32 0.0, %v1960
      %v1962 = vpop.f32.mrb[0].mxu0
      %v1963 = vpop.f32.mrb[0].mxu0
      %v1964 = vadd.f32 0.0, %v1963
      %v1965 = vpop.f32.mrb[0].mxu0
      %1966 = vmatprep.mubr.bf16.mxu0 0
      %1967 = vmatmul.mubr.bf16.gmra.mrb[0].mxu0 %v1273
      %v1968 = vpop.f32.mrb[0].mxu0
      %v1969 = vadd.f32 0.0, %v1968
      %v1970 = vpop.f32.mrb[0].mxu0
      %v1971 = vpop.f32.mrb[0].mxu0
      %v1972 = vadd.f32 0.0, %v1971
      %v1973 = vpop.f32.mrb[0].mxu0
      %1974 = vmatprep.mubr.bf16.mxu0 0
      %1975 = vmatmul.mubr.bf16.gmra.mrb[0].mxu0 %v1274
      %v1976 = vpop.f32.mrb[0].mxu0
      %v1977 = vadd.f32 0.0, %v1976
      %v1978 = vpop.f32.mrb[0].mxu0
      %v1979 = vpop.f32.mrb[0].mxu0
      %v1980 = vadd.f32 0.0, %v1979
      %v1981 = vpop.f32.mrb[0].mxu0
      %1982 = vmatprep.mubr.bf16.mxu0 0
      %1983 = vmatmul.mubr.bf16.gmra.mrb[0].mxu0 %v1786
      %v1984 = vpop.f32.mrb[0].mxu0
      %v1985 = vadd.f32 0.0, %v1984
      %v1986 = vpop.f32.mrb[0].mxu0
      %v1987 = vpop.f32.mrb[0].mxu0
      %v1988 = vadd.f32 0.0, %v1987
      %v1989 = vpop.f32.mrb[0].mxu0
      %1990 = vmatprep.mubr.bf16.mxu0 0
      %1991 = vmatmul.mubr.bf16.gmra.mrb[0].mxu0 %v1787
      %v1992 = vpop.f32.mrb[0].mxu0
      %v1993 = vadd.f32 0.0, %v1992
      %v1994 = vpop.f32.mrb[0].mxu0
      %v1995 = vpop.f32.mrb[0].mxu0
      %v1996 = vadd.f32 0.0, %v1995
      %v1997 = vpop.f32.mrb[0].mxu0
      %1998 = vmatprep.mubr.bf16.mxu0 0
      %1999 = vmatmul.mubr.bf16.gmra.mrb[0].mxu0 %v1788
      %v2000 = vpop.f32.mrb[0].mxu0
      %v2001 = vadd.f32 0.0, %v2000
      %v2002 = vpop.f32.mrb[0].mxu0
      %v2003 = vpop.f32.mrb[0].mxu0
      %v2004 = vadd.f32 0.0, %v2003
      %v2005 = vpop.f32.mrb[0].mxu0
      %2006 = vdwg.mxu0
      %v2007 = vadd.f32 %v1756, %v1889
      %v2008 = vadd.f32 %v1757, %v1892
      %v2009 = vadd.f32 %v1758, %v1897
      %v2010 = vadd.f32 %v1759, %v1900
      %v2011 = vadd.f32 %v1760, %v1905
      %v2012 = vadd.f32 %v1761, %v1908
      %v2013 = vadd.f32 %v1762, %v1913
      %v2014 = vadd.f32 %v1763, %v1916
      %v2015 = vadd.f32 %v1764, %v1921
      %v2016 = vadd.f32 %v1765, %v1924
      %v2017 = vadd.f32 %v1766, %v1929
      %v2018 = vadd.f32 %v1767, %v1932
      %v2019 = vadd.f32 %v1768, %v1937
      %v2020 = vadd.f32 %v1769, %v1940
      %v2021 = vadd.f32 %v1770, %v1945
      %v2022 = vadd.f32 %v1771, %v1948
      %v2023 = vadd.f32 %v1772, %v1953
      %v2024 = vadd.f32 %v1773, %v1956
      %v2025 = vadd.f32 %v1774, %v1961
      %v2026 = vadd.f32 %v1775, %v1964
      %v2027 = vadd.f32 %v1776, %v1969
      %v2028 = vadd.f32 %v1777, %v1972
      %v2029 = vadd.f32 %v1778, %v1977
      %v2030 = vadd.f32 %v1779, %v1980
      %v2031 = vadd.f32 %v1780, %v1985
      %v2032 = vadd.f32 %v1781, %v1988
      %v2033 = vadd.f32 %v1782, %v1993
      %v2034 = vadd.f32 %v1783, %v1996
      %v2035 = vadd.f32 %v1784, %v2001
      %v2036 = vadd.f32 %v1785, %v2004
      %v2037 = vld [vmem:[#allocation2 + $0x2] sm:$0xff]
      %v2038 = vld [vmem:[#allocation2 + $0xa] sm:$0xff]
      %v2039 = vld [vmem:[#allocation2 + $0x12] sm:$0xff]
      %v2040 = vld [vmem:[#allocation2 + $0x22] sm:$0xff]
      %v2041 = vld [vmem:[#allocation2 + $0x2a] sm:$0xff]
      %v2042 = vld [vmem:[#allocation2 + $0x32] sm:$0xff]
      %v2043 = vld [vmem:[#allocation2 + $0x42] sm:$0xff]
      %v2044 = vld [vmem:[#allocation2 + $0x4a] sm:$0xff]
      %v2045 = vld [vmem:[#allocation2 + $0x52] sm:$0xff]
      %v2046 = vld [vmem:[#allocation2 + $0x62] sm:$0xff]
      %v2047 = vld [vmem:[#allocation2 + $0x6a] sm:$0xff]
      %v2048 = vld [vmem:[#allocation2 + $0x72] sm:$0xff]
      %v2049 = vld [vmem:[#allocation2 + $0x82] sm:$0xff]
      %v2050 = vld [vmem:[#allocation2 + $0x8a] sm:$0xff]
      %v2051 = vld [vmem:[#allocation2 + $0x92] sm:$0xff]
      %v2052 = vld [vmem:[#allocation2 + $0xa2] sm:$0xff]
      %v2053 = vld [vmem:[#allocation2 + $0xaa] sm:$0xff]
      %v2054 = vld [vmem:[#allocation2 + $0xb2] sm:$0xff]
      %v2055 = vld [vmem:[#allocation2 + $0xc2] sm:$0xff]
      %v2056 = vld [vmem:[#allocation2 + $0xca] sm:$0xff]
      %v2057 = vld [vmem:[#allocation2 + $0xd2] sm:$0xff]
      %v2058 = vld [vmem:[#allocation2 + $0xe2] sm:$0xff]
      %v2059 = vld [vmem:[#allocation2 + $0xea] sm:$0xff]
      %v2060 = vld [vmem:[#allocation2 + $0xf2] sm:$0xff]
      %v2061 = vld [vmem:[#allocation2 + $0x102] sm:$0xff]
      %v2062 = vld [vmem:[#allocation2 + $0x10a] sm:$0xff]
      %v2063 = vld [vmem:[#allocation2 + $0x112] sm:$0xff]
      %v2064 = vld [vmem:[#allocation2 + $0x122] sm:$0xff]
      %v2065 = vld [vmem:[#allocation2 + $0x12a] sm:$0xff]
      %v2066 = vld [vmem:[#allocation2 + $0x132] sm:$0xff]
      %v2067 = vld [vmem:[#allocation2 + $0x142] sm:$0xff]
      %v2068 = vld [vmem:[#allocation2 + $0x14a] sm:$0xff]
      %v2069 = vld [vmem:[#allocation2 + $0x152] sm:$0xff]
      %v2070 = vld [vmem:[#allocation2 + $0x162] sm:$0xff]
      %v2071 = vld [vmem:[#allocation2 + $0x16a] sm:$0xff]
      %v2072 = vld [vmem:[#allocation2 + $0x172] sm:$0xff]
      %v2073 = vpack.c.bf16 %v2038, %v2037
      %v2074 = vpack.c.bf16 %v2040, %v2039
      %v2075 = vpack.c.bf16 %v2042, %v2041
      %v2076 = vpack.c.bf16 %v2044, %v2043
      %v2077 = vpack.c.bf16 %v2046, %v2045
      %v2078 = vpack.c.bf16 %v2048, %v2047
      %v2079 = vpack.c.bf16 %v2050, %v2049
      %v2080 = vpack.c.bf16 %v2052, %v2051
      %v2081 = vpack.c.bf16 %v2054, %v2053
      %v2082 = vpack.c.bf16 %v2056, %v2055
      %v2083 = vpack.c.bf16 %v2058, %v2057
      %v2084 = vpack.c.bf16 %v2060, %v2059
      %v2085 = vpack.c.bf16 %v2062, %v2061
      %v2086 = vpack.c.bf16 %v2064, %v2063
      %v2087 = vpack.c.bf16 %v2066, %v2065
      %s2088 = scalar_lea.vmem %s2, 128
      %v2089 = vld [vmem:[%s2088] sm:$0xf]
      %v2090 = vld [vmem:[%s2088 + $0x4] sm:$0xf]
      %v2091 = vld [vmem:[%s2088 + $0x8] sm:$0xf]
      %v2092 = vld [vmem:[%s2088 + $0xc] sm:$0xf]
      %v2093 = vld [vmem:[%s2088 + $0x10] sm:$0xf]
      %v2094 = vld [vmem:[%s2088 + $0x14] sm:$0xf]
      %v2095 = vld [vmem:[%s2088 + $0x18] sm:$0xf]
      %v2096 = vld [vmem:[%s2088 + $0x1c] sm:$0xf]
      %v2097 = vld [vmem:[%s2088 + $0x20] sm:$0xf]
      %v2098 = vld [vmem:[%s2088 + $0x24] sm:$0xf]
      %v2099 = vld [vmem:[%s2088 + $0x28] sm:$0xf]
      %v2100 = vld [vmem:[%s2088 + $0x2c] sm:$0xf]
      %v2101 = vld [vmem:[%s2088 + $0x30] sm:$0xf]
      %v2102 = vld [vmem:[%s2088 + $0x34] sm:$0xf]
      %v2103 = vld [vmem:[%s2088 + $0x38] sm:$0xf]
      %v2104 = vld [vmem:[%s2088 + $0x3c] sm:$0xf]
      %v2121 = vunpack.c.l.b16 %v2089
      %v2122 = vunpack.c.l.b16 %v2090
      %v2123 = vunpack.c.l.b16 %v2091
      %v2124 = vunpack.c.l.b16 %v2092
      %v2125 = vunpack.c.l.b16 %v2093
      %v2126 = vunpack.c.l.b16 %v2094
      %v2127 = vunpack.c.l.b16 %v2095
      %v2128 = vunpack.c.l.b16 %v2096
      %v2129 = vunpack.c.l.b16 %v2097
      %v2130 = vunpack.c.l.b16 %v2098
      %v2131 = vunpack.c.l.b16 %v2099
      %v2132 = vunpack.c.l.b16 %v2100
      %v2133 = vunpack.c.l.b16 %v2101
      %v2134 = vunpack.c.l.b16 %v2102
      %v2135 = vunpack.c.l.b16 %v2103
      %v2136 = vunpack.c.l.b16 %v2104
      %v2137 = vpack.c.b16 %v2122, %v2121
      %v2138 = vpack.c.b16 %v2124, %v2123
      %v2139 = vpack.c.b16 %v2126, %v2125
      %v2140 = vpack.c.b16 %v2128, %v2127
      %v2141 = vpack.c.b16 %v2130, %v2129
      %v2142 = vpack.c.b16 %v2132, %v2131
      %v2143 = vpack.c.b16 %v2134, %v2133
      %v2144 = vpack.c.b16 %v2136, %v2135
      %2153 = vmatprep.subr.bf16.mxu0 0
      %2154 = vmatpush1.bf16.msra.mxu0 %v2137
      %2155 = vmatprep.subr.bf16.mxu0 0
      %2156 = vmatpush1.bf16.msra.mxu0 %v2138
      %2157 = vmatprep.subr.bf16.mxu0 0
      %2158 = vmatpush1.bf16.msra.mxu0 %v2139
      %2159 = vmatprep.subr.bf16.mxu0 0
      %2160 = vmatpush1.bf16.msra.mxu0 %v2140
      %2161 = vmatprep.subr.bf16.mxu0 0
      %2162 = vmatpush1.bf16.msra.mxu0 %v2141
      %2163 = vmatprep.subr.bf16.mxu0 0
      %2164 = vmatpush1.bf16.msra.mxu0 %v2142
      %2165 = vmatprep.subr.bf16.mxu0 0
      %2166 = vmatpush1.bf16.msra.mxu0 %v2143
      %2167 = vmatprep.subr.bf16.mxu0 0
      %2168 = vmatpush1.bf16.msra.mxu0 %v2144
      %2169 = vmatprep.subr.bf16.mxu0 0
      %2170 = vmatpush1.bf16.msra.mxu0 0
      %2171 = vmatprep.subr.bf16.mxu0 0
      %2172 = vmatpush1.bf16.msra.mxu0 0
      %2173 = vmatprep.subr.bf16.mxu0 0
      %2174 = vmatpush1.bf16.msra.mxu0 0
      %2175 = vmatprep.subr.bf16.mxu0 0
      %2176 = vmatpush1.bf16.msra.mxu0 0
      %2177 = vmatprep.subr.bf16.mxu0 0
      %2178 = vmatpush1.bf16.msra.mxu0 0
      %2179 = vmatprep.subr.bf16.mxu0 0
      %2180 = vmatpush1.bf16.msra.mxu0 0
      %2181 = vmatprep.subr.bf16.mxu0 0
      %2182 = vmatpush1.bf16.msra.mxu0 0
      %2183 = vmatprep.subr.bf16.mxu0 0
      %2184 = vmatpush1.bf16.msra.mxu0 0
      %2185 = vmatprep.mubr.bf16.mxu0 0
      %2186 = vmatmul.mubr.bf16.gmra.mrb[0].mxu0 %v2073
      %v2187 = vpop.f32.mrb[0].mxu0
      %v2188 = vadd.f32 0.0, %v2187
      %v2189 = vpop.f32.mrb[0].mxu0
      %v2190 = vpop.f32.mrb[0].mxu0
      %v2191 = vadd.f32 0.0, %v2190
      %v2192 = vpop.f32.mrb[0].mxu0
      %2193 = vmatprep.mubr.bf16.mxu0 0
      %2194 = vmatmul.mubr.bf16.gmra.mrb[0].mxu0 %v2074
      %v2195 = vpop.f32.mrb[0].mxu0
      %v2196 = vadd.f32 0.0, %v2195
      %v2197 = vpop.f32.mrb[0].mxu0
      %v2198 = vpop.f32.mrb[0].mxu0
      %v2199 = vadd.f32 0.0, %v2198
      %v2200 = vpop.f32.mrb[0].mxu0
      %2201 = vmatprep.mubr.bf16.mxu0 0
      %2202 = vmatmul.mubr.bf16.gmra.mrb[0].mxu0 %v2075
      %v2203 = vpop.f32.mrb[0].mxu0
      %v2204 = vadd.f32 0.0, %v2203
      %v2205 = vpop.f32.mrb[0].mxu0
      %v2206 = vpop.f32.mrb[0].mxu0
      %v2207 = vadd.f32 0.0, %v2206
      %v2208 = vpop.f32.mrb[0].mxu0
      %2209 = vmatprep.mubr.bf16.mxu0 0
      %2210 = vmatmul.mubr.bf16.gmra.mrb[0].mxu0 %v2076
      %v2211 = vpop.f32.mrb[0].mxu0
      %v2212 = vadd.f32 0.0, %v2211
      %v2213 = vpop.f32.mrb[0].mxu0
      %v2214 = vpop.f32.mrb[0].mxu0
      %v2215 = vadd.f32 0.0, %v2214
      %v2216 = vpop.f32.mrb[0].mxu0
      %2217 = vmatprep.mubr.bf16.mxu0 0
      %2218 = vmatmul.mubr.bf16.gmra.mrb[0].mxu0 %v2077
      %v2219 = vpop.f32.mrb[0].mxu0
      %v2220 = vadd.f32 0.0, %v2219
      %v2221 = vpop.f32.mrb[0].mxu0
      %v2222 = vpop.f32.mrb[0].mxu0
      %v2223 = vadd.f32 0.0, %v2222
      %v2224 = vpop.f32.mrb[0].mxu0
      %2225 = vmatprep.mubr.bf16.mxu0 0
      %2226 = vmatmul.mubr.bf16.gmra.mrb[0].mxu0 %v2078
      %v2227 = vpop.f32.mrb[0].mxu0
      %v2228 = vadd.f32 0.0, %v2227
      %v2229 = vpop.f32.mrb[0].mxu0
      %v2230 = vpop.f32.mrb[0].mxu0
      %v2231 = vadd.f32 0.0, %v2230
      %v2232 = vpop.f32.mrb[0].mxu0
      %2233 = vmatprep.mubr.bf16.mxu0 0
      %2234 = vmatmul.mubr.bf16.gmra.mrb[0].mxu0 %v2079
      %v2235 = vpop.f32.mrb[0].mxu0
      %v2236 = vadd.f32 0.0, %v2235
      %v2237 = vpop.f32.mrb[0].mxu0
      %v2238 = vpop.f32.mrb[0].mxu0
      %v2239 = vadd.f32 0.0, %v2238
      %v2240 = vpop.f32.mrb[0].mxu0
      %2241 = vmatprep.mubr.bf16.mxu0 0
      %2242 = vmatmul.mubr.bf16.gmra.mrb[0].mxu0 %v2080
      %v2243 = vpop.f32.mrb[0].mxu0
      %v2244 = vadd.f32 0.0, %v2243
      %v2245 = vpop.f32.mrb[0].mxu0
      %v2246 = vpop.f32.mrb[0].mxu0
      %v2247 = vadd.f32 0.0, %v2246
      %v2248 = vpop.f32.mrb[0].mxu0
      %2249 = vmatprep.mubr.bf16.mxu0 0
      %2250 = vmatmul.mubr.bf16.gmra.mrb[0].mxu0 %v2081
      %v2251 = vpop.f32.mrb[0].mxu0
      %v2252 = vadd.f32 0.0, %v2251
      %v2253 = vpop.f32.mrb[0].mxu0
      %v2254 = vpop.f32.mrb[0].mxu0
      %v2255 = vadd.f32 0.0, %v2254
      %v2256 = vpop.f32.mrb[0].mxu0
      %2257 = vmatprep.mubr.bf16.mxu0 0
      %2258 = vmatmul.mubr.bf16.gmra.mrb[0].mxu0 %v2082
      %v2259 = vpop.f32.mrb[0].mxu0
      %v2260 = vadd.f32 0.0, %v2259
      %v2261 = vpop.f32.mrb[0].mxu0
      %v2262 = vpop.f32.mrb[0].mxu0
      %v2263 = vadd.f32 0.0, %v2262
      %v2264 = vpop.f32.mrb[0].mxu0
      %2265 = vmatprep.mubr.bf16.mxu0 0
      %2266 = vmatmul.mubr.bf16.gmra.mrb[0].mxu0 %v2083
      %v2267 = vpop.f32.mrb[0].mxu0
      %v2268 = vadd.f32 0.0, %v2267
      %v2269 = vpop.f32.mrb[0].mxu0
      %v2270 = vpop.f32.mrb[0].mxu0
      %v2271 = vadd.f32 0.0, %v2270
      %v2272 = vpop.f32.mrb[0].mxu0
      %2273 = vmatprep.mubr.bf16.mxu0 0
      %2274 = vmatmul.mubr.bf16.gmra.mrb[0].mxu0 %v2084
      %v2275 = vpop.f32.mrb[0].mxu0
      %v2276 = vadd.f32 0.0, %v2275
      %v2277 = vpop.f32.mrb[0].mxu0
      %v2278 = vpop.f32.mrb[0].mxu0
      %v2279 = vadd.f32 0.0, %v2278
      %v2280 = vpop.f32.mrb[0].mxu0
      %2281 = vmatprep.mubr.bf16.mxu0 0
      %2282 = vmatmul.mubr.bf16.gmra.mrb[0].mxu0 %v2085
      %v2283 = vpop.f32.mrb[0].mxu0
      %v2284 = vadd.f32 0.0, %v2283
      %v2285 = vpop.f32.mrb[0].mxu0
      %v2286 = vpop.f32.mrb[0].mxu0
      %v2287 = vadd.f32 0.0, %v2286
      %v2288 = vpop.f32.mrb[0].mxu0
      %2289 = vmatprep.mubr.bf16.mxu0 0
      %2290 = vmatmul.mubr.bf16.gmra.mrb[0].mxu0 %v2086
      %v2291 = vpop.f32.mrb[0].mxu0
      %v2292 = vadd.f32 0.0, %v2291
      %v2293 = vpop.f32.mrb[0].mxu0
      %v2294 = vpop.f32.mrb[0].mxu0
      %v2295 = vadd.f32 0.0, %v2294
      %v2296 = vpop.f32.mrb[0].mxu0
      %2297 = vmatprep.mubr.bf16.mxu0 0
      %2298 = vmatmul.mubr.bf16.gmra.mrb[0].mxu0 %v2087
      %v2299 = vpop.f32.mrb[0].mxu0
      %v2300 = vadd.f32 0.0, %v2299
      %v2301 = vpop.f32.mrb[0].mxu0
      %v2302 = vpop.f32.mrb[0].mxu0
      %v2303 = vadd.f32 0.0, %v2302
      %v2304 = vpop.f32.mrb[0].mxu0
      %2305 = vdwg.mxu0
      %v2306 = vadd.f32 %v2007, %v2188
      %v2307 = vadd.f32 %v2008, %v2191
      %v2308 = vadd.f32 %v2009, %v2196
      %v2309 = vadd.f32 %v2010, %v2199
      %v2310 = vadd.f32 %v2011, %v2204
      %v2311 = vadd.f32 %v2012, %v2207
      %v2312 = vadd.f32 %v2013, %v2212
      %v2313 = vadd.f32 %v2014, %v2215
      %v2314 = vadd.f32 %v2015, %v2220
      %v2315 = vadd.f32 %v2016, %v2223
      %v2316 = vadd.f32 %v2017, %v2228
      %v2317 = vadd.f32 %v2018, %v2231
      %v2318 = vadd.f32 %v2019, %v2236
      %v2319 = vadd.f32 %v2020, %v2239
      %v2320 = vadd.f32 %v2021, %v2244
      %v2321 = vadd.f32 %v2022, %v2247
      %v2322 = vadd.f32 %v2023, %v2252
      %v2323 = vadd.f32 %v2024, %v2255
      %v2324 = vadd.f32 %v2025, %v2260
      %v2325 = vadd.f32 %v2026, %v2263
      %v2326 = vadd.f32 %v2027, %v2268
      %v2327 = vadd.f32 %v2028, %v2271
      %v2328 = vadd.f32 %v2029, %v2276
      %v2329 = vadd.f32 %v2030, %v2279
      %v2330 = vadd.f32 %v2031, %v2284
      %v2331 = vadd.f32 %v2032, %v2287
      %v2332 = vadd.f32 %v2033, %v2292
      %v2333 = vadd.f32 %v2034, %v2295
      %v2334 = vadd.f32 %v2035, %v2300
      %v2335 = vadd.f32 %v2036, %v2303
      %v2336 = vpack.c.bf16 %v2041, %v2040
      %v2337 = vpack.c.bf16 %v2043, %v2042
      %v2338 = vpack.c.bf16 %v2045, %v2044
      %v2339 = vpack.c.bf16 %v2047, %v2046
      %v2340 = vpack.c.bf16 %v2049, %v2048
      %v2341 = vpack.c.bf16 %v2051, %v2050
      %v2342 = vpack.c.bf16 %v2053, %v2052
      %v2343 = vpack.c.bf16 %v2055, %v2054
      %v2344 = vpack.c.bf16 %v2057, %v2056
      %v2345 = vpack.c.bf16 %v2059, %v2058
      %v2346 = vpack.c.bf16 %v2061, %v2060
      %v2347 = vpack.c.bf16 %v2063, %v2062
      %v2348 = vpack.c.bf16 %v2065, %v2064
      %v2349 = vpack.c.bf16 %v2067, %v2066
      %v2350 = vpack.c.bf16 %v2069, %v2068
      %s2351 = scalar_lea.vmem %s2, 320
      %v2352 = vld [vmem:[%s2351] sm:$0xf]
      %v2353 = vld [vmem:[%s2351 + $0x4] sm:$0xf]
      %v2354 = vld [vmem:[%s2351 + $0x8] sm:$0xf]
      %v2355 = vld [vmem:[%s2351 + $0xc] sm:$0xf]
      %v2356 = vld [vmem:[%s2351 + $0x10] sm:$0xf]
      %v2357 = vld [vmem:[%s2351 + $0x14] sm:$0xf]
      %v2358 = vld [vmem:[%s2351 + $0x18] sm:$0xf]
      %v2359 = vld [vmem:[%s2351 + $0x1c] sm:$0xf]
      %v2360 = vld [vmem:[%s2351 + $0x20] sm:$0xf]
      %v2361 = vld [vmem:[%s2351 + $0x24] sm:$0xf]
      %v2362 = vld [vmem:[%s2351 + $0x28] sm:$0xf]
      %v2363 = vld [vmem:[%s2351 + $0x2c] sm:$0xf]
      %v2364 = vld [vmem:[%s2351 + $0x30] sm:$0xf]
      %v2365 = vld [vmem:[%s2351 + $0x34] sm:$0xf]
      %v2366 = vld [vmem:[%s2351 + $0x38] sm:$0xf]
      %v2367 = vld [vmem:[%s2351 + $0x3c] sm:$0xf]
      %v2384 = vunpack.c.l.b16 %v2352
      %v2385 = vunpack.c.l.b16 %v2353
      %v2386 = vunpack.c.l.b16 %v2354
      %v2387 = vunpack.c.l.b16 %v2355
      %v2388 = vunpack.c.l.b16 %v2356
      %v2389 = vunpack.c.l.b16 %v2357
      %v2390 = vunpack.c.l.b16 %v2358
      %v2391 = vunpack.c.l.b16 %v2359
      %v2392 = vunpack.c.l.b16 %v2360
      %v2393 = vunpack.c.l.b16 %v2361
      %v2394 = vunpack.c.l.b16 %v2362
      %v2395 = vunpack.c.l.b16 %v2363
      %v2396 = vunpack.c.l.b16 %v2364
      %v2397 = vunpack.c.l.b16 %v2365
      %v2398 = vunpack.c.l.b16 %v2366
      %v2399 = vunpack.c.l.b16 %v2367
      %v2400 = vpack.c.b16 %v2385, %v2384
      %v2401 = vpack.c.b16 %v2387, %v2386
      %v2402 = vpack.c.b16 %v2389, %v2388
      %v2403 = vpack.c.b16 %v2391, %v2390
      %v2404 = vpack.c.b16 %v2393, %v2392
      %v2405 = vpack.c.b16 %v2395, %v2394
      %v2406 = vpack.c.b16 %v2397, %v2396
      %v2407 = vpack.c.b16 %v2399, %v2398
      %2416 = vmatprep.subr.bf16.mxu0 0
      %2417 = vmatpush1.bf16.msra.mxu0 %v2400
      %2418 = vmatprep.subr.bf16.mxu0 0
      %2419 = vmatpush1.bf16.msra.mxu0 %v2401
      %2420 = vmatprep.subr.bf16.mxu0 0
      %2421 = vmatpush1.bf16.msra.mxu0 %v2402
      %2422 = vmatprep.subr.bf16.mxu0 0
      %2423 = vmatpush1.bf16.msra.mxu0 %v2403
      %2424 = vmatprep.subr.bf16.mxu0 0
      %2425 = vmatpush1.bf16.msra.mxu0 %v2404
      %2426 = vmatprep.subr.bf16.mxu0 0
      %2427 = vmatpush1.bf16.msra.mxu0 %v2405
      %2428 = vmatprep.subr.bf16.mxu0 0
      %2429 = vmatpush1.bf16.msra.mxu0 %v2406
      %2430 = vmatprep.subr.bf16.mxu0 0
      %2431 = vmatpush1.bf16.msra.mxu0 %v2407
      %2432 = vmatprep.subr.bf16.mxu0 0
      %2433 = vmatpush1.bf16.msra.mxu0 0
      %2434 = vmatprep.subr.bf16.mxu0 0
      %2435 = vmatpush1.bf16.msra.mxu0 0
      %2436 = vmatprep.subr.bf16.mxu0 0
      %2437 = vmatpush1.bf16.msra.mxu0 0
      %2438 = vmatprep.subr.bf16.mxu0 0
      %2439 = vmatpush1.bf16.msra.mxu0 0
      %2440 = vmatprep.subr.bf16.mxu0 0
      %2441 = vmatpush1.bf16.msra.mxu0 0
      %2442 = vmatprep.subr.bf16.mxu0 0
      %2443 = vmatpush1.bf16.msra.mxu0 0
      %2444 = vmatprep.subr.bf16.mxu0 0
      %2445 = vmatpush1.bf16.msra.mxu0 0
      %2446 = vmatprep.subr.bf16.mxu0 0
      %2447 = vmatpush1.bf16.msra.mxu0 0
      %2448 = vmatprep.mubr.bf16.mxu0 0
      %2449 = vmatmul.mubr.bf16.gmra.mrb[0].mxu0 %v2336
      %v2450 = vpop.f32.mrb[0].mxu0
      %v2451 = vadd.f32 0.0, %v2450
      %v2452 = vpop.f32.mrb[0].mxu0
      %v2453 = vpop.f32.mrb[0].mxu0
      %v2454 = vadd.f32 0.0, %v2453
      %v2455 = vpop.f32.mrb[0].mxu0
      %2456 = vmatprep.mubr.bf16.mxu0 0
      %2457 = vmatmul.mubr.bf16.gmra.mrb[0].mxu0 %v2337
      %v2458 = vpop.f32.mrb[0].mxu0
      %v2459 = vadd.f32 0.0, %v2458
      %v2460 = vpop.f32.mrb[0].mxu0
      %v2461 = vpop.f32.mrb[0].mxu0
      %v2462 = vadd.f32 0.0, %v2461
      %v2463 = vpop.f32.mrb[0].mxu0
      %2464 = vmatprep.mubr.bf16.mxu0 0
      %2465 = vmatmul.mubr.bf16.gmra.mrb[0].mxu0 %v2338
      %v2466 = vpop.f32.mrb[0].mxu0
      %v2467 = vadd.f32 0.0, %v2466
      %v2468 = vpop.f32.mrb[0].mxu0
      %v2469 = vpop.f32.mrb[0].mxu0
      %v2470 = vadd.f32 0.0, %v2469
      %v2471 = vpop.f32.mrb[0].mxu0
      %2472 = vmatprep.mubr.bf16.mxu0 0
      %2473 = vmatmul.mubr.bf16.gmra.mrb[0].mxu0 %v2339
      %v2474 = vpop.f32.mrb[0].mxu0
      %v2475 = vadd.f32 0.0, %v2474
      %v2476 = vpop.f32.mrb[0].mxu0
      %v2477 = vpop.f32.mrb[0].mxu0
      %v2478 = vadd.f32 0.0, %v2477
      %v2479 = vpop.f32.mrb[0].mxu0
      %2480 = vmatprep.mubr.bf16.mxu0 0
      %2481 = vmatmul.mubr.bf16.gmra.mrb[0].mxu0 %v2340
      %v2482 = vpop.f32.mrb[0].mxu0
      %v2483 = vadd.f32 0.0, %v2482
      %v2484 = vpop.f32.mrb[0].mxu0
      %v2485 = vpop.f32.mrb[0].mxu0
      %v2486 = vadd.f32 0.0, %v2485
      %v2487 = vpop.f32.mrb[0].mxu0
      %2488 = vmatprep.mubr.bf16.mxu0 0
      %2489 = vmatmul.mubr.bf16.gmra.mrb[0].mxu0 %v2341
      %v2490 = vpop.f32.mrb[0].mxu0
      %v2491 = vadd.f32 0.0, %v2490
      %v2492 = vpop.f32.mrb[0].mxu0
      %v2493 = vpop.f32.mrb[0].mxu0
      %v2494 = vadd.f32 0.0, %v2493
      %v2495 = vpop.f32.mrb[0].mxu0
      %2496 = vmatprep.mubr.bf16.mxu0 0
      %2497 = vmatmul.mubr.bf16.gmra.mrb[0].mxu0 %v2342
      %v2498 = vpop.f32.mrb[0].mxu0
      %v2499 = vadd.f32 0.0, %v2498
      %v2500 = vpop.f32.mrb[0].mxu0
      %v2501 = vpop.f32.mrb[0].mxu0
      %v2502 = vadd.f32 0.0, %v2501
      %v2503 = vpop.f32.mrb[0].mxu0
      %2504 = vmatprep.mubr.bf16.mxu0 0
      %2505 = vmatmul.mubr.bf16.gmra.mrb[0].mxu0 %v2343
      %v2506 = vpop.f32.mrb[0].mxu0
      %v2507 = vadd.f32 0.0, %v2506
      %v2508 = vpop.f32.mrb[0].mxu0
      %v2509 = vpop.f32.mrb[0].mxu0
      %v2510 = vadd.f32 0.0, %v2509
      %v2511 = vpop.f32.mrb[0].mxu0
      %2512 = vmatprep.mubr.bf16.mxu0 0
      %2513 = vmatmul.mubr.bf16.gmra.mrb[0].mxu0 %v2344
      %v2514 = vpop.f32.mrb[0].mxu0
      %v2515 = vadd.f32 0.0, %v2514
      %v2516 = vpop.f32.mrb[0].mxu0
      %v2517 = vpop.f32.mrb[0].mxu0
      %v2518 = vadd.f32 0.0, %v2517
      %v2519 = vpop.f32.mrb[0].mxu0
      %2520 = vmatprep.mubr.bf16.mxu0 0
      %2521 = vmatmul.mubr.bf16.gmra.mrb[0].mxu0 %v2345
      %v2522 = vpop.f32.mrb[0].mxu0
      %v2523 = vadd.f32 0.0, %v2522
      %v2524 = vpop.f32.mrb[0].mxu0
      %v2525 = vpop.f32.mrb[0].mxu0
      %v2526 = vadd.f32 0.0, %v2525
      %v2527 = vpop.f32.mrb[0].mxu0
      %2528 = vmatprep.mubr.bf16.mxu0 0
      %2529 = vmatmul.mubr.bf16.gmra.mrb[0].mxu0 %v2346
      %v2530 = vpop.f32.mrb[0].mxu0
      %v2531 = vadd.f32 0.0, %v2530
      %v2532 = vpop.f32.mrb[0].mxu0
      %v2533 = vpop.f32.mrb[0].mxu0
      %v2534 = vadd.f32 0.0, %v2533
      %v2535 = vpop.f32.mrb[0].mxu0
      %2536 = vmatprep.mubr.bf16.mxu0 0
      %2537 = vmatmul.mubr.bf16.gmra.mrb[0].mxu0 %v2347
      %v2538 = vpop.f32.mrb[0].mxu0
      %v2539 = vadd.f32 0.0, %v2538
      %v2540 = vpop.f32.mrb[0].mxu0
      %v2541 = vpop.f32.mrb[0].mxu0
      %v2542 = vadd.f32 0.0, %v2541
      %v2543 = vpop.f32.mrb[0].mxu0
      %2544 = vmatprep.mubr.bf16.mxu0 0
      %2545 = vmatmul.mubr.bf16.gmra.mrb[0].mxu0 %v2348
      %v2546 = vpop.f32.mrb[0].mxu0
      %v2547 = vadd.f32 0.0, %v2546
      %v2548 = vpop.f32.mrb[0].mxu0
      %v2549 = vpop.f32.mrb[0].mxu0
      %v2550 = vadd.f32 0.0, %v2549
      %v2551 = vpop.f32.mrb[0].mxu0
      %2552 = vmatprep.mubr.bf16.mxu0 0
      %2553 = vmatmul.mubr.bf16.gmra.mrb[0].mxu0 %v2349
      %v2554 = vpop.f32.mrb[0].mxu0
      %v2555 = vadd.f32 0.0, %v2554
      %v2556 = vpop.f32.mrb[0].mxu0
      %v2557 = vpop.f32.mrb[0].mxu0
      %v2558 = vadd.f32 0.0, %v2557
      %v2559 = vpop.f32.mrb[0].mxu0
      %2560 = vmatprep.mubr.bf16.mxu0 0
      %2561 = vmatmul.mubr.bf16.gmra.mrb[0].mxu0 %v2350
      %v2562 = vpop.f32.mrb[0].mxu0
      %v2563 = vadd.f32 0.0, %v2562
      %v2564 = vpop.f32.mrb[0].mxu0
      %v2565 = vpop.f32.mrb[0].mxu0
      %v2566 = vadd.f32 0.0, %v2565
      %v2567 = vpop.f32.mrb[0].mxu0
      %2568 = vdwg.mxu0
      %v2569 = vadd.f32 %v2306, %v2451
      %v2570 = vadd.f32 %v2307, %v2454
      %v2571 = vadd.f32 %v2308, %v2459
      %v2572 = vadd.f32 %v2309, %v2462
      %v2573 = vadd.f32 %v2310, %v2467
      %v2574 = vadd.f32 %v2311, %v2470
      %v2575 = vadd.f32 %v2312, %v2475
      %v2576 = vadd.f32 %v2313, %v2478
      %v2577 = vadd.f32 %v2314, %v2483
      %v2578 = vadd.f32 %v2315, %v2486
      %v2579 = vadd.f32 %v2316, %v2491
      %v2580 = vadd.f32 %v2317, %v2494
      %v2581 = vadd.f32 %v2318, %v2499
      %v2582 = vadd.f32 %v2319, %v2502
      %v2583 = vadd.f32 %v2320, %v2507
      %v2584 = vadd.f32 %v2321, %v2510
      %v2585 = vadd.f32 %v2322, %v2515
      %v2586 = vadd.f32 %v2323, %v2518
      %v2587 = vadd.f32 %v2324, %v2523
      %v2588 = vadd.f32 %v2325, %v2526
      %v2589 = vadd.f32 %v2326, %v2531
      %v2590 = vadd.f32 %v2327, %v2534
      %v2591 = vadd.f32 %v2328, %v2539
      %v2592 = vadd.f32 %v2329, %v2542
      %v2593 = vadd.f32 %v2330, %v2547
      %v2594 = vadd.f32 %v2331, %v2550
      %v2595 = vadd.f32 %v2332, %v2555
      %v2596 = vadd.f32 %v2333, %v2558
      %v2597 = vadd.f32 %v2334, %v2563
      %v2598 = vadd.f32 %v2335, %v2566
      %v2599 = vpack.c.bf16 %v2068, %v2067
      %v2600 = vpack.c.bf16 %v2070, %v2069
      %v2601 = vpack.c.bf16 %v2072, %v2071
      %s2602 = scalar_lea.vmem %s2, 512
      %v2603 = vld [vmem:[%s2602] sm:$0xf]
      %v2604 = vld [vmem:[%s2602 + $0x4] sm:$0xf]
      %v2605 = vld [vmem:[%s2602 + $0x8] sm:$0xf]
      %v2606 = vld [vmem:[%s2602 + $0xc] sm:$0xf]
      %v2607 = vld [vmem:[%s2602 + $0x10] sm:$0xf]
      %v2608 = vld [vmem:[%s2602 + $0x14] sm:$0xf]
      %v2609 = vld [vmem:[%s2602 + $0x18] sm:$0xf]
      %v2610 = vld [vmem:[%s2602 + $0x1c] sm:$0xf]
      %v2611 = vld [vmem:[%s2602 + $0x20] sm:$0xf]
      %v2612 = vld [vmem:[%s2602 + $0x24] sm:$0xf]
      %v2613 = vld [vmem:[%s2602 + $0x28] sm:$0xf]
      %v2614 = vld [vmem:[%s2602 + $0x2c] sm:$0xf]
      %v2615 = vld [vmem:[%s2602 + $0x30] sm:$0xf]
      %v2616 = vld [vmem:[%s2602 + $0x34] sm:$0xf]
      %v2617 = vld [vmem:[%s2602 + $0x38] sm:$0xf]
      %v2618 = vld [vmem:[%s2602 + $0x3c] sm:$0xf]
      %v2635 = vunpack.c.l.b16 %v2603
      %v2636 = vunpack.c.l.b16 %v2604
      %v2637 = vunpack.c.l.b16 %v2605
      %v2638 = vunpack.c.l.b16 %v2606
      %v2639 = vunpack.c.l.b16 %v2607
      %v2640 = vunpack.c.l.b16 %v2608
      %v2641 = vunpack.c.l.b16 %v2609
      %v2642 = vunpack.c.l.b16 %v2610
      %v2643 = vunpack.c.l.b16 %v2611
      %v2644 = vunpack.c.l.b16 %v2612
      %v2645 = vunpack.c.l.b16 %v2613
      %v2646 = vunpack.c.l.b16 %v2614
      %v2647 = vunpack.c.l.b16 %v2615
      %v2648 = vunpack.c.l.b16 %v2616
      %v2649 = vunpack.c.l.b16 %v2617
      %v2650 = vunpack.c.l.b16 %v2618
      %v2651 = vpack.c.b16 %v2636, %v2635
      %v2652 = vpack.c.b16 %v2638, %v2637
      %v2653 = vpack.c.b16 %v2640, %v2639
      %v2654 = vpack.c.b16 %v2642, %v2641
      %v2655 = vpack.c.b16 %v2644, %v2643
      %v2656 = vpack.c.b16 %v2646, %v2645
      %v2657 = vpack.c.b16 %v2648, %v2647
      %v2658 = vpack.c.b16 %v2650, %v2649
      %2667 = vmatprep.subr.bf16.mxu0 0
      %2668 = vmatpush1.bf16.msra.mxu0 %v2651
      %2669 = vmatprep.subr.bf16.mxu0 0
      %2670 = vmatpush1.bf16.msra.mxu0 %v2652
      %2671 = vmatprep.subr.bf16.mxu0 0
      %2672 = vmatpush1.bf16.msra.mxu0 %v2653
      %2673 = vmatprep.subr.bf16.mxu0 0
      %2674 = vmatpush1.bf16.msra.mxu0 %v2654
      %2675 = vmatprep.subr.bf16.mxu0 0
      %2676 = vmatpush1.bf16.msra.mxu0 %v2655
      %2677 = vmatprep.subr.bf16.mxu0 0
      %2678 = vmatpush1.bf16.msra.mxu0 %v2656
      %2679 = vmatprep.subr.bf16.mxu0 0
      %2680 = vmatpush1.bf16.msra.mxu0 %v2657
      %2681 = vmatprep.subr.bf16.mxu0 0
      %2682 = vmatpush1.bf16.msra.mxu0 %v2658
      %2683 = vmatprep.subr.bf16.mxu0 0
      %2684 = vmatpush1.bf16.msra.mxu0 0
      %2685 = vmatprep.subr.bf16.mxu0 0
      %2686 = vmatpush1.bf16.msra.mxu0 0
      %2687 = vmatprep.subr.bf16.mxu0 0
      %2688 = vmatpush1.bf16.msra.mxu0 0
      %2689 = vmatprep.subr.bf16.mxu0 0
      %2690 = vmatpush1.bf16.msra.mxu0 0
      %2691 = vmatprep.subr.bf16.mxu0 0
      %2692 = vmatpush1.bf16.msra.mxu0 0
      %2693 = vmatprep.subr.bf16.mxu0 0
      %2694 = vmatpush1.bf16.msra.mxu0 0
      %2695 = vmatprep.subr.bf16.mxu0 0
      %2696 = vmatpush1.bf16.msra.mxu0 0
      %2697 = vmatprep.subr.bf16.mxu0 0
      %2698 = vmatpush1.bf16.msra.mxu0 0
      %2699 = vmatprep.mubr.bf16.mxu0 0
      %2700 = vmatmul.mubr.bf16.gmra.mrb[0].mxu0 %v2076
      %v2701 = vpop.f32.mrb[0].mxu0
      %v2702 = vadd.f32 0.0, %v2701
      %v2703 = vpop.f32.mrb[0].mxu0
      %v2704 = vpop.f32.mrb[0].mxu0
      %v2705 = vadd.f32 0.0, %v2704
      %v2706 = vpop.f32.mrb[0].mxu0
      %2707 = vmatprep.mubr.bf16.mxu0 0
      %2708 = vmatmul.mubr.bf16.gmra.mrb[0].mxu0 %v2077
      %v2709 = vpop.f32.mrb[0].mxu0
      %v2710 = vadd.f32 0.0, %v2709
      %v2711 = vpop.f32.mrb[0].mxu0
      %v2712 = vpop.f32.mrb[0].mxu0
      %v2713 = vadd.f32 0.0, %v2712
      %v2714 = vpop.f32.mrb[0].mxu0
      %2715 = vmatprep.mubr.bf16.mxu0 0
      %2716 = vmatmul.mubr.bf16.gmra.mrb[0].mxu0 %v2078
      %v2717 = vpop.f32.mrb[0].mxu0
      %v2718 = vadd.f32 0.0, %v2717
      %v2719 = vpop.f32.mrb[0].mxu0
      %v2720 = vpop.f32.mrb[0].mxu0
      %v2721 = vadd.f32 0.0, %v2720
      %v2722 = vpop.f32.mrb[0].mxu0
      %2723 = vmatprep.mubr.bf16.mxu0 0
      %2724 = vmatmul.mubr.bf16.gmra.mrb[0].mxu0 %v2079
      %v2725 = vpop.f32.mrb[0].mxu0
      %v2726 = vadd.f32 0.0, %v2725
      %v2727 = vpop.f32.mrb[0].mxu0
      %v2728 = vpop.f32.mrb[0].mxu0
      %v2729 = vadd.f32 0.0, %v2728
      %v2730 = vpop.f32.mrb[0].mxu0
      %2731 = vmatprep.mubr.bf16.mxu0 0
      %2732 = vmatmul.mubr.bf16.gmra.mrb[0].mxu0 %v2080
      %v2733 = vpop.f32.mrb[0].mxu0
      %v2734 = vadd.f32 0.0, %v2733
      %v2735 = vpop.f32.mrb[0].mxu0
      %v2736 = vpop.f32.mrb[0].mxu0
      %v2737 = vadd.f32 0.0, %v2736
      %v2738 = vpop.f32.mrb[0].mxu0
      %2739 = vmatprep.mubr.bf16.mxu0 0
      %2740 = vmatmul.mubr.bf16.gmra.mrb[0].mxu0 %v2081
      %v2741 = vpop.f32.mrb[0].mxu0
      %v2742 = vadd.f32 0.0, %v2741
      %v2743 = vpop.f32.mrb[0].mxu0
      %v2744 = vpop.f32.mrb[0].mxu0
      %v2745 = vadd.f32 0.0, %v2744
      %v2746 = vpop.f32.mrb[0].mxu0
      %2747 = vmatprep.mubr.bf16.mxu0 0
      %2748 = vmatmul.mubr.bf16.gmra.mrb[0].mxu0 %v2082
      %v2749 = vpop.f32.mrb[0].mxu0
      %v2750 = vadd.f32 0.0, %v2749
      %v2751 = vpop.f32.mrb[0].mxu0
      %v2752 = vpop.f32.mrb[0].mxu0
      %v2753 = vadd.f32 0.0, %v2752
      %v2754 = vpop.f32.mrb[0].mxu0
      %2755 = vmatprep.mubr.bf16.mxu0 0
      %2756 = vmatmul.mubr.bf16.gmra.mrb[0].mxu0 %v2083
      %v2757 = vpop.f32.mrb[0].mxu0
      %v2758 = vadd.f32 0.0, %v2757
      %v2759 = vpop.f32.mrb[0].mxu0
      %v2760 = vpop.f32.mrb[0].mxu0
      %v2761 = vadd.f32 0.0, %v2760
      %v2762 = vpop.f32.mrb[0].mxu0
      %2763 = vmatprep.mubr.bf16.mxu0 0
      %2764 = vmatmul.mubr.bf16.gmra.mrb[0].mxu0 %v2084
      %v2765 = vpop.f32.mrb[0].mxu0
      %v2766 = vadd.f32 0.0, %v2765
      %v2767 = vpop.f32.mrb[0].mxu0
      %v2768 = vpop.f32.mrb[0].mxu0
      %v2769 = vadd.f32 0.0, %v2768
      %v2770 = vpop.f32.mrb[0].mxu0
      %2771 = vmatprep.mubr.bf16.mxu0 0
      %2772 = vmatmul.mubr.bf16.gmra.mrb[0].mxu0 %v2085
      %v2773 = vpop.f32.mrb[0].mxu0
      %v2774 = vadd.f32 0.0, %v2773
      %v2775 = vpop.f32.mrb[0].mxu0
      %v2776 = vpop.f32.mrb[0].mxu0
      %v2777 = vadd.f32 0.0, %v2776
      %v2778 = vpop.f32.mrb[0].mxu0
      %2779 = vmatprep.mubr.bf16.mxu0 0
      %2780 = vmatmul.mubr.bf16.gmra.mrb[0].mxu0 %v2086
      %v2781 = vpop.f32.mrb[0].mxu0
      %v2782 = vadd.f32 0.0, %v2781
      %v2783 = vpop.f32.mrb[0].mxu0
      %v2784 = vpop.f32.mrb[0].mxu0
      %v2785 = vadd.f32 0.0, %v2784
      %v2786 = vpop.f32.mrb[0].mxu0
      %2787 = vmatprep.mubr.bf16.mxu0 0
      %2788 = vmatmul.mubr.bf16.gmra.mrb[0].mxu0 %v2087
      %v2789 = vpop.f32.mrb[0].mxu0
      %v2790 = vadd.f32 0.0, %v2789
      %v2791 = vpop.f32.mrb[0].mxu0
      %v2792 = vpop.f32.mrb[0].mxu0
      %v2793 = vadd.f32 0.0, %v2792
      %v2794 = vpop.f32.mrb[0].mxu0
      %2795 = vmatprep.mubr.bf16.mxu0 0
      %2796 = vmatmul.mubr.bf16.gmra.mrb[0].mxu0 %v2599
      %v2797 = vpop.f32.mrb[0].mxu0
      %v2798 = vadd.f32 0.0, %v2797
      %v2799 = vpop.f32.mrb[0].mxu0
      %v2800 = vpop.f32.mrb[0].mxu0
      %v2801 = vadd.f32 0.0, %v2800
      %v2802 = vpop.f32.mrb[0].mxu0
      %2803 = vmatprep.mubr.bf16.mxu0 0
      %2804 = vmatmul.mubr.bf16.gmra.mrb[0].mxu0 %v2600
      %v2805 = vpop.f32.mrb[0].mxu0
      %v2806 = vadd.f32 0.0, %v2805
      %v2807 = vpop.f32.mrb[0].mxu0
      %v2808 = vpop.f32.mrb[0].mxu0
      %v2809 = vadd.f32 0.0, %v2808
      %v2810 = vpop.f32.mrb[0].mxu0
      %2811 = vmatprep.mubr.bf16.mxu0 0
      %2812 = vmatmul.mubr.bf16.gmra.mrb[0].mxu0 %v2601
      %v2813 = vpop.f32.mrb[0].mxu0
      %v2814 = vadd.f32 0.0, %v2813
      %v2815 = vpop.f32.mrb[0].mxu0
      %v2816 = vpop.f32.mrb[0].mxu0
      %v2817 = vadd.f32 0.0, %v2816
      %v2818 = vpop.f32.mrb[0].mxu0
      %2819 = vdwg.mxu0
      %v2820 = vadd.f32 %v2569, %v2702
      %v2821 = vadd.f32 %v2570, %v2705
      %v2822 = vadd.f32 %v2571, %v2710
      %v2823 = vadd.f32 %v2572, %v2713
      %v2824 = vadd.f32 %v2573, %v2718
      %v2825 = vadd.f32 %v2574, %v2721
      %v2826 = vadd.f32 %v2575, %v2726
      %v2827 = vadd.f32 %v2576, %v2729
      %v2828 = vadd.f32 %v2577, %v2734
      %v2829 = vadd.f32 %v2578, %v2737
      %v2830 = vadd.f32 %v2579, %v2742
      %v2831 = vadd.f32 %v2580, %v2745
      %v2832 = vadd.f32 %v2581, %v2750
      %v2833 = vadd.f32 %v2582, %v2753
      %v2834 = vadd.f32 %v2583, %v2758
      %v2835 = vadd.f32 %v2584, %v2761
      %v2836 = vadd.f32 %v2585, %v2766
      %v2837 = vadd.f32 %v2586, %v2769
      %v2838 = vadd.f32 %v2587, %v2774
      %v2839 = vadd.f32 %v2588, %v2777
      %v2840 = vadd.f32 %v2589, %v2782
      %v2841 = vadd.f32 %v2590, %v2785
      %v2842 = vadd.f32 %v2591, %v2790
      %v2843 = vadd.f32 %v2592, %v2793
      %v2844 = vadd.f32 %v2593, %v2798
      %v2845 = vadd.f32 %v2594, %v2801
      %v2846 = vadd.f32 %v2595, %v2806
      %v2847 = vadd.f32 %v2596, %v2809
      %v2848 = vadd.f32 %v2597, %v2814
      %v2849 = vadd.f32 %v2598, %v2817
      %v2850 = vld [vmem:[%s3] sm:$0x1]
      %v2852 = vlaneseq
      %v2853 = vshrl.u32 %v2852, 7
      %v2854 = vsub.s32 0, %v2853
      %v2855 = vrot.slane %v2850, %v2854
      %v2857 = vadd.f32 %v2820, %v2855
      %v2858 = vadd.f32 %v2821, %v2855
      %v2859 = vadd.f32 %v2822, %v2855
      %v2860 = vadd.f32 %v2823, %v2855
      %v2861 = vadd.f32 %v2824, %v2855
      %v2862 = vadd.f32 %v2825, %v2855
      %v2863 = vadd.f32 %v2826, %v2855
      %v2864 = vadd.f32 %v2827, %v2855
      %v2865 = vadd.f32 %v2828, %v2855
      %v2866 = vadd.f32 %v2829, %v2855
      %v2867 = vadd.f32 %v2830, %v2855
      %v2868 = vadd.f32 %v2831, %v2855
      %v2869 = vadd.f32 %v2832, %v2855
      %v2870 = vadd.f32 %v2833, %v2855
      %v2871 = vadd.f32 %v2834, %v2855
      %v2872 = vadd.f32 %v2835, %v2855
      %v2873 = vadd.f32 %v2836, %v2855
      %v2874 = vadd.f32 %v2837, %v2855
      %v2875 = vadd.f32 %v2838, %v2855
      %v2876 = vadd.f32 %v2839, %v2855
      %v2877 = vadd.f32 %v2840, %v2855
      %v2878 = vadd.f32 %v2841, %v2855
      %v2879 = vadd.f32 %v2842, %v2855
      %v2880 = vadd.f32 %v2843, %v2855
      %v2881 = vadd.f32 %v2844, %v2855
      %v2882 = vadd.f32 %v2845, %v2855
      %v2883 = vadd.f32 %v2846, %v2855
      %v2884 = vadd.f32 %v2847, %v2855
      %v2885 = vadd.f32 %v2848, %v2855
      %v2886 = vadd.f32 %v2849, %v2855
      %v2887 = vmax.f32 %v2857, 0.0
      %v2888 = vmax.f32 %v2858, 0.0
      %v2889 = vmax.f32 %v2859, 0.0
      %v2890 = vmax.f32 %v2860, 0.0
      %v2891 = vmax.f32 %v2861, 0.0
      %v2892 = vmax.f32 %v2862, 0.0
      %v2893 = vmax.f32 %v2863, 0.0
      %v2894 = vmax.f32 %v2864, 0.0
      %v2895 = vmax.f32 %v2865, 0.0
      %v2896 = vmax.f32 %v2866, 0.0
      %v2897 = vmax.f32 %v2867, 0.0
      %v2898 = vmax.f32 %v2868, 0.0
      %v2899 = vmax.f32 %v2869, 0.0
      %v2900 = vmax.f32 %v2870, 0.0
      %v2901 = vmax.f32 %v2871, 0.0
      %v2902 = vmax.f32 %v2872, 0.0
      %v2903 = vmax.f32 %v2873, 0.0
      %v2904 = vmax.f32 %v2874, 0.0
      %v2905 = vmax.f32 %v2875, 0.0
      %v2906 = vmax.f32 %v2876, 0.0
      %v2907 = vmax.f32 %v2877, 0.0
      %v2908 = vmax.f32 %v2878, 0.0
      %v2909 = vmax.f32 %v2879, 0.0
      %v2910 = vmax.f32 %v2880, 0.0
      %v2911 = vmax.f32 %v2881, 0.0
      %v2912 = vmax.f32 %v2882, 0.0
      %v2913 = vmax.f32 %v2883, 0.0
      %v2914 = vmax.f32 %v2884, 0.0
      %v2915 = vmax.f32 %v2885, 0.0
      %v2916 = vmax.f32 %v2886, 0.0
      %s2917 = smul.u32 %s22, 8
      %s2918 = ssub.s32 %s2917, 1
      %v2919 = vstv %s2918
      %v2920 = vadd.s32 %v2919, 1
      %v2921 = vadd.s32 %v2919, 2
      %v2922 = vadd.s32 %v2919, 3
      %v2923 = vadd.s32 %v2919, 4
      %v2924 = vadd.s32 %v2919, 5
      %v2925 = vadd.s32 %v2919, 6
      %v2926 = vadd.s32 %v2919, 7
      %v2927 = vadd.s32 %v2919, 8
      %v2928 = vadd.s32 %v2919, 9
      %v2929 = vlaneseq
      %v2930 = vshrl.u32 %v2929, 7
      %v2931 = vadd.s32 %v2930, 8
      %v2932 = vadd.s32 %v2930, 16
      %v2933 = vsub.s32 %v2930, 1
      %v2934 = vsub.s32 %v2931, 1
      %v2935 = vsub.s32 %v2932, 1
      %vm2936 = vcmp.ge.s32.totalorder %v2919, 0
      %vm2937 = vcmp.ge.s32.totalorder %v2920, 0
      %vm2938 = vcmp.ge.s32.totalorder %v2921, 0
      %vm2939 = vcmp.ge.s32.totalorder %v2922, 0
      %vm2940 = vcmp.ge.s32.totalorder %v2923, 0
      %vm2941 = vcmp.ge.s32.totalorder %v2924, 0
      %vm2942 = vcmp.ge.s32.totalorder %v2925, 0
      %vm2943 = vcmp.ge.s32.totalorder %v2926, 0
      %vm2944 = vcmp.ge.s32.totalorder %v2927, 0
      %vm2945 = vcmp.ge.s32.totalorder %v2928, 0
      %vm2946 = vcmp.lt.s32.totalorder %v2919, 16
      %vm2947 = vcmp.lt.s32.totalorder %v2920, 16
      %vm2948 = vcmp.lt.s32.totalorder %v2921, 16
      %vm2949 = vcmp.lt.s32.totalorder %v2922, 16
      %vm2950 = vcmp.lt.s32.totalorder %v2923, 16
      %vm2951 = vcmp.lt.s32.totalorder %v2924, 16
      %vm2952 = vcmp.lt.s32.totalorder %v2925, 16
      %vm2953 = vcmp.lt.s32.totalorder %v2926, 16
      %vm2954 = vcmp.lt.s32.totalorder %v2927, 16
      %vm2955 = vcmp.lt.s32.totalorder %v2928, 16
      %vm2956 = vmand %vm2936, %vm2946
      %vm2957 = vmand %vm2937, %vm2947
      %vm2958 = vmand %vm2938, %vm2948
      %vm2959 = vmand %vm2939, %vm2949
      %vm2960 = vmand %vm2940, %vm2950
      %vm2961 = vmand %vm2941, %vm2951
      %vm2962 = vmand %vm2942, %vm2952
      %vm2963 = vmand %vm2943, %vm2953
      %vm2964 = vmand %vm2944, %vm2954
      %vm2965 = vmand %vm2945, %vm2955
      %vm2966 = vcmp.ge.s32.totalorder %v2933, 0
      %vm2967 = vcmp.ge.s32.totalorder %v2934, 0
      %vm2968 = vcmp.ge.s32.totalorder %v2935, 0
      %vm2969 = vmand %vm2956, %vm2966
      %vm2970 = vmand %vm2956, %vm2967
      %vm2971 = vmand %vm2956, %vm2968
      %vm2972 = vmand %vm2957, %vm2966
      %vm2973 = vmand %vm2957, %vm2967
      %vm2974 = vmand %vm2957, %vm2968
      %vm2975 = vmand %vm2958, %vm2966
      %vm2976 = vmand %vm2958, %vm2967
      %vm2977 = vmand %vm2958, %vm2968
      %vm2978 = vmand %vm2959, %vm2966
      %vm2979 = vmand %vm2959, %vm2967
      %vm2980 = vmand %vm2959, %vm2968
      %vm2981 = vmand %vm2960, %vm2966
      %vm2982 = vmand %vm2960, %vm2967
      %vm2983 = vmand %vm2960, %vm2968
      %vm2984 = vmand %vm2961, %vm2966
      %vm2985 = vmand %vm2961, %vm2967
      %vm2986 = vmand %vm2961, %vm2968
      %vm2987 = vmand %vm2962, %vm2966
      %vm2988 = vmand %vm2962, %vm2967
      %vm2989 = vmand %vm2962, %vm2968
      %vm2990 = vmand %vm2963, %vm2966
      %vm2991 = vmand %vm2963, %vm2967
      %vm2992 = vmand %vm2963, %vm2968
      %vm2993 = vmand %vm2964, %vm2966
      %vm2994 = vmand %vm2964, %vm2967
      %vm2995 = vmand %vm2964, %vm2968
      %vm2996 = vmand %vm2965, %vm2966
      %vm2997 = vmand %vm2965, %vm2967
      %vm2998 = vmand %vm2965, %vm2968
      %vm2999 = vcmp.lt.s32.totalorder %v2933, 16
      %vm3000 = vcmp.lt.s32.totalorder %v2934, 16
      %vm3001 = vcmp.lt.s32.totalorder %v2935, 16
      %vm3002 = vmand %vm2969, %vm2999
      %vm3003 = vmand %vm2970, %vm3000
      %vm3004 = vmand %vm2971, %vm3001
      %vm3005 = vmand %vm2972, %vm2999
      %vm3006 = vmand %vm2973, %vm3000
      %vm3007 = vmand %vm2974, %vm3001
      %vm3008 = vmand %vm2975, %vm2999
      %vm3009 = vmand %vm2976, %vm3000
      %vm3010 = vmand %vm2977, %vm3001
      %vm3011 = vmand %vm2978, %vm2999
      %vm3012 = vmand %vm2979, %vm3000
      %vm3013 = vmand %vm2980, %vm3001
      %vm3014 = vmand %vm2981, %vm2999
      %vm3015 = vmand %vm2982, %vm3000
      %vm3016 = vmand %vm2983, %vm3001
      %vm3017 = vmand %vm2984, %vm2999
      %vm3018 = vmand %vm2985, %vm3000
      %vm3019 = vmand %vm2986, %vm3001
      %vm3020 = vmand %vm2987, %vm2999
      %vm3021 = vmand %vm2988, %vm3000
      %vm3022 = vmand %vm2989, %vm3001
      %vm3023 = vmand %vm2990, %vm2999
      %vm3024 = vmand %vm2991, %vm3000
      %vm3025 = vmand %vm2992, %vm3001
      %vm3026 = vmand %vm2993, %vm2999
      %vm3027 = vmand %vm2994, %vm3000
      %vm3028 = vmand %vm2995, %vm3001
      %vm3029 = vmand %vm2996, %vm2999
      %vm3030 = vmand %vm2997, %vm3000
      %vm3031 = vmand %vm2998, %vm3001
      %v3032 = vsel %vm3002, 1, 0
      %v3033 = vsel %vm3003, 1, 0
      %v3034 = vsel %vm3004, 1, 0
      %v3035 = vsel %vm3005, 1, 0
      %v3036 = vsel %vm3006, 1, 0
      %v3037 = vsel %vm3007, 1, 0
      %v3038 = vsel %vm3008, 1, 0
      %v3039 = vsel %vm3009, 1, 0
      %v3040 = vsel %vm3010, 1, 0
      %v3041 = vsel %vm3011, 1, 0
      %v3042 = vsel %vm3012, 1, 0
      %v3043 = vsel %vm3013, 1, 0
      %v3044 = vsel %vm3014, 1, 0
      %v3045 = vsel %vm3015, 1, 0
      %v3046 = vsel %vm3016, 1, 0
      %v3047 = vsel %vm3017, 1, 0
      %v3048 = vsel %vm3018, 1, 0
      %v3049 = vsel %vm3019, 1, 0
      %v3050 = vsel %vm3020, 1, 0
      %v3051 = vsel %vm3021, 1, 0
      %v3052 = vsel %vm3022, 1, 0
      %v3053 = vsel %vm3023, 1, 0
      %v3054 = vsel %vm3024, 1, 0
      %v3055 = vsel %vm3025, 1, 0
      %v3056 = vsel %vm3026, 1, 0
      %v3057 = vsel %vm3027, 1, 0
      %v3058 = vsel %vm3028, 1, 0
      %v3059 = vsel %vm3029, 1, 0
      %v3060 = vsel %vm3030, 1, 0
      %v3061 = vsel %vm3031, 1, 0
      %vm3062 = vcmp.eq.s32.totalorder %v3032, 1
      %vm3063 = vcmp.eq.s32.totalorder %v3033, 1
      %vm3064 = vcmp.eq.s32.totalorder %v3034, 1
      %vm3065 = vcmp.eq.s32.totalorder %v3035, 1
      %vm3066 = vcmp.eq.s32.totalorder %v3036, 1
      %vm3067 = vcmp.eq.s32.totalorder %v3037, 1
      %vm3068 = vcmp.eq.s32.totalorder %v3038, 1
      %vm3069 = vcmp.eq.s32.totalorder %v3039, 1
      %vm3070 = vcmp.eq.s32.totalorder %v3040, 1
      %vm3071 = vcmp.eq.s32.totalorder %v3041, 1
      %vm3072 = vcmp.eq.s32.totalorder %v3042, 1
      %vm3073 = vcmp.eq.s32.totalorder %v3043, 1
      %vm3074 = vcmp.eq.s32.totalorder %v3044, 1
      %vm3075 = vcmp.eq.s32.totalorder %v3045, 1
      %vm3076 = vcmp.eq.s32.totalorder %v3046, 1
      %vm3077 = vcmp.eq.s32.totalorder %v3047, 1
      %vm3078 = vcmp.eq.s32.totalorder %v3048, 1
      %vm3079 = vcmp.eq.s32.totalorder %v3049, 1
      %vm3080 = vcmp.eq.s32.totalorder %v3050, 1
      %vm3081 = vcmp.eq.s32.totalorder %v3051, 1
      %vm3082 = vcmp.eq.s32.totalorder %v3052, 1
      %vm3083 = vcmp.eq.s32.totalorder %v3053, 1
      %vm3084 = vcmp.eq.s32.totalorder %v3054, 1
      %vm3085 = vcmp.eq.s32.totalorder %v3055, 1
      %vm3086 = vcmp.eq.s32.totalorder %v3056, 1
      %vm3087 = vcmp.eq.s32.totalorder %v3057, 1
      %vm3088 = vcmp.eq.s32.totalorder %v3058, 1
      %vm3089 = vcmp.eq.s32.totalorder %v3059, 1
      %vm3090 = vcmp.eq.s32.totalorder %v3060, 1
      %vm3091 = vcmp.eq.s32.totalorder %v3061, 1
      %v3092 = vsel %vm3062, %v2887, 0.0
      %v3093 = vsel %vm3063, %v2888, 0.0
      %v3094 = vsel %vm3064, %v2889, 0.0
      %v3095 = vsel %vm3065, %v2890, 0.0
      %v3096 = vsel %vm3066, %v2891, 0.0
      %v3097 = vsel %vm3067, %v2892, 0.0
      %v3098 = vsel %vm3068, %v2893, 0.0
      %v3099 = vsel %vm3069, %v2894, 0.0
      %v3100 = vsel %vm3070, %v2895, 0.0
      %v3101 = vsel %vm3071, %v2896, 0.0
      %v3102 = vsel %vm3072, %v2897, 0.0
      %v3103 = vsel %vm3073, %v2898, 0.0
      %v3104 = vsel %vm3074, %v2899, 0.0
      %v3105 = vsel %vm3075, %v2900, 0.0
      %v3106 = vsel %vm3076, %v2901, 0.0
      %v3107 = vsel %vm3077, %v2902, 0.0
      %v3108 = vsel %vm3078, %v2903, 0.0
      %v3109 = vsel %vm3079, %v2904, 0.0
      %v3110 = vsel %vm3080, %v2905, 0.0
      %v3111 = vsel %vm3081, %v2906, 0.0
      %v3112 = vsel %vm3082, %v2907, 0.0
      %v3113 = vsel %vm3083, %v2908, 0.0
      %v3114 = vsel %vm3084, %v2909, 0.0
      %v3115 = vsel %vm3085, %v2910, 0.0
      %v3116 = vsel %vm3086, %v2911, 0.0
      %v3117 = vsel %vm3087, %v2912, 0.0
      %v3118 = vsel %vm3088, %v2913, 0.0
      %v3119 = vsel %vm3089, %v2914, 0.0
      %v3120 = vsel %vm3090, %v2915, 0.0
      %v3121 = vsel %vm3091, %v2916, 0.0
      %3122 = vst [vmem:[#allocation3] sm:$0xff] %v3092
      %3123 = vst [vmem:[#allocation3 + $0x8] sm:$0xff] %v3093
      %3124 = vst [vmem:[#allocation3 + $0x10] sm:$0xff] %v3094
      %3125 = vst [vmem:[#allocation3 + $0x18] sm:$0xff] %v3095
      %3126 = vst [vmem:[#allocation3 + $0x20] sm:$0xff] %v3096
      %3127 = vst [vmem:[#allocation3 + $0x28] sm:$0xff] %v3097
      %3128 = vst [vmem:[#allocation3 + $0x30] sm:$0xff] %v3098
      %3129 = vst [vmem:[#allocation3 + $0x38] sm:$0xff] %v3099
      %3130 = vst [vmem:[#allocation3 + $0x40] sm:$0xff] %v3100
      %3131 = vst [vmem:[#allocation3 + $0x48] sm:$0xff] %v3101
      %3132 = vst [vmem:[#allocation3 + $0x50] sm:$0xff] %v3102
      %3133 = vst [vmem:[#allocation3 + $0x58] sm:$0xff] %v3103
      %3134 = vst [vmem:[#allocation3 + $0x60] sm:$0xff] %v3104
      %3135 = vst [vmem:[#allocation3 + $0x68] sm:$0xff] %v3105
      %3136 = vst [vmem:[#allocation3 + $0x70] sm:$0xff] %v3106
      %3137 = vst [vmem:[#allocation3 + $0x78] sm:$0xff] %v3107
      %3138 = vst [vmem:[#allocation3 + $0x80] sm:$0xff] %v3108
      %3139 = vst [vmem:[#allocation3 + $0x88] sm:$0xff] %v3109
      %3140 = vst [vmem:[#allocation3 + $0x90] sm:$0xff] %v3110
      %3141 = vst [vmem:[#allocation3 + $0x98] sm:$0xff] %v3111
      %3142 = vst [vmem:[#allocation3 + $0xa0] sm:$0xff] %v3112
      %3143 = vst [vmem:[#allocation3 + $0xa8] sm:$0xff] %v3113
      %3144 = vst [vmem:[#allocation3 + $0xb0] sm:$0xff] %v3114
      %3145 = vst [vmem:[#allocation3 + $0xb8] sm:$0xff] %v3115
      %3146 = vst [vmem:[#allocation3 + $0xc0] sm:$0xff] %v3116
      %3147 = vst [vmem:[#allocation3 + $0xc8] sm:$0xff] %v3117
      %3148 = vst [vmem:[#allocation3 + $0xd0] sm:$0xff] %v3118
      %3149 = vst [vmem:[#allocation3 + $0xd8] sm:$0xff] %v3119
      %3150 = vst [vmem:[#allocation3 + $0xe0] sm:$0xff] %v3120
      %3151 = vst [vmem:[#allocation3 + $0xe8] sm:$0xff] %v3121
      %v3152 = vld [vmem:[#allocation3] sm:$0xff]
      %v3153 = vld [vmem:[#allocation3 + $0x8] sm:$0xff]
      %v3154 = vld [vmem:[#allocation3 + $0x18] sm:$0xff]
      %v3155 = vld [vmem:[#allocation3 + $0x20] sm:$0xff]
      %v3156 = vld [vmem:[#allocation3 + $0x30] sm:$0xff]
      %v3157 = vld [vmem:[#allocation3 + $0x38] sm:$0xff]
      %v3158 = vld [vmem:[#allocation3 + $0x48] sm:$0xff]
      %v3159 = vld [vmem:[#allocation3 + $0x50] sm:$0xff]
      %v3160 = vld [vmem:[#allocation3 + $0x60] sm:$0xff]
      %v3161 = vld [vmem:[#allocation3 + $0x68] sm:$0xff]
      %v3162 = vld [vmem:[#allocation3 + $0x78] sm:$0xff]
      %v3163 = vld [vmem:[#allocation3 + $0x80] sm:$0xff]
      %v3164 = vld [vmem:[#allocation3 + $0x90] sm:$0xff]
      %v3165 = vld [vmem:[#allocation3 + $0x98] sm:$0xff]
      %v3166 = vld [vmem:[#allocation3 + $0xa8] sm:$0xff]
      %v3167 = vld [vmem:[#allocation3 + $0xb0] sm:$0xff]
      %v3168 = vld [vmem:[#allocation3 + $0xc0] sm:$0xff]
      %v3169 = vld [vmem:[#allocation3 + $0xc8] sm:$0xff]
      %v3170 = vld [vmem:[#allocation3 + $0xd8] sm:$0xff]
      %v3171 = vld [vmem:[#allocation3 + $0xe0] sm:$0xff]
      %v3172 = vpack.c.bf16 %v3153, %v3152
      %v3173 = vpack.c.bf16 %v3155, %v3154
      %v3174 = vpack.c.bf16 %v3157, %v3156
      %v3175 = vpack.c.bf16 %v3159, %v3158
      %v3176 = vpack.c.bf16 %v3161, %v3160
      %v3177 = vpack.c.bf16 %v3163, %v3162
      %v3178 = vpack.c.bf16 %v3165, %v3164
      %v3179 = vpack.c.bf16 %v3167, %v3166
      %v3180 = vld [vmem:[%s4] sm:$0xf]
      %v3181 = vld [vmem:[%s4 + $0x4] sm:$0xf]
      %v3182 = vld [vmem:[%s4 + $0x8] sm:$0xf]
      %v3183 = vld [vmem:[%s4 + $0xc] sm:$0xf]
      %v3184 = vld [vmem:[%s4 + $0x10] sm:$0xf]
      %v3185 = vld [vmem:[%s4 + $0x14] sm:$0xf]
      %v3186 = vld [vmem:[%s4 + $0x18] sm:$0xf]
      %v3187 = vld [vmem:[%s4 + $0x1c] sm:$0xf]
      %v3188 = vld [vmem:[%s4 + $0x20] sm:$0xf]
      %v3189 = vld [vmem:[%s4 + $0x24] sm:$0xf]
      %v3190 = vld [vmem:[%s4 + $0x28] sm:$0xf]
      %v3191 = vld [vmem:[%s4 + $0x2c] sm:$0xf]
      %v3192 = vld [vmem:[%s4 + $0x30] sm:$0xf]
      %v3193 = vld [vmem:[%s4 + $0x34] sm:$0xf]
      %v3194 = vld [vmem:[%s4 + $0x38] sm:$0xf]
      %v3195 = vld [vmem:[%s4 + $0x3c] sm:$0xf]
      %v3196 = vpack.c.bf16 %v3169, %v3168
      %s3197 = scalar_lea.vmem %s4, 192
      %v3198 = vld [vmem:[%s3197] sm:$0xf]
      %v3199 = vld [vmem:[%s3197 + $0x4] sm:$0xf]
      %v3200 = vld [vmem:[%s3197 + $0x8] sm:$0xf]
      %v3201 = vld [vmem:[%s3197 + $0xc] sm:$0xf]
      %v3202 = vld [vmem:[%s3197 + $0x10] sm:$0xf]
      %v3203 = vld [vmem:[%s3197 + $0x14] sm:$0xf]
      %v3204 = vld [vmem:[%s3197 + $0x18] sm:$0xf]
      %v3205 = vld [vmem:[%s3197 + $0x1c] sm:$0xf]
      %v3206 = vld [vmem:[%s3197 + $0x20] sm:$0xf]
      %v3207 = vld [vmem:[%s3197 + $0x24] sm:$0xf]
      %v3208 = vld [vmem:[%s3197 + $0x28] sm:$0xf]
      %v3209 = vld [vmem:[%s3197 + $0x2c] sm:$0xf]
      %v3210 = vld [vmem:[%s3197 + $0x30] sm:$0xf]
      %v3211 = vld [vmem:[%s3197 + $0x34] sm:$0xf]
      %v3212 = vld [vmem:[%s3197 + $0x38] sm:$0xf]
      %v3213 = vld [vmem:[%s3197 + $0x3c] sm:$0xf]
      %v3230 = vunpack.c.l.b16 %v3198
      %v3231 = vunpack.c.l.b16 %v3199
      %v3232 = vunpack.c.l.b16 %v3200
      %v3233 = vunpack.c.l.b16 %v3201
      %v3234 = vunpack.c.l.b16 %v3202
      %v3235 = vunpack.c.l.b16 %v3203
      %v3236 = vunpack.c.l.b16 %v3204
      %v3237 = vunpack.c.l.b16 %v3205
      %v3238 = vunpack.c.l.b16 %v3206
      %v3239 = vunpack.c.l.b16 %v3207
      %v3240 = vunpack.c.l.b16 %v3208
      %v3241 = vunpack.c.l.b16 %v3209
      %v3242 = vunpack.c.l.b16 %v3210
      %v3243 = vunpack.c.l.b16 %v3211
      %v3244 = vunpack.c.l.b16 %v3212
      %v3245 = vunpack.c.l.b16 %v3213
      %v3246 = vpack.c.b16 %v3231, %v3230
      %v3247 = vpack.c.b16 %v3233, %v3232
      %v3248 = vpack.c.b16 %v3235, %v3234
      %v3249 = vpack.c.b16 %v3237, %v3236
      %v3250 = vpack.c.b16 %v3239, %v3238
      %v3251 = vpack.c.b16 %v3241, %v3240
      %v3252 = vpack.c.b16 %v3243, %v3242
      %v3253 = vpack.c.b16 %v3245, %v3244
      %3262 = vmatprep.subr.bf16.mxu0 0
      %3263 = vmatpush1.bf16.msra.mxu0 %v3246
      %3264 = vmatprep.subr.bf16.mxu0 0
      %3265 = vmatpush1.bf16.msra.mxu0 %v3247
      %3266 = vmatprep.subr.bf16.mxu0 0
      %3267 = vmatpush1.bf16.msra.mxu0 %v3248
      %3268 = vmatprep.subr.bf16.mxu0 0
      %3269 = vmatpush1.bf16.msra.mxu0 %v3249
      %3270 = vmatprep.subr.bf16.mxu0 0
      %3271 = vmatpush1.bf16.msra.mxu0 %v3250
      %3272 = vmatprep.subr.bf16.mxu0 0
      %3273 = vmatpush1.bf16.msra.mxu0 %v3251
      %3274 = vmatprep.subr.bf16.mxu0 0
      %3275 = vmatpush1.bf16.msra.mxu0 %v3252
      %3276 = vmatprep.subr.bf16.mxu0 0
      %3277 = vmatpush1.bf16.msra.mxu0 %v3253
      %3278 = vmatprep.subr.bf16.mxu0 0
      %3279 = vmatpush1.bf16.msra.mxu0 0
      %3280 = vmatprep.subr.bf16.mxu0 0
      %3281 = vmatpush1.bf16.msra.mxu0 0
      %3282 = vmatprep.subr.bf16.mxu0 0
      %3283 = vmatpush1.bf16.msra.mxu0 0
      %3284 = vmatprep.subr.bf16.mxu0 0
      %3285 = vmatpush1.bf16.msra.mxu0 0
      %3286 = vmatprep.subr.bf16.mxu0 0
      %3287 = vmatpush1.bf16.msra.mxu0 0
      %3288 = vmatprep.subr.bf16.mxu0 0
      %3289 = vmatpush1.bf16.msra.mxu0 0
      %3290 = vmatprep.subr.bf16.mxu0 0
      %3291 = vmatpush1.bf16.msra.mxu0 0
      %3292 = vmatprep.subr.bf16.mxu0 0
      %3293 = vmatpush1.bf16.msra.mxu0 0
      %3294 = vmatprep.mubr.bf16.mxu0 0
      %3295 = vmatmul.mubr.bf16.gmra.mrb[0].mxu0 %v3173
      %v3296 = vpop.f32.mrb[0].mxu0
      %v3297 = vadd.f32 0.0, %v3296
      %v3298 = vpop.f32.mrb[0].mxu0
      %v3299 = vpop.f32.mrb[0].mxu0
      %v3300 = vadd.f32 0.0, %v3299
      %v3301 = vpop.f32.mrb[0].mxu0
      %3302 = vmatprep.mubr.bf16.mxu0 0
      %3303 = vmatmul.mubr.bf16.gmra.mrb[0].mxu0 %v3174
      %v3304 = vpop.f32.mrb[0].mxu0
      %v3305 = vadd.f32 0.0, %v3304
      %v3306 = vpop.f32.mrb[0].mxu0
      %v3307 = vpop.f32.mrb[0].mxu0
      %v3308 = vadd.f32 0.0, %v3307
      %v3309 = vpop.f32.mrb[0].mxu0
      %3310 = vmatprep.mubr.bf16.mxu0 0
      %3311 = vmatmul.mubr.bf16.gmra.mrb[0].mxu0 %v3175
      %v3312 = vpop.f32.mrb[0].mxu0
      %v3313 = vadd.f32 0.0, %v3312
      %v3314 = vpop.f32.mrb[0].mxu0
      %v3315 = vpop.f32.mrb[0].mxu0
      %v3316 = vadd.f32 0.0, %v3315
      %v3317 = vpop.f32.mrb[0].mxu0
      %3318 = vmatprep.mubr.bf16.mxu0 0
      %3319 = vmatmul.mubr.bf16.gmra.mrb[0].mxu0 %v3176
      %v3320 = vpop.f32.mrb[0].mxu0
      %v3321 = vadd.f32 0.0, %v3320
      %v3322 = vpop.f32.mrb[0].mxu0
      %v3323 = vpop.f32.mrb[0].mxu0
      %v3324 = vadd.f32 0.0, %v3323
      %v3325 = vpop.f32.mrb[0].mxu0
      %3326 = vmatprep.mubr.bf16.mxu0 0
      %3327 = vmatmul.mubr.bf16.gmra.mrb[0].mxu0 %v3177
      %v3328 = vpop.f32.mrb[0].mxu0
      %v3329 = vadd.f32 0.0, %v3328
      %v3330 = vpop.f32.mrb[0].mxu0
      %v3331 = vpop.f32.mrb[0].mxu0
      %v3332 = vadd.f32 0.0, %v3331
      %v3333 = vpop.f32.mrb[0].mxu0
      %3334 = vmatprep.mubr.bf16.mxu0 0
      %3335 = vmatmul.mubr.bf16.gmra.mrb[0].mxu0 %v3178
      %v3336 = vpop.f32.mrb[0].mxu0
      %v3337 = vadd.f32 0.0, %v3336
      %v3338 = vpop.f32.mrb[0].mxu0
      %v3339 = vpop.f32.mrb[0].mxu0
      %v3340 = vadd.f32 0.0, %v3339
      %v3341 = vpop.f32.mrb[0].mxu0
      %3342 = vmatprep.mubr.bf16.mxu0 0
      %3343 = vmatmul.mubr.bf16.gmra.mrb[0].mxu0 %v3179
      %v3344 = vpop.f32.mrb[0].mxu0
      %v3345 = vadd.f32 0.0, %v3344
      %v3346 = vpop.f32.mrb[0].mxu0
      %v3347 = vpop.f32.mrb[0].mxu0
      %v3348 = vadd.f32 0.0, %v3347
      %v3349 = vpop.f32.mrb[0].mxu0
      %3350 = vmatprep.mubr.bf16.mxu0 0
      %3351 = vmatmul.mubr.bf16.gmra.mrb[0].mxu0 %v3196
      %v3352 = vpop.f32.mrb[0].mxu0
      %v3353 = vadd.f32 0.0, %v3352
      %v3354 = vpop.f32.mrb[0].mxu0
      %v3355 = vpop.f32.mrb[0].mxu0
      %v3356 = vadd.f32 0.0, %v3355
      %v3357 = vpop.f32.mrb[0].mxu0
      %3358 = vdwg.mxu0
      %v3375 = vunpack.c.l.b16 %v3180
      %v3376 = vunpack.c.l.b16 %v3181
      %v3377 = vunpack.c.l.b16 %v3182
      %v3378 = vunpack.c.l.b16 %v3183
      %v3379 = vunpack.c.l.b16 %v3184
      %v3380 = vunpack.c.l.b16 %v3185
      %v3381 = vunpack.c.l.b16 %v3186
      %v3382 = vunpack.c.l.b16 %v3187
      %v3383 = vunpack.c.l.b16 %v3188
      %v3384 = vunpack.c.l.b16 %v3189
      %v3385 = vunpack.c.l.b16 %v3190
      %v3386 = vunpack.c.l.b16 %v3191
      %v3387 = vunpack.c.l.b16 %v3192
      %v3388 = vunpack.c.l.b16 %v3193
      %v3389 = vunpack.c.l.b16 %v3194
      %v3390 = vunpack.c.l.b16 %v3195
      %v3391 = vpack.c.b16 %v3376, %v3375
      %v3392 = vpack.c.b16 %v3378, %v3377
      %v3393 = vpack.c.b16 %v3380, %v3379
      %v3394 = vpack.c.b16 %v3382, %v3381
      %v3395 = vpack.c.b16 %v3384, %v3383
      %v3396 = vpack.c.b16 %v3386, %v3385
      %v3397 = vpack.c.b16 %v3388, %v3387
      %v3398 = vpack.c.b16 %v3390, %v3389
      %3407 = vmatprep.subr.bf16.mxu0 0
      %3408 = vmatpush1.bf16.msra.mxu0 %v3391
      %3409 = vmatprep.subr.bf16.mxu0 0
      %3410 = vmatpush1.bf16.msra.mxu0 %v3392
      %3411 = vmatprep.subr.bf16.mxu0 0
      %3412 = vmatpush1.bf16.msra.mxu0 %v3393
      %3413 = vmatprep.subr.bf16.mxu0 0
      %3414 = vmatpush1.bf16.msra.mxu0 %v3394
      %3415 = vmatprep.subr.bf16.mxu0 0
      %3416 = vmatpush1.bf16.msra.mxu0 %v3395
      %3417 = vmatprep.subr.bf16.mxu0 0
      %3418 = vmatpush1.bf16.msra.mxu0 %v3396
      %3419 = vmatprep.subr.bf16.mxu0 0
      %3420 = vmatpush1.bf16.msra.mxu0 %v3397
      %3421 = vmatprep.subr.bf16.mxu0 0
      %3422 = vmatpush1.bf16.msra.mxu0 %v3398
      %3423 = vmatprep.subr.bf16.mxu0 0
      %3424 = vmatpush1.bf16.msra.mxu0 0
      %3425 = vmatprep.subr.bf16.mxu0 0
      %3426 = vmatpush1.bf16.msra.mxu0 0
      %3427 = vmatprep.subr.bf16.mxu0 0
      %3428 = vmatpush1.bf16.msra.mxu0 0
      %3429 = vmatprep.subr.bf16.mxu0 0
      %3430 = vmatpush1.bf16.msra.mxu0 0
      %3431 = vmatprep.subr.bf16.mxu0 0
      %3432 = vmatpush1.bf16.msra.mxu0 0
      %3433 = vmatprep.subr.bf16.mxu0 0
      %3434 = vmatpush1.bf16.msra.mxu0 0
      %3435 = vmatprep.subr.bf16.mxu0 0
      %3436 = vmatpush1.bf16.msra.mxu0 0
      %3437 = vmatprep.subr.bf16.mxu0 0
      %3438 = vmatpush1.bf16.msra.mxu0 0
      %3439 = vmatprep.mubr.bf16.mxu0 0
      %3440 = vmatmul.mubr.bf16.gmra.mrb[0].mxu0 %v3172
      %v3441 = vpop.f32.mrb[0].mxu0
      %v3442 = vadd.f32 %v3297, %v3441
      %v3443 = vpop.f32.mrb[0].mxu0
      %v3444 = vpop.f32.mrb[0].mxu0
      %v3445 = vadd.f32 %v3300, %v3444
      %v3446 = vpop.f32.mrb[0].mxu0
      %3447 = vmatprep.mubr.bf16.mxu0 0
      %3448 = vmatmul.mubr.bf16.gmra.mrb[0].mxu0 %v3173
      %v3449 = vpop.f32.mrb[0].mxu0
      %v3450 = vadd.f32 %v3305, %v3449
      %v3451 = vpop.f32.mrb[0].mxu0
      %v3452 = vpop.f32.mrb[0].mxu0
      %v3453 = vadd.f32 %v3308, %v3452
      %v3454 = vpop.f32.mrb[0].mxu0
      %3455 = vmatprep.mubr.bf16.mxu0 0
      %3456 = vmatmul.mubr.bf16.gmra.mrb[0].mxu0 %v3174
      %v3457 = vpop.f32.mrb[0].mxu0
      %v3458 = vadd.f32 %v3313, %v3457
      %v3459 = vpop.f32.mrb[0].mxu0
      %v3460 = vpop.f32.mrb[0].mxu0
      %v3461 = vadd.f32 %v3316, %v3460
      %v3462 = vpop.f32.mrb[0].mxu0
      %3463 = vmatprep.mubr.bf16.mxu0 0
      %3464 = vmatmul.mubr.bf16.gmra.mrb[0].mxu0 %v3175
      %v3465 = vpop.f32.mrb[0].mxu0
      %v3466 = vadd.f32 %v3321, %v3465
      %v3467 = vpop.f32.mrb[0].mxu0
      %v3468 = vpop.f32.mrb[0].mxu0
      %v3469 = vadd.f32 %v3324, %v3468
      %v3470 = vpop.f32.mrb[0].mxu0
      %3471 = vmatprep.mubr.bf16.mxu0 0
      %3472 = vmatmul.mubr.bf16.gmra.mrb[0].mxu0 %v3176
      %v3473 = vpop.f32.mrb[0].mxu0
      %v3474 = vadd.f32 %v3329, %v3473
      %v3475 = vpop.f32.mrb[0].mxu0
      %v3476 = vpop.f32.mrb[0].mxu0
      %v3477 = vadd.f32 %v3332, %v3476
      %v3478 = vpop.f32.mrb[0].mxu0
      %3479 = vmatprep.mubr.bf16.mxu0 0
      %3480 = vmatmul.mubr.bf16.gmra.mrb[0].mxu0 %v3177
      %v3481 = vpop.f32.mrb[0].mxu0
      %v3482 = vadd.f32 %v3337, %v3481
      %v3483 = vpop.f32.mrb[0].mxu0
      %v3484 = vpop.f32.mrb[0].mxu0
      %v3485 = vadd.f32 %v3340, %v3484
      %v3486 = vpop.f32.mrb[0].mxu0
      %3487 = vmatprep.mubr.bf16.mxu0 0
      %3488 = vmatmul.mubr.bf16.gmra.mrb[0].mxu0 %v3178
      %v3489 = vpop.f32.mrb[0].mxu0
      %v3490 = vadd.f32 %v3345, %v3489
      %v3491 = vpop.f32.mrb[0].mxu0
      %v3492 = vpop.f32.mrb[0].mxu0
      %v3493 = vadd.f32 %v3348, %v3492
      %v3494 = vpop.f32.mrb[0].mxu0
      %3495 = vmatprep.mubr.bf16.mxu0 0
      %3496 = vmatmul.mubr.bf16.gmra.mrb[0].mxu0 %v3179
      %v3497 = vpop.f32.mrb[0].mxu0
      %v3498 = vadd.f32 %v3353, %v3497
      %v3499 = vpop.f32.mrb[0].mxu0
      %v3500 = vpop.f32.mrb[0].mxu0
      %v3501 = vadd.f32 %v3356, %v3500
      %v3502 = vpop.f32.mrb[0].mxu0
      %3503 = vdwg.mxu0
      %v3504 = vpack.c.bf16 %v3171, %v3170
      %s3505 = scalar_lea.vmem %s4, 384
      %v3506 = vld [vmem:[%s3505] sm:$0xf]
      %v3507 = vld [vmem:[%s3505 + $0x4] sm:$0xf]
      %v3508 = vld [vmem:[%s3505 + $0x8] sm:$0xf]
      %v3509 = vld [vmem:[%s3505 + $0xc] sm:$0xf]
      %v3510 = vld [vmem:[%s3505 + $0x10] sm:$0xf]
      %v3511 = vld [vmem:[%s3505 + $0x14] sm:$0xf]
      %v3512 = vld [vmem:[%s3505 + $0x18] sm:$0xf]
      %v3513 = vld [vmem:[%s3505 + $0x1c] sm:$0xf]
      %v3514 = vld [vmem:[%s3505 + $0x20] sm:$0xf]
      %v3515 = vld [vmem:[%s3505 + $0x24] sm:$0xf]
      %v3516 = vld [vmem:[%s3505 + $0x28] sm:$0xf]
      %v3517 = vld [vmem:[%s3505 + $0x2c] sm:$0xf]
      %v3518 = vld [vmem:[%s3505 + $0x30] sm:$0xf]
      %v3519 = vld [vmem:[%s3505 + $0x34] sm:$0xf]
      %v3520 = vld [vmem:[%s3505 + $0x38] sm:$0xf]
      %v3521 = vld [vmem:[%s3505 + $0x3c] sm:$0xf]
      %v3538 = vunpack.c.l.b16 %v3506
      %v3539 = vunpack.c.l.b16 %v3507
      %v3540 = vunpack.c.l.b16 %v3508
      %v3541 = vunpack.c.l.b16 %v3509
      %v3542 = vunpack.c.l.b16 %v3510
      %v3543 = vunpack.c.l.b16 %v3511
      %v3544 = vunpack.c.l.b16 %v3512
      %v3545 = vunpack.c.l.b16 %v3513
      %v3546 = vunpack.c.l.b16 %v3514
      %v3547 = vunpack.c.l.b16 %v3515
      %v3548 = vunpack.c.l.b16 %v3516
      %v3549 = vunpack.c.l.b16 %v3517
      %v3550 = vunpack.c.l.b16 %v3518
      %v3551 = vunpack.c.l.b16 %v3519
      %v3552 = vunpack.c.l.b16 %v3520
      %v3553 = vunpack.c.l.b16 %v3521
      %v3554 = vpack.c.b16 %v3539, %v3538
      %v3555 = vpack.c.b16 %v3541, %v3540
      %v3556 = vpack.c.b16 %v3543, %v3542
      %v3557 = vpack.c.b16 %v3545, %v3544
      %v3558 = vpack.c.b16 %v3547, %v3546
      %v3559 = vpack.c.b16 %v3549, %v3548
      %v3560 = vpack.c.b16 %v3551, %v3550
      %v3561 = vpack.c.b16 %v3553, %v3552
      %3570 = vmatprep.subr.bf16.mxu0 0
      %3571 = vmatpush1.bf16.msra.mxu0 %v3554
      %3572 = vmatprep.subr.bf16.mxu0 0
      %3573 = vmatpush1.bf16.msra.mxu0 %v3555
      %3574 = vmatprep.subr.bf16.mxu0 0
      %3575 = vmatpush1.bf16.msra.mxu0 %v3556
      %3576 = vmatprep.subr.bf16.mxu0 0
      %3577 = vmatpush1.bf16.msra.mxu0 %v3557
      %3578 = vmatprep.subr.bf16.mxu0 0
      %3579 = vmatpush1.bf16.msra.mxu0 %v3558
      %3580 = vmatprep.subr.bf16.mxu0 0
      %3581 = vmatpush1.bf16.msra.mxu0 %v3559
      %3582 = vmatprep.subr.bf16.mxu0 0
      %3583 = vmatpush1.bf16.msra.mxu0 %v3560
      %3584 = vmatprep.subr.bf16.mxu0 0
      %3585 = vmatpush1.bf16.msra.mxu0 %v3561
      %3586 = vmatprep.subr.bf16.mxu0 0
      %3587 = vmatpush1.bf16.msra.mxu0 0
      %3588 = vmatprep.subr.bf16.mxu0 0
      %3589 = vmatpush1.bf16.msra.mxu0 0
      %3590 = vmatprep.subr.bf16.mxu0 0
      %3591 = vmatpush1.bf16.msra.mxu0 0
      %3592 = vmatprep.subr.bf16.mxu0 0
      %3593 = vmatpush1.bf16.msra.mxu0 0
      %3594 = vmatprep.subr.bf16.mxu0 0
      %3595 = vmatpush1.bf16.msra.mxu0 0
      %3596 = vmatprep.subr.bf16.mxu0 0
      %3597 = vmatpush1.bf16.msra.mxu0 0
      %3598 = vmatprep.subr.bf16.mxu0 0
      %3599 = vmatpush1.bf16.msra.mxu0 0
      %3600 = vmatprep.subr.bf16.mxu0 0
      %3601 = vmatpush1.bf16.msra.mxu0 0
      %3602 = vmatprep.mubr.bf16.mxu0 0
      %3603 = vmatmul.mubr.bf16.gmra.mrb[0].mxu0 %v3174
      %v3604 = vpop.f32.mrb[0].mxu0
      %v3605 = vadd.f32 0.0, %v3604
      %v3606 = vpop.f32.mrb[0].mxu0
      %v3607 = vpop.f32.mrb[0].mxu0
      %v3608 = vadd.f32 0.0, %v3607
      %v3609 = vpop.f32.mrb[0].mxu0
      %3610 = vmatprep.mubr.bf16.mxu0 0
      %3611 = vmatmul.mubr.bf16.gmra.mrb[0].mxu0 %v3175
      %v3612 = vpop.f32.mrb[0].mxu0
      %v3613 = vadd.f32 0.0, %v3612
      %v3614 = vpop.f32.mrb[0].mxu0
      %v3615 = vpop.f32.mrb[0].mxu0
      %v3616 = vadd.f32 0.0, %v3615
      %v3617 = vpop.f32.mrb[0].mxu0
      %3618 = vmatprep.mubr.bf16.mxu0 0
      %3619 = vmatmul.mubr.bf16.gmra.mrb[0].mxu0 %v3176
      %v3620 = vpop.f32.mrb[0].mxu0
      %v3621 = vadd.f32 0.0, %v3620
      %v3622 = vpop.f32.mrb[0].mxu0
      %v3623 = vpop.f32.mrb[0].mxu0
      %v3624 = vadd.f32 0.0, %v3623
      %v3625 = vpop.f32.mrb[0].mxu0
      %3626 = vmatprep.mubr.bf16.mxu0 0
      %3627 = vmatmul.mubr.bf16.gmra.mrb[0].mxu0 %v3177
      %v3628 = vpop.f32.mrb[0].mxu0
      %v3629 = vadd.f32 0.0, %v3628
      %v3630 = vpop.f32.mrb[0].mxu0
      %v3631 = vpop.f32.mrb[0].mxu0
      %v3632 = vadd.f32 0.0, %v3631
      %v3633 = vpop.f32.mrb[0].mxu0
      %3634 = vmatprep.mubr.bf16.mxu0 0
      %3635 = vmatmul.mubr.bf16.gmra.mrb[0].mxu0 %v3178
      %v3636 = vpop.f32.mrb[0].mxu0
      %v3637 = vadd.f32 0.0, %v3636
      %v3638 = vpop.f32.mrb[0].mxu0
      %v3639 = vpop.f32.mrb[0].mxu0
      %v3640 = vadd.f32 0.0, %v3639
      %v3641 = vpop.f32.mrb[0].mxu0
      %3642 = vmatprep.mubr.bf16.mxu0 0
      %3643 = vmatmul.mubr.bf16.gmra.mrb[0].mxu0 %v3179
      %v3644 = vpop.f32.mrb[0].mxu0
      %v3645 = vadd.f32 0.0, %v3644
      %v3646 = vpop.f32.mrb[0].mxu0
      %v3647 = vpop.f32.mrb[0].mxu0
      %v3648 = vadd.f32 0.0, %v3647
      %v3649 = vpop.f32.mrb[0].mxu0
      %3650 = vmatprep.mubr.bf16.mxu0 0
      %3651 = vmatmul.mubr.bf16.gmra.mrb[0].mxu0 %v3196
      %v3652 = vpop.f32.mrb[0].mxu0
      %v3653 = vadd.f32 0.0, %v3652
      %v3654 = vpop.f32.mrb[0].mxu0
      %v3655 = vpop.f32.mrb[0].mxu0
      %v3656 = vadd.f32 0.0, %v3655
      %v3657 = vpop.f32.mrb[0].mxu0
      %3658 = vmatprep.mubr.bf16.mxu0 0
      %3659 = vmatmul.mubr.bf16.gmra.mrb[0].mxu0 %v3504
      %v3660 = vpop.f32.mrb[0].mxu0
      %v3661 = vadd.f32 0.0, %v3660
      %v3662 = vpop.f32.mrb[0].mxu0
      %v3663 = vpop.f32.mrb[0].mxu0
      %v3664 = vadd.f32 0.0, %v3663
      %v3665 = vpop.f32.mrb[0].mxu0
      %3666 = vdwg.mxu0
      %v3667 = vadd.f32 %v3442, %v3605
      %v3668 = vadd.f32 %v3445, %v3608
      %v3669 = vadd.f32 %v3450, %v3613
      %v3670 = vadd.f32 %v3453, %v3616
      %v3671 = vadd.f32 %v3458, %v3621
      %v3672 = vadd.f32 %v3461, %v3624
      %v3673 = vadd.f32 %v3466, %v3629
      %v3674 = vadd.f32 %v3469, %v3632
      %v3675 = vadd.f32 %v3474, %v3637
      %v3676 = vadd.f32 %v3477, %v3640
      %v3677 = vadd.f32 %v3482, %v3645
      %v3678 = vadd.f32 %v3485, %v3648
      %v3679 = vadd.f32 %v3490, %v3653
      %v3680 = vadd.f32 %v3493, %v3656
      %v3681 = vadd.f32 %v3498, %v3661
      %v3682 = vadd.f32 %v3501, %v3664
      %v3683 = vld [vmem:[#allocation3 + $0x1] sm:$0xff]
      %v3684 = vld [vmem:[#allocation3 + $0x9] sm:$0xff]
      %v3685 = vld [vmem:[#allocation3 + $0x19] sm:$0xff]
      %v3686 = vld [vmem:[#allocation3 + $0x21] sm:$0xff]
      %v3687 = vld [vmem:[#allocation3 + $0x31] sm:$0xff]
      %v3688 = vld [vmem:[#allocation3 + $0x39] sm:$0xff]
      %v3689 = vld [vmem:[#allocation3 + $0x49] sm:$0xff]
      %v3690 = vld [vmem:[#allocation3 + $0x51] sm:$0xff]
      %v3691 = vld [vmem:[#allocation3 + $0x61] sm:$0xff]
      %v3692 = vld [vmem:[#allocation3 + $0x69] sm:$0xff]
      %v3693 = vld [vmem:[#allocation3 + $0x79] sm:$0xff]
      %v3694 = vld [vmem:[#allocation3 + $0x81] sm:$0xff]
      %v3695 = vld [vmem:[#allocation3 + $0x91] sm:$0xff]
      %v3696 = vld [vmem:[#allocation3 + $0x99] sm:$0xff]
      %v3697 = vld [vmem:[#allocation3 + $0xa9] sm:$0xff]
      %v3698 = vld [vmem:[#allocation3 + $0xb1] sm:$0xff]
      %v3699 = vld [vmem:[#allocation3 + $0xc1] sm:$0xff]
      %v3700 = vld [vmem:[#allocation3 + $0xc9] sm:$0xff]
      %v3701 = vld [vmem:[#allocation3 + $0xd9] sm:$0xff]
      %v3702 = vld [vmem:[#allocation3 + $0xe1] sm:$0xff]
      %v3703 = vpack.c.bf16 %v3684, %v3683
      %v3704 = vpack.c.bf16 %v3686, %v3685
      %v3705 = vpack.c.bf16 %v3688, %v3687
      %v3706 = vpack.c.bf16 %v3690, %v3689
      %v3707 = vpack.c.bf16 %v3692, %v3691
      %v3708 = vpack.c.bf16 %v3694, %v3693
      %v3709 = vpack.c.bf16 %v3696, %v3695
      %v3710 = vpack.c.bf16 %v3698, %v3697
      %s3711 = scalar_lea.vmem %s4, 64
      %v3712 = vld [vmem:[%s3711] sm:$0xf]
      %v3713 = vld [vmem:[%s3711 + $0x4] sm:$0xf]
      %v3714 = vld [vmem:[%s3711 + $0x8] sm:$0xf]
      %v3715 = vld [vmem:[%s3711 + $0xc] sm:$0xf]
      %v3716 = vld [vmem:[%s3711 + $0x10] sm:$0xf]
      %v3717 = vld [vmem:[%s3711 + $0x14] sm:$0xf]
      %v3718 = vld [vmem:[%s3711 + $0x18] sm:$0xf]
      %v3719 = vld [vmem:[%s3711 + $0x1c] sm:$0xf]
      %v3720 = vld [vmem:[%s3711 + $0x20] sm:$0xf]
      %v3721 = vld [vmem:[%s3711 + $0x24] sm:$0xf]
      %v3722 = vld [vmem:[%s3711 + $0x28] sm:$0xf]
      %v3723 = vld [vmem:[%s3711 + $0x2c] sm:$0xf]
      %v3724 = vld [vmem:[%s3711 + $0x30] sm:$0xf]
      %v3725 = vld [vmem:[%s3711 + $0x34] sm:$0xf]
      %v3726 = vld [vmem:[%s3711 + $0x38] sm:$0xf]
      %v3727 = vld [vmem:[%s3711 + $0x3c] sm:$0xf]
      %v3744 = vunpack.c.l.b16 %v3712
      %v3745 = vunpack.c.l.b16 %v3713
      %v3746 = vunpack.c.l.b16 %v3714
      %v3747 = vunpack.c.l.b16 %v3715
      %v3748 = vunpack.c.l.b16 %v3716
      %v3749 = vunpack.c.l.b16 %v3717
      %v3750 = vunpack.c.l.b16 %v3718
      %v3751 = vunpack.c.l.b16 %v3719
      %v3752 = vunpack.c.l.b16 %v3720
      %v3753 = vunpack.c.l.b16 %v3721
      %v3754 = vunpack.c.l.b16 %v3722
      %v3755 = vunpack.c.l.b16 %v3723
      %v3756 = vunpack.c.l.b16 %v3724
      %v3757 = vunpack.c.l.b16 %v3725
      %v3758 = vunpack.c.l.b16 %v3726
      %v3759 = vunpack.c.l.b16 %v3727
      %v3760 = vpack.c.b16 %v3745, %v3744
      %v3761 = vpack.c.b16 %v3747, %v3746
      %v3762 = vpack.c.b16 %v3749, %v3748
      %v3763 = vpack.c.b16 %v3751, %v3750
      %v3764 = vpack.c.b16 %v3753, %v3752
      %v3765 = vpack.c.b16 %v3755, %v3754
      %v3766 = vpack.c.b16 %v3757, %v3756
      %v3767 = vpack.c.b16 %v3759, %v3758
      %3776 = vmatprep.subr.bf16.mxu0 0
      %3777 = vmatpush1.bf16.msra.mxu0 %v3760
      %3778 = vmatprep.subr.bf16.mxu0 0
      %3779 = vmatpush1.bf16.msra.mxu0 %v3761
      %3780 = vmatprep.subr.bf16.mxu0 0
      %3781 = vmatpush1.bf16.msra.mxu0 %v3762
      %3782 = vmatprep.subr.bf16.mxu0 0
      %3783 = vmatpush1.bf16.msra.mxu0 %v3763
      %3784 = vmatprep.subr.bf16.mxu0 0
      %3785 = vmatpush1.bf16.msra.mxu0 %v3764
      %3786 = vmatprep.subr.bf16.mxu0 0
      %3787 = vmatpush1.bf16.msra.mxu0 %v3765
      %3788 = vmatprep.subr.bf16.mxu0 0
      %3789 = vmatpush1.bf16.msra.mxu0 %v3766
      %3790 = vmatprep.subr.bf16.mxu0 0
      %3791 = vmatpush1.bf16.msra.mxu0 %v3767
      %3792 = vmatprep.subr.bf16.mxu0 0
      %3793 = vmatpush1.bf16.msra.mxu0 0
      %3794 = vmatprep.subr.bf16.mxu0 0
      %3795 = vmatpush1.bf16.msra.mxu0 0
      %3796 = vmatprep.subr.bf16.mxu0 0
      %3797 = vmatpush1.bf16.msra.mxu0 0
      %3798 = vmatprep.subr.bf16.mxu0 0
      %3799 = vmatpush1.bf16.msra.mxu0 0
      %3800 = vmatprep.subr.bf16.mxu0 0
      %3801 = vmatpush1.bf16.msra.mxu0 0
      %3802 = vmatprep.subr.bf16.mxu0 0
      %3803 = vmatpush1.bf16.msra.mxu0 0
      %3804 = vmatprep.subr.bf16.mxu0 0
      %3805 = vmatpush1.bf16.msra.mxu0 0
      %3806 = vmatprep.subr.bf16.mxu0 0
      %3807 = vmatpush1.bf16.msra.mxu0 0
      %3808 = vmatprep.mubr.bf16.mxu0 0
      %3809 = vmatmul.mubr.bf16.gmra.mrb[0].mxu0 %v3703
      %v3810 = vpop.f32.mrb[0].mxu0
      %v3811 = vadd.f32 0.0, %v3810
      %v3812 = vpop.f32.mrb[0].mxu0
      %v3813 = vpop.f32.mrb[0].mxu0
      %v3814 = vadd.f32 0.0, %v3813
      %v3815 = vpop.f32.mrb[0].mxu0
      %3816 = vmatprep.mubr.bf16.mxu0 0
      %3817 = vmatmul.mubr.bf16.gmra.mrb[0].mxu0 %v3704
      %v3818 = vpop.f32.mrb[0].mxu0
      %v3819 = vadd.f32 0.0, %v3818
      %v3820 = vpop.f32.mrb[0].mxu0
      %v3821 = vpop.f32.mrb[0].mxu0
      %v3822 = vadd.f32 0.0, %v3821
      %v3823 = vpop.f32.mrb[0].mxu0
      %3824 = vmatprep.mubr.bf16.mxu0 0
      %3825 = vmatmul.mubr.bf16.gmra.mrb[0].mxu0 %v3705
      %v3826 = vpop.f32.mrb[0].mxu0
      %v3827 = vadd.f32 0.0, %v3826
      %v3828 = vpop.f32.mrb[0].mxu0
      %v3829 = vpop.f32.mrb[0].mxu0
      %v3830 = vadd.f32 0.0, %v3829
      %v3831 = vpop.f32.mrb[0].mxu0
      %3832 = vmatprep.mubr.bf16.mxu0 0
      %3833 = vmatmul.mubr.bf16.gmra.mrb[0].mxu0 %v3706
      %v3834 = vpop.f32.mrb[0].mxu0
      %v3835 = vadd.f32 0.0, %v3834
      %v3836 = vpop.f32.mrb[0].mxu0
      %v3837 = vpop.f32.mrb[0].mxu0
      %v3838 = vadd.f32 0.0, %v3837
      %v3839 = vpop.f32.mrb[0].mxu0
      %3840 = vmatprep.mubr.bf16.mxu0 0
      %3841 = vmatmul.mubr.bf16.gmra.mrb[0].mxu0 %v3707
      %v3842 = vpop.f32.mrb[0].mxu0
      %v3843 = vadd.f32 0.0, %v3842
      %v3844 = vpop.f32.mrb[0].mxu0
      %v3845 = vpop.f32.mrb[0].mxu0
      %v3846 = vadd.f32 0.0, %v3845
      %v3847 = vpop.f32.mrb[0].mxu0
      %3848 = vmatprep.mubr.bf16.mxu0 0
      %3849 = vmatmul.mubr.bf16.gmra.mrb[0].mxu0 %v3708
      %v3850 = vpop.f32.mrb[0].mxu0
      %v3851 = vadd.f32 0.0, %v3850
      %v3852 = vpop.f32.mrb[0].mxu0
      %v3853 = vpop.f32.mrb[0].mxu0
      %v3854 = vadd.f32 0.0, %v3853
      %v3855 = vpop.f32.mrb[0].mxu0
      %3856 = vmatprep.mubr.bf16.mxu0 0
      %3857 = vmatmul.mubr.bf16.gmra.mrb[0].mxu0 %v3709
      %v3858 = vpop.f32.mrb[0].mxu0
      %v3859 = vadd.f32 0.0, %v3858
      %v3860 = vpop.f32.mrb[0].mxu0
      %v3861 = vpop.f32.mrb[0].mxu0
      %v3862 = vadd.f32 0.0, %v3861
      %v3863 = vpop.f32.mrb[0].mxu0
      %3864 = vmatprep.mubr.bf16.mxu0 0
      %3865 = vmatmul.mubr.bf16.gmra.mrb[0].mxu0 %v3710
      %v3866 = vpop.f32.mrb[0].mxu0
      %v3867 = vadd.f32 0.0, %v3866
      %v3868 = vpop.f32.mrb[0].mxu0
      %v3869 = vpop.f32.mrb[0].mxu0
      %v3870 = vadd.f32 0.0, %v3869
      %v3871 = vpop.f32.mrb[0].mxu0
      %3872 = vdwg.mxu0
      %v3873 = vadd.f32 %v3667, %v3811
      %v3874 = vadd.f32 %v3668, %v3814
      %v3875 = vadd.f32 %v3669, %v3819
      %v3876 = vadd.f32 %v3670, %v3822
      %v3877 = vadd.f32 %v3671, %v3827
      %v3878 = vadd.f32 %v3672, %v3830
      %v3879 = vadd.f32 %v3673, %v3835
      %v3880 = vadd.f32 %v3674, %v3838
      %v3881 = vadd.f32 %v3675, %v3843
      %v3882 = vadd.f32 %v3676, %v3846
      %v3883 = vadd.f32 %v3677, %v3851
      %v3884 = vadd.f32 %v3678, %v3854
      %v3885 = vadd.f32 %v3679, %v3859
      %v3886 = vadd.f32 %v3680, %v3862
      %v3887 = vadd.f32 %v3681, %v3867
      %v3888 = vadd.f32 %v3682, %v3870
      %v3889 = vpack.c.bf16 %v3700, %v3699
      %s3890 = scalar_lea.vmem %s4, 256
      %v3891 = vld [vmem:[%s3890] sm:$0xf]
      %v3892 = vld [vmem:[%s3890 + $0x4] sm:$0xf]
      %v3893 = vld [vmem:[%s3890 + $0x8] sm:$0xf]
      %v3894 = vld [vmem:[%s3890 + $0xc] sm:$0xf]
      %v3895 = vld [vmem:[%s3890 + $0x10] sm:$0xf]
      %v3896 = vld [vmem:[%s3890 + $0x14] sm:$0xf]
      %v3897 = vld [vmem:[%s3890 + $0x18] sm:$0xf]
      %v3898 = vld [vmem:[%s3890 + $0x1c] sm:$0xf]
      %v3899 = vld [vmem:[%s3890 + $0x20] sm:$0xf]
      %v3900 = vld [vmem:[%s3890 + $0x24] sm:$0xf]
      %v3901 = vld [vmem:[%s3890 + $0x28] sm:$0xf]
      %v3902 = vld [vmem:[%s3890 + $0x2c] sm:$0xf]
      %v3903 = vld [vmem:[%s3890 + $0x30] sm:$0xf]
      %v3904 = vld [vmem:[%s3890 + $0x34] sm:$0xf]
      %v3905 = vld [vmem:[%s3890 + $0x38] sm:$0xf]
      %v3906 = vld [vmem:[%s3890 + $0x3c] sm:$0xf]
      %v3923 = vunpack.c.l.b16 %v3891
      %v3924 = vunpack.c.l.b16 %v3892
      %v3925 = vunpack.c.l.b16 %v3893
      %v3926 = vunpack.c.l.b16 %v3894
      %v3927 = vunpack.c.l.b16 %v3895
      %v3928 = vunpack.c.l.b16 %v3896
      %v3929 = vunpack.c.l.b16 %v3897
      %v3930 = vunpack.c.l.b16 %v3898
      %v3931 = vunpack.c.l.b16 %v3899
      %v3932 = vunpack.c.l.b16 %v3900
      %v3933 = vunpack.c.l.b16 %v3901
      %v3934 = vunpack.c.l.b16 %v3902
      %v3935 = vunpack.c.l.b16 %v3903
      %v3936 = vunpack.c.l.b16 %v3904
      %v3937 = vunpack.c.l.b16 %v3905
      %v3938 = vunpack.c.l.b16 %v3906
      %v3939 = vpack.c.b16 %v3924, %v3923
      %v3940 = vpack.c.b16 %v3926, %v3925
      %v3941 = vpack.c.b16 %v3928, %v3927
      %v3942 = vpack.c.b16 %v3930, %v3929
      %v3943 = vpack.c.b16 %v3932, %v3931
      %v3944 = vpack.c.b16 %v3934, %v3933
      %v3945 = vpack.c.b16 %v3936, %v3935
      %v3946 = vpack.c.b16 %v3938, %v3937
      %3955 = vmatprep.subr.bf16.mxu0 0
      %3956 = vmatpush1.bf16.msra.mxu0 %v3939
      %3957 = vmatprep.subr.bf16.mxu0 0
      %3958 = vmatpush1.bf16.msra.mxu0 %v3940
      %3959 = vmatprep.subr.bf16.mxu0 0
      %3960 = vmatpush1.bf16.msra.mxu0 %v3941
      %3961 = vmatprep.subr.bf16.mxu0 0
      %3962 = vmatpush1.bf16.msra.mxu0 %v3942
      %3963 = vmatprep.subr.bf16.mxu0 0
      %3964 = vmatpush1.bf16.msra.mxu0 %v3943
      %3965 = vmatprep.subr.bf16.mxu0 0
      %3966 = vmatpush1.bf16.msra.mxu0 %v3944
      %3967 = vmatprep.subr.bf16.mxu0 0
      %3968 = vmatpush1.bf16.msra.mxu0 %v3945
      %3969 = vmatprep.subr.bf16.mxu0 0
      %3970 = vmatpush1.bf16.msra.mxu0 %v3946
      %3971 = vmatprep.subr.bf16.mxu0 0
      %3972 = vmatpush1.bf16.msra.mxu0 0
      %3973 = vmatprep.subr.bf16.mxu0 0
      %3974 = vmatpush1.bf16.msra.mxu0 0
      %3975 = vmatprep.subr.bf16.mxu0 0
      %3976 = vmatpush1.bf16.msra.mxu0 0
      %3977 = vmatprep.subr.bf16.mxu0 0
      %3978 = vmatpush1.bf16.msra.mxu0 0
      %3979 = vmatprep.subr.bf16.mxu0 0
      %3980 = vmatpush1.bf16.msra.mxu0 0
      %3981 = vmatprep.subr.bf16.mxu0 0
      %3982 = vmatpush1.bf16.msra.mxu0 0
      %3983 = vmatprep.subr.bf16.mxu0 0
      %3984 = vmatpush1.bf16.msra.mxu0 0
      %3985 = vmatprep.subr.bf16.mxu0 0
      %3986 = vmatpush1.bf16.msra.mxu0 0
      %3987 = vmatprep.mubr.bf16.mxu0 0
      %3988 = vmatmul.mubr.bf16.gmra.mrb[0].mxu0 %v3704
      %v3989 = vpop.f32.mrb[0].mxu0
      %v3990 = vadd.f32 0.0, %v3989
      %v3991 = vpop.f32.mrb[0].mxu0
      %v3992 = vpop.f32.mrb[0].mxu0
      %v3993 = vadd.f32 0.0, %v3992
      %v3994 = vpop.f32.mrb[0].mxu0
      %3995 = vmatprep.mubr.bf16.mxu0 0
      %3996 = vmatmul.mubr.bf16.gmra.mrb[0].mxu0 %v3705
      %v3997 = vpop.f32.mrb[0].mxu0
      %v3998 = vadd.f32 0.0, %v3997
      %v3999 = vpop.f32.mrb[0].mxu0
      %v4000 = vpop.f32.mrb[0].mxu0
      %v4001 = vadd.f32 0.0, %v4000
      %v4002 = vpop.f32.mrb[0].mxu0
      %4003 = vmatprep.mubr.bf16.mxu0 0
      %4004 = vmatmul.mubr.bf16.gmra.mrb[0].mxu0 %v3706
      %v4005 = vpop.f32.mrb[0].mxu0
      %v4006 = vadd.f32 0.0, %v4005
      %v4007 = vpop.f32.mrb[0].mxu0
      %v4008 = vpop.f32.mrb[0].mxu0
      %v4009 = vadd.f32 0.0, %v4008
      %v4010 = vpop.f32.mrb[0].mxu0
      %4011 = vmatprep.mubr.bf16.mxu0 0
      %4012 = vmatmul.mubr.bf16.gmra.mrb[0].mxu0 %v3707
      %v4013 = vpop.f32.mrb[0].mxu0
      %v4014 = vadd.f32 0.0, %v4013
      %v4015 = vpop.f32.mrb[0].mxu0
      %v4016 = vpop.f32.mrb[0].mxu0
      %v4017 = vadd.f32 0.0, %v4016
      %v4018 = vpop.f32.mrb[0].mxu0
      %4019 = vmatprep.mubr.bf16.mxu0 0
      %4020 = vmatmul.mubr.bf16.gmra.mrb[0].mxu0 %v3708
      %v4021 = vpop.f32.mrb[0].mxu0
      %v4022 = vadd.f32 0.0, %v4021
      %v4023 = vpop.f32.mrb[0].mxu0
      %v4024 = vpop.f32.mrb[0].mxu0
      %v4025 = vadd.f32 0.0, %v4024
      %v4026 = vpop.f32.mrb[0].mxu0
      %4027 = vmatprep.mubr.bf16.mxu0 0
      %4028 = vmatmul.mubr.bf16.gmra.mrb[0].mxu0 %v3709
      %v4029 = vpop.f32.mrb[0].mxu0
      %v4030 = vadd.f32 0.0, %v4029
      %v4031 = vpop.f32.mrb[0].mxu0
      %v4032 = vpop.f32.mrb[0].mxu0
      %v4033 = vadd.f32 0.0, %v4032
      %v4034 = vpop.f32.mrb[0].mxu0
      %4035 = vmatprep.mubr.bf16.mxu0 0
      %4036 = vmatmul.mubr.bf16.gmra.mrb[0].mxu0 %v3710
      %v4037 = vpop.f32.mrb[0].mxu0
      %v4038 = vadd.f32 0.0, %v4037
      %v4039 = vpop.f32.mrb[0].mxu0
      %v4040 = vpop.f32.mrb[0].mxu0
      %v4041 = vadd.f32 0.0, %v4040
      %v4042 = vpop.f32.mrb[0].mxu0
      %4043 = vmatprep.mubr.bf16.mxu0 0
      %4044 = vmatmul.mubr.bf16.gmra.mrb[0].mxu0 %v3889
      %v4045 = vpop.f32.mrb[0].mxu0
      %v4046 = vadd.f32 0.0, %v4045
      %v4047 = vpop.f32.mrb[0].mxu0
      %v4048 = vpop.f32.mrb[0].mxu0
      %v4049 = vadd.f32 0.0, %v4048
      %v4050 = vpop.f32.mrb[0].mxu0
      %4051 = vdwg.mxu0
      %v4052 = vadd.f32 %v3873, %v3990
      %v4053 = vadd.f32 %v3874, %v3993
      %v4054 = vadd.f32 %v3875, %v3998
      %v4055 = vadd.f32 %v3876, %v4001
      %v4056 = vadd.f32 %v3877, %v4006
      %v4057 = vadd.f32 %v3878, %v4009
      %v4058 = vadd.f32 %v3879, %v4014
      %v4059 = vadd.f32 %v3880, %v4017
      %v4060 = vadd.f32 %v3881, %v4022
      %v4061 = vadd.f32 %v3882, %v4025
      %v4062 = vadd.f32 %v3883, %v4030
      %v4063 = vadd.f32 %v3884, %v4033
      %v4064 = vadd.f32 %v3885, %v4038
      %v4065 = vadd.f32 %v3886, %v4041
      %v4066 = vadd.f32 %v3887, %v4046
      %v4067 = vadd.f32 %v3888, %v4049
      %v4068 = vpack.c.bf16 %v3702, %v3701
      %s4069 = scalar_lea.vmem %s4, 448
      %v4070 = vld [vmem:[%s4069] sm:$0xf]
      %v4071 = vld [vmem:[%s4069 + $0x4] sm:$0xf]
      %v4072 = vld [vmem:[%s4069 + $0x8] sm:$0xf]
      %v4073 = vld [vmem:[%s4069 + $0xc] sm:$0xf]
      %v4074 = vld [vmem:[%s4069 + $0x10] sm:$0xf]
      %v4075 = vld [vmem:[%s4069 + $0x14] sm:$0xf]
      %v4076 = vld [vmem:[%s4069 + $0x18] sm:$0xf]
      %v4077 = vld [vmem:[%s4069 + $0x1c] sm:$0xf]
      %v4078 = vld [vmem:[%s4069 + $0x20] sm:$0xf]
      %v4079 = vld [vmem:[%s4069 + $0x24] sm:$0xf]
      %v4080 = vld [vmem:[%s4069 + $0x28] sm:$0xf]
      %v4081 = vld [vmem:[%s4069 + $0x2c] sm:$0xf]
      %v4082 = vld [vmem:[%s4069 + $0x30] sm:$0xf]
      %v4083 = vld [vmem:[%s4069 + $0x34] sm:$0xf]
      %v4084 = vld [vmem:[%s4069 + $0x38] sm:$0xf]
      %v4085 = vld [vmem:[%s4069 + $0x3c] sm:$0xf]
      %v4102 = vunpack.c.l.b16 %v4070
      %v4103 = vunpack.c.l.b16 %v4071
      %v4104 = vunpack.c.l.b16 %v4072
      %v4105 = vunpack.c.l.b16 %v4073
      %v4106 = vunpack.c.l.b16 %v4074
      %v4107 = vunpack.c.l.b16 %v4075
      %v4108 = vunpack.c.l.b16 %v4076
      %v4109 = vunpack.c.l.b16 %v4077
      %v4110 = vunpack.c.l.b16 %v4078
      %v4111 = vunpack.c.l.b16 %v4079
      %v4112 = vunpack.c.l.b16 %v4080
      %v4113 = vunpack.c.l.b16 %v4081
      %v4114 = vunpack.c.l.b16 %v4082
      %v4115 = vunpack.c.l.b16 %v4083
      %v4116 = vunpack.c.l.b16 %v4084
      %v4117 = vunpack.c.l.b16 %v4085
      %v4118 = vpack.c.b16 %v4103, %v4102
      %v4119 = vpack.c.b16 %v4105, %v4104
      %v4120 = vpack.c.b16 %v4107, %v4106
      %v4121 = vpack.c.b16 %v4109, %v4108
      %v4122 = vpack.c.b16 %v4111, %v4110
      %v4123 = vpack.c.b16 %v4113, %v4112
      %v4124 = vpack.c.b16 %v4115, %v4114
      %v4125 = vpack.c.b16 %v4117, %v4116
      %4134 = vmatprep.subr.bf16.mxu0 0
      %4135 = vmatpush1.bf16.msra.mxu0 %v4118
      %4136 = vmatprep.subr.bf16.mxu0 0
      %4137 = vmatpush1.bf16.msra.mxu0 %v4119
      %4138 = vmatprep.subr.bf16.mxu0 0
      %4139 = vmatpush1.bf16.msra.mxu0 %v4120
      %4140 = vmatprep.subr.bf16.mxu0 0
      %4141 = vmatpush1.bf16.msra.mxu0 %v4121
      %4142 = vmatprep.subr.bf16.mxu0 0
      %4143 = vmatpush1.bf16.msra.mxu0 %v4122
      %4144 = vmatprep.subr.bf16.mxu0 0
      %4145 = vmatpush1.bf16.msra.mxu0 %v4123
      %4146 = vmatprep.subr.bf16.mxu0 0
      %4147 = vmatpush1.bf16.msra.mxu0 %v4124
      %4148 = vmatprep.subr.bf16.mxu0 0
      %4149 = vmatpush1.bf16.msra.mxu0 %v4125
      %4150 = vmatprep.subr.bf16.mxu0 0
      %4151 = vmatpush1.bf16.msra.mxu0 0
      %4152 = vmatprep.subr.bf16.mxu0 0
      %4153 = vmatpush1.bf16.msra.mxu0 0
      %4154 = vmatprep.subr.bf16.mxu0 0
      %4155 = vmatpush1.bf16.msra.mxu0 0
      %4156 = vmatprep.subr.bf16.mxu0 0
      %4157 = vmatpush1.bf16.msra.mxu0 0
      %4158 = vmatprep.subr.bf16.mxu0 0
      %4159 = vmatpush1.bf16.msra.mxu0 0
      %4160 = vmatprep.subr.bf16.mxu0 0
      %4161 = vmatpush1.bf16.msra.mxu0 0
      %4162 = vmatprep.subr.bf16.mxu0 0
      %4163 = vmatpush1.bf16.msra.mxu0 0
      %4164 = vmatprep.subr.bf16.mxu0 0
      %4165 = vmatpush1.bf16.msra.mxu0 0
      %4166 = vmatprep.mubr.bf16.mxu0 0
      %4167 = vmatmul.mubr.bf16.gmra.mrb[0].mxu0 %v3705
      %v4168 = vpop.f32.mrb[0].mxu0
      %v4169 = vadd.f32 0.0, %v4168
      %v4170 = vpop.f32.mrb[0].mxu0
      %v4171 = vpop.f32.mrb[0].mxu0
      %v4172 = vadd.f32 0.0, %v4171
      %v4173 = vpop.f32.mrb[0].mxu0
      %4174 = vmatprep.mubr.bf16.mxu0 0
      %4175 = vmatmul.mubr.bf16.gmra.mrb[0].mxu0 %v3706
      %v4176 = vpop.f32.mrb[0].mxu0
      %v4177 = vadd.f32 0.0, %v4176
      %v4178 = vpop.f32.mrb[0].mxu0
      %v4179 = vpop.f32.mrb[0].mxu0
      %v4180 = vadd.f32 0.0, %v4179
      %v4181 = vpop.f32.mrb[0].mxu0
      %4182 = vmatprep.mubr.bf16.mxu0 0
      %4183 = vmatmul.mubr.bf16.gmra.mrb[0].mxu0 %v3707
      %v4184 = vpop.f32.mrb[0].mxu0
      %v4185 = vadd.f32 0.0, %v4184
      %v4186 = vpop.f32.mrb[0].mxu0
      %v4187 = vpop.f32.mrb[0].mxu0
      %v4188 = vadd.f32 0.0, %v4187
      %v4189 = vpop.f32.mrb[0].mxu0
      %4190 = vmatprep.mubr.bf16.mxu0 0
      %4191 = vmatmul.mubr.bf16.gmra.mrb[0].mxu0 %v3708
      %v4192 = vpop.f32.mrb[0].mxu0
      %v4193 = vadd.f32 0.0, %v4192
      %v4194 = vpop.f32.mrb[0].mxu0
      %v4195 = vpop.f32.mrb[0].mxu0
      %v4196 = vadd.f32 0.0, %v4195
      %v4197 = vpop.f32.mrb[0].mxu0
      %4198 = vmatprep.mubr.bf16.mxu0 0
      %4199 = vmatmul.mubr.bf16.gmra.mrb[0].mxu0 %v3709
      %v4200 = vpop.f32.mrb[0].mxu0
      %v4201 = vadd.f32 0.0, %v4200
      %v4202 = vpop.f32.mrb[0].mxu0
      %v4203 = vpop.f32.mrb[0].mxu0
      %v4204 = vadd.f32 0.0, %v4203
      %v4205 = vpop.f32.mrb[0].mxu0
      %4206 = vmatprep.mubr.bf16.mxu0 0
      %4207 = vmatmul.mubr.bf16.gmra.mrb[0].mxu0 %v3710
      %v4208 = vpop.f32.mrb[0].mxu0
      %v4209 = vadd.f32 0.0, %v4208
      %v4210 = vpop.f32.mrb[0].mxu0
      %v4211 = vpop.f32.mrb[0].mxu0
      %v4212 = vadd.f32 0.0, %v4211
      %v4213 = vpop.f32.mrb[0].mxu0
      %4214 = vmatprep.mubr.bf16.mxu0 0
      %4215 = vmatmul.mubr.bf16.gmra.mrb[0].mxu0 %v3889
      %v4216 = vpop.f32.mrb[0].mxu0
      %v4217 = vadd.f32 0.0, %v4216
      %v4218 = vpop.f32.mrb[0].mxu0
      %v4219 = vpop.f32.mrb[0].mxu0
      %v4220 = vadd.f32 0.0, %v4219
      %v4221 = vpop.f32.mrb[0].mxu0
      %4222 = vmatprep.mubr.bf16.mxu0 0
      %4223 = vmatmul.mubr.bf16.gmra.mrb[0].mxu0 %v4068
      %v4224 = vpop.f32.mrb[0].mxu0
      %v4225 = vadd.f32 0.0, %v4224
      %v4226 = vpop.f32.mrb[0].mxu0
      %v4227 = vpop.f32.mrb[0].mxu0
      %v4228 = vadd.f32 0.0, %v4227
      %v4229 = vpop.f32.mrb[0].mxu0
      %4230 = vdwg.mxu0
      %v4231 = vadd.f32 %v4052, %v4169
      %v4232 = vadd.f32 %v4053, %v4172
      %v4233 = vadd.f32 %v4054, %v4177
      %v4234 = vadd.f32 %v4055, %v4180
      %v4235 = vadd.f32 %v4056, %v4185
      %v4236 = vadd.f32 %v4057, %v4188
      %v4237 = vadd.f32 %v4058, %v4193
      %v4238 = vadd.f32 %v4059, %v4196
      %v4239 = vadd.f32 %v4060, %v4201
      %v4240 = vadd.f32 %v4061, %v4204
      %v4241 = vadd.f32 %v4062, %v4209
      %v4242 = vadd.f32 %v4063, %v4212
      %v4243 = vadd.f32 %v4064, %v4217
      %v4244 = vadd.f32 %v4065, %v4220
      %v4245 = vadd.f32 %v4066, %v4225
      %v4246 = vadd.f32 %v4067, %v4228
      %v4247 = vld [vmem:[#allocation3 + $0x2] sm:$0xff]
      %v4248 = vld [vmem:[#allocation3 + $0xa] sm:$0xff]
      %v4249 = vld [vmem:[#allocation3 + $0x1a] sm:$0xff]
      %v4250 = vld [vmem:[#allocation3 + $0x22] sm:$0xff]
      %v4251 = vld [vmem:[#allocation3 + $0x32] sm:$0xff]
      %v4252 = vld [vmem:[#allocation3 + $0x3a] sm:$0xff]
      %v4253 = vld [vmem:[#allocation3 + $0x4a] sm:$0xff]
      %v4254 = vld [vmem:[#allocation3 + $0x52] sm:$0xff]
      %v4255 = vld [vmem:[#allocation3 + $0x62] sm:$0xff]
      %v4256 = vld [vmem:[#allocation3 + $0x6a] sm:$0xff]
      %v4257 = vld [vmem:[#allocation3 + $0x7a] sm:$0xff]
      %v4258 = vld [vmem:[#allocation3 + $0x82] sm:$0xff]
      %v4259 = vld [vmem:[#allocation3 + $0x92] sm:$0xff]
      %v4260 = vld [vmem:[#allocation3 + $0x9a] sm:$0xff]
      %v4261 = vld [vmem:[#allocation3 + $0xaa] sm:$0xff]
      %v4262 = vld [vmem:[#allocation3 + $0xb2] sm:$0xff]
      %v4263 = vld [vmem:[#allocation3 + $0xc2] sm:$0xff]
      %v4264 = vld [vmem:[#allocation3 + $0xca] sm:$0xff]
      %v4265 = vld [vmem:[#allocation3 + $0xda] sm:$0xff]
      %v4266 = vld [vmem:[#allocation3 + $0xe2] sm:$0xff]
      %v4267 = vpack.c.bf16 %v4248, %v4247
      %v4268 = vpack.c.bf16 %v4250, %v4249
      %v4269 = vpack.c.bf16 %v4252, %v4251
      %v4270 = vpack.c.bf16 %v4254, %v4253
      %v4271 = vpack.c.bf16 %v4256, %v4255
      %v4272 = vpack.c.bf16 %v4258, %v4257
      %v4273 = vpack.c.bf16 %v4260, %v4259
      %v4274 = vpack.c.bf16 %v4262, %v4261
      %s4275 = scalar_lea.vmem %s4, 128
      %v4276 = vld [vmem:[%s4275] sm:$0xf]
      %v4277 = vld [vmem:[%s4275 + $0x4] sm:$0xf]
      %v4278 = vld [vmem:[%s4275 + $0x8] sm:$0xf]
      %v4279 = vld [vmem:[%s4275 + $0xc] sm:$0xf]
      %v4280 = vld [vmem:[%s4275 + $0x10] sm:$0xf]
      %v4281 = vld [vmem:[%s4275 + $0x14] sm:$0xf]
      %v4282 = vld [vmem:[%s4275 + $0x18] sm:$0xf]
      %v4283 = vld [vmem:[%s4275 + $0x1c] sm:$0xf]
      %v4284 = vld [vmem:[%s4275 + $0x20] sm:$0xf]
      %v4285 = vld [vmem:[%s4275 + $0x24] sm:$0xf]
      %v4286 = vld [vmem:[%s4275 + $0x28] sm:$0xf]
      %v4287 = vld [vmem:[%s4275 + $0x2c] sm:$0xf]
      %v4288 = vld [vmem:[%s4275 + $0x30] sm:$0xf]
      %v4289 = vld [vmem:[%s4275 + $0x34] sm:$0xf]
      %v4290 = vld [vmem:[%s4275 + $0x38] sm:$0xf]
      %v4291 = vld [vmem:[%s4275 + $0x3c] sm:$0xf]
      %v4308 = vunpack.c.l.b16 %v4276
      %v4309 = vunpack.c.l.b16 %v4277
      %v4310 = vunpack.c.l.b16 %v4278
      %v4311 = vunpack.c.l.b16 %v4279
      %v4312 = vunpack.c.l.b16 %v4280
      %v4313 = vunpack.c.l.b16 %v4281
      %v4314 = vunpack.c.l.b16 %v4282
      %v4315 = vunpack.c.l.b16 %v4283
      %v4316 = vunpack.c.l.b16 %v4284
      %v4317 = vunpack.c.l.b16 %v4285
      %v4318 = vunpack.c.l.b16 %v4286
      %v4319 = vunpack.c.l.b16 %v4287
      %v4320 = vunpack.c.l.b16 %v4288
      %v4321 = vunpack.c.l.b16 %v4289
      %v4322 = vunpack.c.l.b16 %v4290
      %v4323 = vunpack.c.l.b16 %v4291
      %v4324 = vpack.c.b16 %v4309, %v4308
      %v4325 = vpack.c.b16 %v4311, %v4310
      %v4326 = vpack.c.b16 %v4313, %v4312
      %v4327 = vpack.c.b16 %v4315, %v4314
      %v4328 = vpack.c.b16 %v4317, %v4316
      %v4329 = vpack.c.b16 %v4319, %v4318
      %v4330 = vpack.c.b16 %v4321, %v4320
      %v4331 = vpack.c.b16 %v4323, %v4322
      %4340 = vmatprep.subr.bf16.mxu0 0
      %4341 = vmatpush1.bf16.msra.mxu0 %v4324
      %4342 = vmatprep.subr.bf16.mxu0 0
      %4343 = vmatpush1.bf16.msra.mxu0 %v4325
      %4344 = vmatprep.subr.bf16.mxu0 0
      %4345 = vmatpush1.bf16.msra.mxu0 %v4326
      %4346 = vmatprep.subr.bf16.mxu0 0
      %4347 = vmatpush1.bf16.msra.mxu0 %v4327
      %4348 = vmatprep.subr.bf16.mxu0 0
      %4349 = vmatpush1.bf16.msra.mxu0 %v4328
      %4350 = vmatprep.subr.bf16.mxu0 0
      %4351 = vmatpush1.bf16.msra.mxu0 %v4329
      %4352 = vmatprep.subr.bf16.mxu0 0
      %4353 = vmatpush1.bf16.msra.mxu0 %v4330
      %4354 = vmatprep.subr.bf16.mxu0 0
      %4355 = vmatpush1.bf16.msra.mxu0 %v4331
      %4356 = vmatprep.subr.bf16.mxu0 0
      %4357 = vmatpush1.bf16.msra.mxu0 0
      %4358 = vmatprep.subr.bf16.mxu0 0
      %4359 = vmatpush1.bf16.msra.mxu0 0
      %4360 = vmatprep.subr.bf16.mxu0 0
      %4361 = vmatpush1.bf16.msra.mxu0 0
      %4362 = vmatprep.subr.bf16.mxu0 0
      %4363 = vmatpush1.bf16.msra.mxu0 0
      %4364 = vmatprep.subr.bf16.mxu0 0
      %4365 = vmatpush1.bf16.msra.mxu0 0
      %4366 = vmatprep.subr.bf16.mxu0 0
      %4367 = vmatpush1.bf16.msra.mxu0 0
      %4368 = vmatprep.subr.bf16.mxu0 0
      %4369 = vmatpush1.bf16.msra.mxu0 0
      %4370 = vmatprep.subr.bf16.mxu0 0
      %4371 = vmatpush1.bf16.msra.mxu0 0
      %4372 = vmatprep.mubr.bf16.mxu0 0
      %4373 = vmatmul.mubr.bf16.gmra.mrb[0].mxu0 %v4267
      %v4374 = vpop.f32.mrb[0].mxu0
      %v4375 = vadd.f32 0.0, %v4374
      %v4376 = vpop.f32.mrb[0].mxu0
      %v4377 = vpop.f32.mrb[0].mxu0
      %v4378 = vadd.f32 0.0, %v4377
      %v4379 = vpop.f32.mrb[0].mxu0
      %4380 = vmatprep.mubr.bf16.mxu0 0
      %4381 = vmatmul.mubr.bf16.gmra.mrb[0].mxu0 %v4268
      %v4382 = vpop.f32.mrb[0].mxu0
      %v4383 = vadd.f32 0.0, %v4382
      %v4384 = vpop.f32.mrb[0].mxu0
      %v4385 = vpop.f32.mrb[0].mxu0
      %v4386 = vadd.f32 0.0, %v4385
      %v4387 = vpop.f32.mrb[0].mxu0
      %4388 = vmatprep.mubr.bf16.mxu0 0
      %4389 = vmatmul.mubr.bf16.gmra.mrb[0].mxu0 %v4269
      %v4390 = vpop.f32.mrb[0].mxu0
      %v4391 = vadd.f32 0.0, %v4390
      %v4392 = vpop.f32.mrb[0].mxu0
      %v4393 = vpop.f32.mrb[0].mxu0
      %v4394 = vadd.f32 0.0, %v4393
      %v4395 = vpop.f32.mrb[0].mxu0
      %4396 = vmatprep.mubr.bf16.mxu0 0
      %4397 = vmatmul.mubr.bf16.gmra.mrb[0].mxu0 %v4270
      %v4398 = vpop.f32.mrb[0].mxu0
      %v4399 = vadd.f32 0.0, %v4398
      %v4400 = vpop.f32.mrb[0].mxu0
      %v4401 = vpop.f32.mrb[0].mxu0
      %v4402 = vadd.f32 0.0, %v4401
      %v4403 = vpop.f32.mrb[0].mxu0
      %4404 = vmatprep.mubr.bf16.mxu0 0
      %4405 = vmatmul.mubr.bf16.gmra.mrb[0].mxu0 %v4271
      %v4406 = vpop.f32.mrb[0].mxu0
      %v4407 = vadd.f32 0.0, %v4406
      %v4408 = vpop.f32.mrb[0].mxu0
      %v4409 = vpop.f32.mrb[0].mxu0
      %v4410 = vadd.f32 0.0, %v4409
      %v4411 = vpop.f32.mrb[0].mxu0
      %4412 = vmatprep.mubr.bf16.mxu0 0
      %4413 = vmatmul.mubr.bf16.gmra.mrb[0].mxu0 %v4272
      %v4414 = vpop.f32.mrb[0].mxu0
      %v4415 = vadd.f32 0.0, %v4414
      %v4416 = vpop.f32.mrb[0].mxu0
      %v4417 = vpop.f32.mrb[0].mxu0
      %v4418 = vadd.f32 0.0, %v4417
      %v4419 = vpop.f32.mrb[0].mxu0
      %4420 = vmatprep.mubr.bf16.mxu0 0
      %4421 = vmatmul.mubr.bf16.gmra.mrb[0].mxu0 %v4273
      %v4422 = vpop.f32.mrb[0].mxu0
      %v4423 = vadd.f32 0.0, %v4422
      %v4424 = vpop.f32.mrb[0].mxu0
      %v4425 = vpop.f32.mrb[0].mxu0
      %v4426 = vadd.f32 0.0, %v4425
      %v4427 = vpop.f32.mrb[0].mxu0
      %4428 = vmatprep.mubr.bf16.mxu0 0
      %4429 = vmatmul.mubr.bf16.gmra.mrb[0].mxu0 %v4274
      %v4430 = vpop.f32.mrb[0].mxu0
      %v4431 = vadd.f32 0.0, %v4430
      %v4432 = vpop.f32.mrb[0].mxu0
      %v4433 = vpop.f32.mrb[0].mxu0
      %v4434 = vadd.f32 0.0, %v4433
      %v4435 = vpop.f32.mrb[0].mxu0
      %4436 = vdwg.mxu0
      %v4437 = vadd.f32 %v4231, %v4375
      %v4438 = vadd.f32 %v4232, %v4378
      %v4439 = vadd.f32 %v4233, %v4383
      %v4440 = vadd.f32 %v4234, %v4386
      %v4441 = vadd.f32 %v4235, %v4391
      %v4442 = vadd.f32 %v4236, %v4394
      %v4443 = vadd.f32 %v4237, %v4399
      %v4444 = vadd.f32 %v4238, %v4402
      %v4445 = vadd.f32 %v4239, %v4407
      %v4446 = vadd.f32 %v4240, %v4410
      %v4447 = vadd.f32 %v4241, %v4415
      %v4448 = vadd.f32 %v4242, %v4418
      %v4449 = vadd.f32 %v4243, %v4423
      %v4450 = vadd.f32 %v4244, %v4426
      %v4451 = vadd.f32 %v4245, %v4431
      %v4452 = vadd.f32 %v4246, %v4434
      %v4453 = vpack.c.bf16 %v4264, %v4263
      %s4454 = scalar_lea.vmem %s4, 320
      %v4455 = vld [vmem:[%s4454] sm:$0xf]
      %v4456 = vld [vmem:[%s4454 + $0x4] sm:$0xf]
      %v4457 = vld [vmem:[%s4454 + $0x8] sm:$0xf]
      %v4458 = vld [vmem:[%s4454 + $0xc] sm:$0xf]
      %v4459 = vld [vmem:[%s4454 + $0x10] sm:$0xf]
      %v4460 = vld [vmem:[%s4454 + $0x14] sm:$0xf]
      %v4461 = vld [vmem:[%s4454 + $0x18] sm:$0xf]
      %v4462 = vld [vmem:[%s4454 + $0x1c] sm:$0xf]
      %v4463 = vld [vmem:[%s4454 + $0x20] sm:$0xf]
      %v4464 = vld [vmem:[%s4454 + $0x24] sm:$0xf]
      %v4465 = vld [vmem:[%s4454 + $0x28] sm:$0xf]
      %v4466 = vld [vmem:[%s4454 + $0x2c] sm:$0xf]
      %v4467 = vld [vmem:[%s4454 + $0x30] sm:$0xf]
      %v4468 = vld [vmem:[%s4454 + $0x34] sm:$0xf]
      %v4469 = vld [vmem:[%s4454 + $0x38] sm:$0xf]
      %v4470 = vld [vmem:[%s4454 + $0x3c] sm:$0xf]
      %v4487 = vunpack.c.l.b16 %v4455
      %v4488 = vunpack.c.l.b16 %v4456
      %v4489 = vunpack.c.l.b16 %v4457
      %v4490 = vunpack.c.l.b16 %v4458
      %v4491 = vunpack.c.l.b16 %v4459
      %v4492 = vunpack.c.l.b16 %v4460
      %v4493 = vunpack.c.l.b16 %v4461
      %v4494 = vunpack.c.l.b16 %v4462
      %v4495 = vunpack.c.l.b16 %v4463
      %v4496 = vunpack.c.l.b16 %v4464
      %v4497 = vunpack.c.l.b16 %v4465
      %v4498 = vunpack.c.l.b16 %v4466
      %v4499 = vunpack.c.l.b16 %v4467
      %v4500 = vunpack.c.l.b16 %v4468
      %v4501 = vunpack.c.l.b16 %v4469
      %v4502 = vunpack.c.l.b16 %v4470
      %v4503 = vpack.c.b16 %v4488, %v4487
      %v4504 = vpack.c.b16 %v4490, %v4489
      %v4505 = vpack.c.b16 %v4492, %v4491
      %v4506 = vpack.c.b16 %v4494, %v4493
      %v4507 = vpack.c.b16 %v4496, %v4495
      %v4508 = vpack.c.b16 %v4498, %v4497
      %v4509 = vpack.c.b16 %v4500, %v4499
      %v4510 = vpack.c.b16 %v4502, %v4501
      %4519 = vmatprep.subr.bf16.mxu0 0
      %4520 = vmatpush1.bf16.msra.mxu0 %v4503
      %4521 = vmatprep.subr.bf16.mxu0 0
      %4522 = vmatpush1.bf16.msra.mxu0 %v4504
      %4523 = vmatprep.subr.bf16.mxu0 0
      %4524 = vmatpush1.bf16.msra.mxu0 %v4505
      %4525 = vmatprep.subr.bf16.mxu0 0
      %4526 = vmatpush1.bf16.msra.mxu0 %v4506
      %4527 = vmatprep.subr.bf16.mxu0 0
      %4528 = vmatpush1.bf16.msra.mxu0 %v4507
      %4529 = vmatprep.subr.bf16.mxu0 0
      %4530 = vmatpush1.bf16.msra.mxu0 %v4508
      %4531 = vmatprep.subr.bf16.mxu0 0
      %4532 = vmatpush1.bf16.msra.mxu0 %v4509
      %4533 = vmatprep.subr.bf16.mxu0 0
      %4534 = vmatpush1.bf16.msra.mxu0 %v4510
      %4535 = vmatprep.subr.bf16.mxu0 0
      %4536 = vmatpush1.bf16.msra.mxu0 0
      %4537 = vmatprep.subr.bf16.mxu0 0
      %4538 = vmatpush1.bf16.msra.mxu0 0
      %4539 = vmatprep.subr.bf16.mxu0 0
      %4540 = vmatpush1.bf16.msra.mxu0 0
      %4541 = vmatprep.subr.bf16.mxu0 0
      %4542 = vmatpush1.bf16.msra.mxu0 0
      %4543 = vmatprep.subr.bf16.mxu0 0
      %4544 = vmatpush1.bf16.msra.mxu0 0
      %4545 = vmatprep.subr.bf16.mxu0 0
      %4546 = vmatpush1.bf16.msra.mxu0 0
      %4547 = vmatprep.subr.bf16.mxu0 0
      %4548 = vmatpush1.bf16.msra.mxu0 0
      %4549 = vmatprep.subr.bf16.mxu0 0
      %4550 = vmatpush1.bf16.msra.mxu0 0
      %4551 = vmatprep.mubr.bf16.mxu0 0
      %4552 = vmatmul.mubr.bf16.gmra.mrb[0].mxu0 %v4268
      %v4553 = vpop.f32.mrb[0].mxu0
      %v4554 = vadd.f32 0.0, %v4553
      %v4555 = vpop.f32.mrb[0].mxu0
      %v4556 = vpop.f32.mrb[0].mxu0
      %v4557 = vadd.f32 0.0, %v4556
      %v4558 = vpop.f32.mrb[0].mxu0
      %4559 = vmatprep.mubr.bf16.mxu0 0
      %4560 = vmatmul.mubr.bf16.gmra.mrb[0].mxu0 %v4269
      %v4561 = vpop.f32.mrb[0].mxu0
      %v4562 = vadd.f32 0.0, %v4561
      %v4563 = vpop.f32.mrb[0].mxu0
      %v4564 = vpop.f32.mrb[0].mxu0
      %v4565 = vadd.f32 0.0, %v4564
      %v4566 = vpop.f32.mrb[0].mxu0
      %4567 = vmatprep.mubr.bf16.mxu0 0
      %4568 = vmatmul.mubr.bf16.gmra.mrb[0].mxu0 %v4270
      %v4569 = vpop.f32.mrb[0].mxu0
      %v4570 = vadd.f32 0.0, %v4569
      %v4571 = vpop.f32.mrb[0].mxu0
      %v4572 = vpop.f32.mrb[0].mxu0
      %v4573 = vadd.f32 0.0, %v4572
      %v4574 = vpop.f32.mrb[0].mxu0
      %4575 = vmatprep.mubr.bf16.mxu0 0
      %4576 = vmatmul.mubr.bf16.gmra.mrb[0].mxu0 %v4271
      %v4577 = vpop.f32.mrb[0].mxu0
      %v4578 = vadd.f32 0.0, %v4577
      %v4579 = vpop.f32.mrb[0].mxu0
      %v4580 = vpop.f32.mrb[0].mxu0
      %v4581 = vadd.f32 0.0, %v4580
      %v4582 = vpop.f32.mrb[0].mxu0
      %4583 = vmatprep.mubr.bf16.mxu0 0
      %4584 = vmatmul.mubr.bf16.gmra.mrb[0].mxu0 %v4272
      %v4585 = vpop.f32.mrb[0].mxu0
      %v4586 = vadd.f32 0.0, %v4585
      %v4587 = vpop.f32.mrb[0].mxu0
      %v4588 = vpop.f32.mrb[0].mxu0
      %v4589 = vadd.f32 0.0, %v4588
      %v4590 = vpop.f32.mrb[0].mxu0
      %4591 = vmatprep.mubr.bf16.mxu0 0
      %4592 = vmatmul.mubr.bf16.gmra.mrb[0].mxu0 %v4273
      %v4593 = vpop.f32.mrb[0].mxu0
      %v4594 = vadd.f32 0.0, %v4593
      %v4595 = vpop.f32.mrb[0].mxu0
      %v4596 = vpop.f32.mrb[0].mxu0
      %v4597 = vadd.f32 0.0, %v4596
      %v4598 = vpop.f32.mrb[0].mxu0
      %4599 = vmatprep.mubr.bf16.mxu0 0
      %4600 = vmatmul.mubr.bf16.gmra.mrb[0].mxu0 %v4274
      %v4601 = vpop.f32.mrb[0].mxu0
      %v4602 = vadd.f32 0.0, %v4601
      %v4603 = vpop.f32.mrb[0].mxu0
      %v4604 = vpop.f32.mrb[0].mxu0
      %v4605 = vadd.f32 0.0, %v4604
      %v4606 = vpop.f32.mrb[0].mxu0
      %4607 = vmatprep.mubr.bf16.mxu0 0
      %4608 = vmatmul.mubr.bf16.gmra.mrb[0].mxu0 %v4453
      %v4609 = vpop.f32.mrb[0].mxu0
      %v4610 = vadd.f32 0.0, %v4609
      %v4611 = vpop.f32.mrb[0].mxu0
      %v4612 = vpop.f32.mrb[0].mxu0
      %v4613 = vadd.f32 0.0, %v4612
      %v4614 = vpop.f32.mrb[0].mxu0
      %4615 = vdwg.mxu0
      %v4616 = vadd.f32 %v4437, %v4554
      %v4617 = vadd.f32 %v4438, %v4557
      %v4618 = vadd.f32 %v4439, %v4562
      %v4619 = vadd.f32 %v4440, %v4565
      %v4620 = vadd.f32 %v4441, %v4570
      %v4621 = vadd.f32 %v4442, %v4573
      %v4622 = vadd.f32 %v4443, %v4578
      %v4623 = vadd.f32 %v4444, %v4581
      %v4624 = vadd.f32 %v4445, %v4586
      %v4625 = vadd.f32 %v4446, %v4589
      %v4626 = vadd.f32 %v4447, %v4594
      %v4627 = vadd.f32 %v4448, %v4597
      %v4628 = vadd.f32 %v4449, %v4602
      %v4629 = vadd.f32 %v4450, %v4605
      %v4630 = vadd.f32 %v4451, %v4610
      %v4631 = vadd.f32 %v4452, %v4613
      %v4632 = vpack.c.bf16 %v4266, %v4265
      %s4633 = scalar_lea.vmem %s4, 512
      %v4634 = vld [vmem:[%s4633] sm:$0xf]
      %v4635 = vld [vmem:[%s4633 + $0x4] sm:$0xf]
      %v4636 = vld [vmem:[%s4633 + $0x8] sm:$0xf]
      %v4637 = vld [vmem:[%s4633 + $0xc] sm:$0xf]
      %v4638 = vld [vmem:[%s4633 + $0x10] sm:$0xf]
      %v4639 = vld [vmem:[%s4633 + $0x14] sm:$0xf]
      %v4640 = vld [vmem:[%s4633 + $0x18] sm:$0xf]
      %v4641 = vld [vmem:[%s4633 + $0x1c] sm:$0xf]
      %v4642 = vld [vmem:[%s4633 + $0x20] sm:$0xf]
      %v4643 = vld [vmem:[%s4633 + $0x24] sm:$0xf]
      %v4644 = vld [vmem:[%s4633 + $0x28] sm:$0xf]
      %v4645 = vld [vmem:[%s4633 + $0x2c] sm:$0xf]
      %v4646 = vld [vmem:[%s4633 + $0x30] sm:$0xf]
      %v4647 = vld [vmem:[%s4633 + $0x34] sm:$0xf]
      %v4648 = vld [vmem:[%s4633 + $0x38] sm:$0xf]
      %v4649 = vld [vmem:[%s4633 + $0x3c] sm:$0xf]
      %v4666 = vunpack.c.l.b16 %v4634
      %v4667 = vunpack.c.l.b16 %v4635
      %v4668 = vunpack.c.l.b16 %v4636
      %v4669 = vunpack.c.l.b16 %v4637
      %v4670 = vunpack.c.l.b16 %v4638
      %v4671 = vunpack.c.l.b16 %v4639
      %v4672 = vunpack.c.l.b16 %v4640
      %v4673 = vunpack.c.l.b16 %v4641
      %v4674 = vunpack.c.l.b16 %v4642
      %v4675 = vunpack.c.l.b16 %v4643
      %v4676 = vunpack.c.l.b16 %v4644
      %v4677 = vunpack.c.l.b16 %v4645
      %v4678 = vunpack.c.l.b16 %v4646
      %v4679 = vunpack.c.l.b16 %v4647
      %v4680 = vunpack.c.l.b16 %v4648
      %v4681 = vunpack.c.l.b16 %v4649
      %v4682 = vpack.c.b16 %v4667, %v4666
      %v4683 = vpack.c.b16 %v4669, %v4668
      %v4684 = vpack.c.b16 %v4671, %v4670
      %v4685 = vpack.c.b16 %v4673, %v4672
      %v4686 = vpack.c.b16 %v4675, %v4674
      %v4687 = vpack.c.b16 %v4677, %v4676
      %v4688 = vpack.c.b16 %v4679, %v4678
      %v4689 = vpack.c.b16 %v4681, %v4680
      %4698 = vmatprep.subr.bf16.mxu0 0
      %4699 = vmatpush1.bf16.msra.mxu0 %v4682
      %4700 = vmatprep.subr.bf16.mxu0 0
      %4701 = vmatpush1.bf16.msra.mxu0 %v4683
      %4702 = vmatprep.subr.bf16.mxu0 0
      %4703 = vmatpush1.bf16.msra.mxu0 %v4684
      %4704 = vmatprep.subr.bf16.mxu0 0
      %4705 = vmatpush1.bf16.msra.mxu0 %v4685
      %4706 = vmatprep.subr.bf16.mxu0 0
      %4707 = vmatpush1.bf16.msra.mxu0 %v4686
      %4708 = vmatprep.subr.bf16.mxu0 0
      %4709 = vmatpush1.bf16.msra.mxu0 %v4687
      %4710 = vmatprep.subr.bf16.mxu0 0
      %4711 = vmatpush1.bf16.msra.mxu0 %v4688
      %4712 = vmatprep.subr.bf16.mxu0 0
      %4713 = vmatpush1.bf16.msra.mxu0 %v4689
      %4714 = vmatprep.subr.bf16.mxu0 0
      %4715 = vmatpush1.bf16.msra.mxu0 0
      %4716 = vmatprep.subr.bf16.mxu0 0
      %4717 = vmatpush1.bf16.msra.mxu0 0
      %4718 = vmatprep.subr.bf16.mxu0 0
      %4719 = vmatpush1.bf16.msra.mxu0 0
      %4720 = vmatprep.subr.bf16.mxu0 0
      %4721 = vmatpush1.bf16.msra.mxu0 0
      %4722 = vmatprep.subr.bf16.mxu0 0
      %4723 = vmatpush1.bf16.msra.mxu0 0
      %4724 = vmatprep.subr.bf16.mxu0 0
      %4725 = vmatpush1.bf16.msra.mxu0 0
      %4726 = vmatprep.subr.bf16.mxu0 0
      %4727 = vmatpush1.bf16.msra.mxu0 0
      %4728 = vmatprep.subr.bf16.mxu0 0
      %4729 = vmatpush1.bf16.msra.mxu0 0
      %4730 = vmatprep.mubr.bf16.mxu0 0
      %4731 = vmatmul.mubr.bf16.gmra.mrb[0].mxu0 %v4269
      %v4732 = vpop.f32.mrb[0].mxu0
      %v4733 = vadd.f32 0.0, %v4732
      %v4734 = vpop.f32.mrb[0].mxu0
      %v4735 = vpop.f32.mrb[0].mxu0
      %v4736 = vadd.f32 0.0, %v4735
      %v4737 = vpop.f32.mrb[0].mxu0
      %4738 = vmatprep.mubr.bf16.mxu0 0
      %4739 = vmatmul.mubr.bf16.gmra.mrb[0].mxu0 %v4270
      %v4740 = vpop.f32.mrb[0].mxu0
      %v4741 = vadd.f32 0.0, %v4740
      %v4742 = vpop.f32.mrb[0].mxu0
      %v4743 = vpop.f32.mrb[0].mxu0
      %v4744 = vadd.f32 0.0, %v4743
      %v4745 = vpop.f32.mrb[0].mxu0
      %4746 = vmatprep.mubr.bf16.mxu0 0
      %4747 = vmatmul.mubr.bf16.gmra.mrb[0].mxu0 %v4271
      %v4748 = vpop.f32.mrb[0].mxu0
      %v4749 = vadd.f32 0.0, %v4748
      %v4750 = vpop.f32.mrb[0].mxu0
      %v4751 = vpop.f32.mrb[0].mxu0
      %v4752 = vadd.f32 0.0, %v4751
      %v4753 = vpop.f32.mrb[0].mxu0
      %4754 = vmatprep.mubr.bf16.mxu0 0
      %4755 = vmatmul.mubr.bf16.gmra.mrb[0].mxu0 %v4272
      %v4756 = vpop.f32.mrb[0].mxu0
      %v4757 = vadd.f32 0.0, %v4756
      %v4758 = vpop.f32.mrb[0].mxu0
      %v4759 = vpop.f32.mrb[0].mxu0
      %v4760 = vadd.f32 0.0, %v4759
      %v4761 = vpop.f32.mrb[0].mxu0
      %4762 = vmatprep.mubr.bf16.mxu0 0
      %4763 = vmatmul.mubr.bf16.gmra.mrb[0].mxu0 %v4273
      %v4764 = vpop.f32.mrb[0].mxu0
      %v4765 = vadd.f32 0.0, %v4764
      %v4766 = vpop.f32.mrb[0].mxu0
      %v4767 = vpop.f32.mrb[0].mxu0
      %v4768 = vadd.f32 0.0, %v4767
      %v4769 = vpop.f32.mrb[0].mxu0
      %4770 = vmatprep.mubr.bf16.mxu0 0
      %4771 = vmatmul.mubr.bf16.gmra.mrb[0].mxu0 %v4274
      %v4772 = vpop.f32.mrb[0].mxu0
      %v4773 = vadd.f32 0.0, %v4772
      %v4774 = vpop.f32.mrb[0].mxu0
      %v4775 = vpop.f32.mrb[0].mxu0
      %v4776 = vadd.f32 0.0, %v4775
      %v4777 = vpop.f32.mrb[0].mxu0
      %4778 = vmatprep.mubr.bf16.mxu0 0
      %4779 = vmatmul.mubr.bf16.gmra.mrb[0].mxu0 %v4453
      %v4780 = vpop.f32.mrb[0].mxu0
      %v4781 = vadd.f32 0.0, %v4780
      %v4782 = vpop.f32.mrb[0].mxu0
      %v4783 = vpop.f32.mrb[0].mxu0
      %v4784 = vadd.f32 0.0, %v4783
      %v4785 = vpop.f32.mrb[0].mxu0
      %4786 = vmatprep.mubr.bf16.mxu0 0
      %4787 = vmatmul.mubr.bf16.gmra.mrb[0].mxu0 %v4632
      %v4788 = vpop.f32.mrb[0].mxu0
      %v4789 = vadd.f32 0.0, %v4788
      %v4790 = vpop.f32.mrb[0].mxu0
      %v4791 = vpop.f32.mrb[0].mxu0
      %v4792 = vadd.f32 0.0, %v4791
      %v4793 = vpop.f32.mrb[0].mxu0
      %4794 = vdwg.mxu0
      %v4795 = vadd.f32 %v4616, %v4733
      %v4796 = vadd.f32 %v4617, %v4736
      %v4797 = vadd.f32 %v4618, %v4741
      %v4798 = vadd.f32 %v4619, %v4744
      %v4799 = vadd.f32 %v4620, %v4749
      %v4800 = vadd.f32 %v4621, %v4752
      %v4801 = vadd.f32 %v4622, %v4757
      %v4802 = vadd.f32 %v4623, %v4760
      %v4803 = vadd.f32 %v4624, %v4765
      %v4804 = vadd.f32 %v4625, %v4768
      %v4805 = vadd.f32 %v4626, %v4773
      %v4806 = vadd.f32 %v4627, %v4776
      %v4807 = vadd.f32 %v4628, %v4781
      %v4808 = vadd.f32 %v4629, %v4784
      %v4809 = vadd.f32 %v4630, %v4789
      %v4810 = vadd.f32 %v4631, %v4792
      %v4811 = vld [vmem:[%s5] sm:$0x1]
      %v4813 = vlaneseq
      %v4814 = vshrl.u32 %v4813, 7
      %v4815 = vsub.s32 0, %v4814
      %v4816 = vrot.slane %v4811, %v4815
      %v4818 = vadd.f32 %v4795, %v4816
      %v4819 = vadd.f32 %v4796, %v4816
      %v4820 = vadd.f32 %v4797, %v4816
      %v4821 = vadd.f32 %v4798, %v4816
      %v4822 = vadd.f32 %v4799, %v4816
      %v4823 = vadd.f32 %v4800, %v4816
      %v4824 = vadd.f32 %v4801, %v4816
      %v4825 = vadd.f32 %v4802, %v4816
      %v4826 = vadd.f32 %v4803, %v4816
      %v4827 = vadd.f32 %v4804, %v4816
      %v4828 = vadd.f32 %v4805, %v4816
      %v4829 = vadd.f32 %v4806, %v4816
      %v4830 = vadd.f32 %v4807, %v4816
      %v4831 = vadd.f32 %v4808, %v4816
      %v4832 = vadd.f32 %v4809, %v4816
      %v4833 = vadd.f32 %v4810, %v4816
      %s4834 = scalar_lea.vmem [#allocation2], 64
      %v4835 = vld [vmem:[%s4834 + $0x2] sm:$0xff]
      %v4836 = vld [vmem:[%s4834 + $0xa] sm:$0xff]
      %v4837 = vld [vmem:[%s4834 + $0x22] sm:$0xff]
      %v4838 = vld [vmem:[%s4834 + $0x2a] sm:$0xff]
      %v4839 = vld [vmem:[%s4834 + $0x42] sm:$0xff]
      %v4840 = vld [vmem:[%s4834 + $0x4a] sm:$0xff]
      %v4841 = vld [vmem:[%s4834 + $0x62] sm:$0xff]
      %v4842 = vld [vmem:[%s4834 + $0x6a] sm:$0xff]
      %v4843 = vld [vmem:[%s4834 + $0x82] sm:$0xff]
      %v4844 = vld [vmem:[%s4834 + $0x8a] sm:$0xff]
      %v4845 = vld [vmem:[%s4834 + $0xa2] sm:$0xff]
      %v4846 = vld [vmem:[%s4834 + $0xaa] sm:$0xff]
      %v4847 = vld [vmem:[%s4834 + $0xc2] sm:$0xff]
      %v4848 = vld [vmem:[%s4834 + $0xca] sm:$0xff]
      %v4849 = vld [vmem:[%s4834 + $0xe2] sm:$0xff]
      %v4850 = vld [vmem:[%s4834 + $0xea] sm:$0xff]
      %v4851 = vadd.f32 %v4818, %v4835
      %v4852 = vadd.f32 %v4819, %v4836
      %v4853 = vadd.f32 %v4820, %v4837
      %v4854 = vadd.f32 %v4821, %v4838
      %v4855 = vadd.f32 %v4822, %v4839
      %v4856 = vadd.f32 %v4823, %v4840
      %v4857 = vadd.f32 %v4824, %v4841
      %v4858 = vadd.f32 %v4825, %v4842
      %v4859 = vadd.f32 %v4826, %v4843
      %v4860 = vadd.f32 %v4827, %v4844
      %v4861 = vadd.f32 %v4828, %v4845
      %v4862 = vadd.f32 %v4829, %v4846
      %v4863 = vadd.f32 %v4830, %v4847
      %v4864 = vadd.f32 %v4831, %v4848
      %v4865 = vadd.f32 %v4832, %v4849
      %v4866 = vadd.f32 %v4833, %v4850
      %v4867 = vmax.f32 %v4851, 0.0
      %v4868 = vmax.f32 %v4852, 0.0
      %v4869 = vmax.f32 %v4853, 0.0
      %v4870 = vmax.f32 %v4854, 0.0
      %v4871 = vmax.f32 %v4855, 0.0
      %v4872 = vmax.f32 %v4856, 0.0
      %v4873 = vmax.f32 %v4857, 0.0
      %v4874 = vmax.f32 %v4858, 0.0
      %v4875 = vmax.f32 %v4859, 0.0
      %v4876 = vmax.f32 %v4860, 0.0
      %v4877 = vmax.f32 %v4861, 0.0
      %v4878 = vmax.f32 %v4862, 0.0
      %v4879 = vmax.f32 %v4863, 0.0
      %v4880 = vmax.f32 %v4864, 0.0
      %v4881 = vmax.f32 %v4865, 0.0
      %v4882 = vmax.f32 %v4866, 0.0
      %4883 = vst [vmem:[%s372] sm:$0xff] %v4867
      %4884 = vst [vmem:[%s372 + $0x8] sm:$0xff] %v4868
      %4885 = vst [vmem:[%s372 + $0x10] sm:$0xff] %v4869
      %4886 = vst [vmem:[%s372 + $0x18] sm:$0xff] %v4870
      %4887 = vst [vmem:[%s372 + $0x20] sm:$0xff] %v4871
      %4888 = vst [vmem:[%s372 + $0x28] sm:$0xff] %v4872
      %4889 = vst [vmem:[%s372 + $0x30] sm:$0xff] %v4873
      %4890 = vst [vmem:[%s372 + $0x38] sm:$0xff] %v4874
      %4891 = vst [vmem:[%s372 + $0x40] sm:$0xff] %v4875
      %4892 = vst [vmem:[%s372 + $0x48] sm:$0xff] %v4876
      %4893 = vst [vmem:[%s372 + $0x50] sm:$0xff] %v4877
      %4894 = vst [vmem:[%s372 + $0x58] sm:$0xff] %v4878
      %4895 = vst [vmem:[%s372 + $0x60] sm:$0xff] %v4879
      %4896 = vst [vmem:[%s372 + $0x68] sm:$0xff] %v4880
      %4897 = vst [vmem:[%s372 + $0x70] sm:$0xff] %v4881
      %4898 = vst [vmem:[%s372 + $0x78] sm:$0xff] %v4882
      %s4899 = smul.u32 8, %s22
      %p4900 = scmp.lt.s32.totalorder %s21, 1
      %s4901 = scalar_select %p4900, %s21, 1
      %p4902 = scmp.lt.s32.totalorder %s4899, 15
      %s4903 = scalar_select %p4902, %s4899, 15
      %s4904 = smul.addr %s4903, 2
      %s4905 = smul.addr %s4901, 32
      %s4906 = sadd.s32 %s4904, %s4905
      %s4907 = smul.addr %s4906, 8
      %s4908 = scalar_lea.vmem %s6, %s4907
      // Predicated region
      $region45: #{basic_block_forward.1} parent=43 // pred_check
        %p4909 = pneg %p193
      $region46: #{basic_block_forward.1} parent=43 // pred_check_branch
        %4911 = sbr.rel (%p4909) target = $region48
      $region47: #{basic_block_forward.1} parent=43 // pred_region
        %s4912 = smul.u32 8, %s22
      $region48: #{basic_block_forward.1} parent=43 // pred_fallthru
        _
    $region44: #{basic_block_forward.1} parent=5 // pred_fallthru
      _
    %p4913 = scmp.le.s32.totalorder 2, %s12
    // Predicated region
    $region49: #{basic_block_forward.1} parent=5 // pred_check
      %p4914 = pneg %p4913
    $region50: #{basic_block_forward.1} parent=5 // pred_check_branch
      %4916 = sbr.rel (%p4914) target = $region52
    $region51: #{basic_block_forward.1} parent=5 // pred_region
      %s4917 = ssub.s32 %s12, 2
      // Predicated region
      $region53: #{basic_block_forward.1} parent=51 // pred_check
        %p4918 = pneg %p199
      $region54: #{basic_block_forward.1} parent=51 // pred_check_branch
        %4920 = sbr.rel (%p4918) target = $region56
      $region55: #{basic_block_forward.1} parent=51 // pred_region
        %s4921 = smul.u32 8, %s24
        %p4922 = scmp.lt.s32.totalorder %s23, 1
        %s4923 = scalar_select %p4922, %s23, 1
        %p4924 = scmp.lt.s32.totalorder %s4921, 15
        %s4925 = scalar_select %p4924, %s4921, 15
        %s4926 = smul.addr %s4925, 2
        %s4927 = smul.addr %s4923, 32
        %s4928 = sadd.s32 %s4926, %s4927
        %s4929 = smul.addr %s4928, 8
        %s4930 = scalar_lea.vmem %s6, %s4929
      $region56: #{basic_block_forward.1} parent=51 // pred_fallthru
        _
    $region52: #{basic_block_forward.1} parent=5 // pred_fallthru
      _
  $region6: #{basic_block_forward.1} parent=0 // loop_footer
    %s16 = sadd.s32 1, %s12
  $region7: #{basic_block_forward.1} parent=0 // loop_footer_branch
    %11 = sbr.rel target = $region3
  $region8: #{basic_block_forward.1} parent=0 // loop_exit
    _

</llo_original>
